<compile_context>
chip_gen: v6e
topology: v6e:2x2x1
jax: 0.10.0
libtpu: 0.0.40
codegen_flags: <defaults>
</compile_context>

<pallas_src>
import functools

import jax
import jax.numpy as jnp
from jax.experimental import pallas as pl
from jax.experimental.pallas import tpu as pltpu

_P = 2  # unified spatial halo (max of the 3x3 pad=1 and 5x5 pad=2)


def _round_up(x, m):
    return -(-x // m) * m


def _geom(H, W):
    Hp, Wp = H + 2 * _P, W + 2 * _P
    L = Hp * Wp
    Lpad = _round_up(L, 128)            # lane-padded compute/output width (128 multiple)
    shift = _P * Wp + _P                # largest tap offset
    G = _round_up(shift, 128)           # lane-aligned zero guard on each side
    LG = G + Lpad + G
    return Hp, Wp, L, Lpad, G, LG


def _sublane_pad(f, cdt):
    # channel granularity that keeps every stack block sublane-tile aligned
    sub = 8 * (4 // jnp.dtype(cdt).itemsize)    # 8 for f32, 16 for bf16
    return _round_up(f, sub)


def _pad_ch(a, axis, f, cp):
    """Zero-pad a channel axis of size k*f to k*cp, each real f-block at the start of
    its cp-block, so concat layouts stay mutually consistent across stages."""
    if cp == f:
        return a
    k = a.shape[axis] // f
    split = a.shape[:axis] + (k, f) + a.shape[axis + 1:]
    pads = [(0, 0)] * (a.ndim + 1)
    pads[axis + 1] = (0, cp - f)
    out = jnp.pad(a.reshape(split), pads)
    return out.reshape(a.shape[:axis] + (k * cp,) + a.shape[axis + 1:])


def _make_msrb_kernel(geom, c, cdt):
    Hp, Wp, L, Lpad, G, LG = geom
    offs = [(kh - 2) * Wp + (kw - 2) for kh in range(5) for kw in range(5)]

    def kernel(alpha_ref, mask_ref, x_ref,
               w1_ref, b1_ref, w2_ref, b2_ref, wc_ref, bc_ref,
               o_ref, xc_ref, s1_ref, p_ref):
        a = alpha_ref[0]                 # shared PReLU slope (num_parameters=1)
        mask = mask_ref[...]             # (1, Lpad): 1 inside the HxW image, 0 elsewhere

        def prelu(v):
            return jnp.where(v >= 0, v, a * v)

        # single f32 -> compute-dtype cast of the whole guarded input slab
        xc_ref[...] = x_ref[0].astype(cdt)

        # only the s1 guard columns need zeros; the interior is fully overwritten below
        s1_ref[:, :G] = jnp.zeros((2 * c, G), cdt)
        s1_ref[:, G + Lpad:] = jnp.zeros((2 * c, G), cdt)

        # ---- stage 1: shared 25-tap im2col stack + one (2c, 25c) x (25c, Lpad) matmul
        for t, off in enumerate(offs):
            p_ref[t * c:(t + 1) * c, :] = xc_ref[:, G + off:G + off + Lpad]
        s1 = jnp.dot(w1_ref[...], p_ref[:25 * c, :],
                     preferred_element_type=jnp.float32)
        s1 = prelu(s1 + b1_ref[...]) * mask        # mask re-zeros the halo for stage 2
        s1_ref[:, G:G + Lpad] = s1.astype(cdt)     # channel concat = adjacent rows

        # ---- stage 2: same stack trick at 2c channels, one (4c, 50c) x (50c, Lpad) dot
        for t, off in enumerate(offs):
            p_ref[2 * c * t:2 * c * (t + 1), :] = s1_ref[:, G + off:G + off + Lpad]
        s2 = jnp.dot(w2_ref[...], p_ref[...], preferred_element_type=jnp.float32)
        s2 = prelu(s2 + b2_ref[...])

        # ---- fused 1x1 confusion (single 4c contraction) + bias + residual epilogue.
        # The mask re-zeros halo / lane-padding so this guarded layout feeds the next
        # MSRB directly; residual uses the un-cast f32 x.
        out = jnp.dot(wc_ref[...], s2.astype(cdt), preferred_element_type=jnp.float32)
        out = (out + bc_ref[...]) * mask + x_ref[0, :, G:G + Lpad]
        o_ref[0, :, :G] = jnp.zeros((c, G), o_ref.dtype)
        o_ref[0, :, G + Lpad:] = jnp.zeros((c, G), o_ref.dtype)
        o_ref[0, :, G:G + Lpad] = out.astype(o_ref.dtype)

    return kernel


def _bcast_spec(shape):
    zeros = (0,) * len(shape)
    return pl.BlockSpec(shape, lambda n, _z=zeros: _z)


def _to_lane_format(x_nchw, geom):
    Hp, Wp, L, Lpad, G, LG = geom
    N, C = x_nchw.shape[:2]
    xp = jnp.pad(x_nchw, ((0, 0), (0, 0), (_P, _P), (_P, _P))).reshape(N, C, L)
    return jnp.pad(xp, ((0, 0), (0, 0), (G, LG - G - L)))


def _from_lane_format(xf, geom, H, W, f):
    Hp, Wp, L, Lpad, G, LG = geom
    N, C = xf.shape[:2]
    out = xf[:, :, G:G + L].reshape(N, C, Hp, Wp)[:, :, _P:_P + H, _P:_P + W]
    return out[:, :f]


def _msrb_padded(xf, p, f, cp, geom, cdt):
    """One MSRB on activations already in the guarded, lane-padded (N, cp, LG) layout."""
    Hp, Wp, L, Lpad, G, LG = geom
    N = xf.shape[0]
    H, W = Hp - 2 * _P, Wp - 2 * _P

    # validity mask over the padded plane (tiny broadcast input; revisited block => one DMA)
    mask = jnp.zeros((Hp, Wp), jnp.float32).at[_P:_P + H, _P:_P + W].set(1.0)
    mask = jnp.pad(mask.reshape(1, L), ((0, 0), (0, Lpad - L)))

    def embed3(w3):     # zero-embed a 3x3 HWIO weight into the 5x5 tap grid
        return jnp.zeros((5, 5) + w3.shape[2:], w3.dtype).at[1:4, 1:4].set(w3)

    def tapmajor(w):    # (5,5,cin,cout) -> (cout, 25*cin) matching the kernel stack order
        return jnp.transpose(w, (3, 0, 1, 2)).reshape(w.shape[3], -1)

    def padc(w):        # pad cin (axis 2) and cout (axis 3) channel axes to cp granularity
        return _pad_ch(_pad_ch(w, 2, f, cp), 3, f, cp)

    w1 = jnp.concatenate([tapmajor(embed3(padc(p["w31"]))),
                          tapmajor(padc(p["w51"]))], axis=0).astype(cdt)   # (2cp, 25cp)
    w2 = jnp.concatenate([tapmajor(embed3(padc(p["w32"]))),
                          tapmajor(padc(p["w52"]))], axis=0).astype(cdt)   # (4cp, 50cp)
    wc = jnp.transpose(padc(p["wc"])[0, 0], (1, 0)).astype(cdt)            # (cp, 4cp)

    b1 = jnp.concatenate([_pad_ch(p["b31"], 0, f, cp),
                          _pad_ch(p["b51"], 0, f, cp)]).astype(jnp.float32).reshape(2 * cp, 1)
    b2 = jnp.concatenate([_pad_ch(p["b32"], 0, f, cp),
                          _pad_ch(p["b52"], 0, f, cp)]).astype(jnp.float32).reshape(4 * cp, 1)
    bc = _pad_ch(p["bc"], 0, f, cp).astype(jnp.float32).reshape(cp, 1)
    alpha = jnp.asarray(p["prelu_alpha"], jnp.float32).reshape(1)

    kernel = _make_msrb_kernel(geom, cp, cdt)

    in_specs = [
        pl.BlockSpec(memory_space=pltpu.SMEM),                     # PReLU alpha (scalar)
        _bcast_spec((1, Lpad)),                                    # validity mask
        pl.BlockSpec((1, cp, LG), lambda n: (n, 0, 0)),            # x slab (f32, guarded)
        _bcast_spec((2 * cp, 25 * cp)), _bcast_spec((2 * cp, 1)),  # stage-1 stacked weights
        _bcast_spec((4 * cp, 50 * cp)), _bcast_spec((4 * cp, 1)),  # stage-2 stacked weights
        _bcast_spec((cp, 4 * cp)), _bcast_spec((cp, 1)),           # 1x1 confusion
    ]

    return pl.pallas_call(
        kernel,
        out_shape=jax.ShapeDtypeStruct((N, cp, LG), jnp.float32),
        grid=(N,),
        in_specs=in_specs,
        out_specs=pl.BlockSpec((1, cp, LG), lambda n: (n, 0, 0)),  # lane-dense 128-mult store
        scratch_shapes=[pltpu.VMEM((cp, LG), cdt),                 # x cast once
                        pltpu.VMEM((2 * cp, LG), cdt),             # stage-1 concat (guarded)
                        pltpu.VMEM((50 * cp, Lpad), cdt)],         # shared tap stack
        compiler_params=pltpu.CompilerParams(
            dimension_semantics=("parallel",),
            vmem_limit_bytes=32 * 1024 * 1024),
    )(alpha, mask, xf, w1, b1, w2, b2, wc, bc)


@functools.partial(jax.jit, static_argnames=("compute_dtype",))
def msrb_forward(x_nchw, p, compute_dtype=jnp.bfloat16):
    """Matches MSRB.forward; input/output are NCHW like the PyTorch module."""
    N, f, H, W = x_nchw.shape
    geom = _geom(H, W)
    cp = _sublane_pad(f, compute_dtype)
    xf = _to_lane_format(_pad_ch(x_nchw, 1, f, cp), geom)
    yf = _msrb_padded(xf, p, f, cp, geom, compute_dtype)
    return _from_lane_format(yf, geom, H, W, f)


@functools.partial(jax.jit, static_argnames=("compute_dtype",))
def global_path_forward(x_nchw, params_list, compute_dtype=jnp.bfloat16):
    """8x MSRB chain (EncoderDecoderNet.global_path) kept in the guarded lane layout
    between blocks: pad/reshape/slice HBM passes happen only once, not per block."""
    N, f, H, W = x_nchw.shape
    geom = _geom(H, W)
    cp = _sublane_pad(f, compute_dtype)
    xf = _to_lane_format(_pad_ch(x_nchw, 1, f, cp), geom)
    for p in params_list:
        xf = _msrb_padded(xf, p, f, cp, geom, compute_dtype)
    # TODO(synk): EncoderDecoderNet concatenates all 8 intermediates for global_down;
    # keep them in this lane layout so that conv can consume them without re-padding.
    return _from_lane_format(xf, geom, H, W, f)


def init_msrb_params(key, n_feats):
    """Deterministic synthetic init, same shapes as the PyTorch module (HWIO)."""
    ks = jax.random.split(key, 10)

    def conv_w(k, kh, kw, cin, cout):
        scale = 1.0 / jnp.sqrt(float(cin * kh * kw))
        return jax.random.uniform(k, (kh, kw, cin, cout), jnp.float32, -scale, scale)

    def conv_b(k, kh, kw, cin, cout):
        scale = 1.0 / jnp.sqrt(float(cin * kh * kw))
        return jax.random.uniform(k, (cout,), jnp.float32, -scale, scale)

    f = n_feats
    return {
        "w31": conv_w(ks[0], 3, 3, f, f),         "b31": conv_b(ks[1], 3, 3, f, f),
        "w51": conv_w(ks[2], 5, 5, f, f),         "b51": conv_b(ks[3], 5, 5, f, f),
        "w32": conv_w(ks[4], 3, 3, 2 * f, 2 * f), "b32": conv_b(ks[5], 3, 3, 2 * f, 2 * f),
        "w52": conv_w(ks[6], 5, 5, 2 * f, 2 * f), "b52": conv_b(ks[7], 5, 5, 2 * f, 2 * f),
        "wc":  conv_w(ks[8], 1, 1, 4 * f, f),     "bc":  conv_b(ks[9], 1, 1, 4 * f, f),
        "prelu_alpha": jnp.float32(0.25),          # PyTorch PReLU default init
    }


# ---------- pure-JAX reference (for correctness check) ----------
def _conv_ref(x, w, b):
    y = jax.lax.conv_general_dilated(
        x, w, window_strides=(1, 1), padding="SAME",
        dimension_numbers=("NHWC", "HWIO", "NHWC"))
    return y + b[None, None, None, :]


def _prelu_ref(x, a):
    return jnp.where(x >= 0, x, a * x)


def msrb_ref(x_nchw, p):
    x = jnp.transpose(x_nchw, (0, 2, 3, 1))
    a = p["prelu_alpha"]
    o31 = _prelu_ref(_conv_ref(x, p["w31"], p["b31"]), a)
    o51 = _prelu_ref(_conv_ref(x, p["w51"], p["b51"]), a)
    in2 = jnp.concatenate([o31, o51], axis=-1)
    o32 = _prelu_ref(_conv_ref(in2, p["w32"], p["b32"]), a)
    o52 = _prelu_ref(_conv_ref(in2, p["w52"], p["b52"]), a)
    in3 = jnp.concatenate([o32, o52], axis=-1)
    out = _conv_ref(in3, p["wc"], p["bc"]) + x
    return jnp.transpose(out, (0, 3, 1, 2))


if __name__ == "__main__":
    n_feats = 4
    key = jax.random.PRNGKey(0)
    kx, kp, kc = jax.random.split(key, 3)
    x = jax.random.normal(kx, (2, n_feats, 16, 16), jnp.float32)  # NCHW like PyTorch
    params = init_msrb_params(kp, n_feats)

    ref = jax.block_until_ready(msrb_ref(x, params))

    # exact-math variant (f32 MXU inputs): tight correctness gate for the algorithm
    out_f32 = jax.block_until_ready(msrb_forward(x, params, compute_dtype=jnp.float32))
    assert out_f32.shape == x.shape, (out_f32.shape, x.shape)
    assert jnp.allclose(out_f32, ref, atol=1e-4, rtol=1e-4), \
        float(jnp.max(jnp.abs(out_f32 - ref)))

    # fast default: bf16 MXU inputs, f32 accumulation / bias / PReLU / residual
    # (loose tolerance only because inputs/weights are rounded to bf16)
    out_bf16 = jax.block_until_ready(msrb_forward(x, params))
    assert out_bf16.shape == x.shape, (out_bf16.shape, x.shape)
    assert jnp.allclose(out_bf16, ref, atol=1e-1, rtol=1e-1), \
        float(jnp.max(jnp.abs(out_bf16 - ref)))

    # 8-block global_path chain, activations kept in the guarded lane layout between blocks
    chain_params = [init_msrb_params(k, n_feats) for k in jax.random.split(kc, 8)]
    chain_out = jax.block_until_ready(
        global_path_forward(x, chain_params, compute_dtype=jnp.float32))
    chain_ref = x
    for cp_ in chain_params:
        chain_ref = msrb_ref(chain_ref, cp_)
    assert chain_out.shape == x.shape, (chain_out.shape, x.shape)
    assert jnp.allclose(chain_out, chain_ref, atol=5e-3, rtol=5e-3), \
        float(jnp.max(jnp.abs(chain_out - chain_ref)))

    print("KERNEL_OK")
</pallas_src>

<mosaic_0001>
module attributes {stable_mosaic.version = 11 : i64} {
  func.func @kernel(%arg0: i32, %arg1: memref<1xf32, #tpu.memory_space<smem>>, %arg2: memref<1x512xf32, #tpu.memory_space<vmem>>, %arg3: memref<1x8x768xf32, #tpu.memory_space<vmem>>, %arg4: memref<16x200xf32, #tpu.memory_space<vmem>>, %arg5: memref<16x1xf32, #tpu.memory_space<vmem>>, %arg6: memref<32x400xf32, #tpu.memory_space<vmem>>, %arg7: memref<32x1xf32, #tpu.memory_space<vmem>>, %arg8: memref<8x32xf32, #tpu.memory_space<vmem>>, %arg9: memref<8x1xf32, #tpu.memory_space<vmem>>, %arg10: memref<1x8x768xf32, #tpu.memory_space<vmem>>, %arg11: memref<8x768xf32, #tpu.memory_space<vmem>>, %arg12: memref<16x768xf32, #tpu.memory_space<vmem>>, %arg13: memref<400x512xf32, #tpu.memory_space<vmem>>) attributes {dimension_semantics = [#tpu.dimension_semantics<parallel>], iteration_bounds = array<i64: 2>, scalar_prefetch = 0 : i64, scratch_operands = 3 : i64, tpu.core_type = #tpu.core_type<tc>, window_params = [{transform_indices = @transform_0, window_bounds = array<i64: 1>}, {pipeline_mode = #tpu.pipeline_mode<synchronous>, transform_indices = @transform_1, window_bounds = array<i64: 1, 512>}, {transform_indices = @transform_2, window_bounds = array<i64: 1, 8, 768>}, {pipeline_mode = #tpu.pipeline_mode<synchronous>, transform_indices = @transform_3, window_bounds = array<i64: 16, 200>}, {pipeline_mode = #tpu.pipeline_mode<synchronous>, transform_indices = @transform_4, window_bounds = array<i64: 16, 1>}, {pipeline_mode = #tpu.pipeline_mode<synchronous>, transform_indices = @transform_5, window_bounds = array<i64: 32, 400>}, {pipeline_mode = #tpu.pipeline_mode<synchronous>, transform_indices = @transform_6, window_bounds = array<i64: 32, 1>}, {pipeline_mode = #tpu.pipeline_mode<synchronous>, transform_indices = @transform_7, window_bounds = array<i64: 8, 32>}, {pipeline_mode = #tpu.pipeline_mode<synchronous>, transform_indices = @transform_8, window_bounds = array<i64: 8, 1>}, {transform_indices = @transform_9, window_bounds = array<i64: 1, 8, 768>}]} {
    %c0 = arith.constant 0 : index
    %0 = memref.load %arg1[%c0] : memref<1xf32, #tpu.memory_space<smem>>
    %c0_0 = arith.constant 0 : index
    %c0_1 = arith.constant 0 : index
    %1 = vector.load %arg2[%c0_0, %c0_1] : memref<1x512xf32, #tpu.memory_space<vmem>>, vector<1x512xf32>
    %c0_2 = arith.constant 0 : index
    %c0_3 = arith.constant 0 : index
    %c0_4 = arith.constant 0 : index
    %2 = vector.load %arg3[%c0_2, %c0_3, %c0_4] : memref<1x8x768xf32, #tpu.memory_space<vmem>>, vector<1x8x768xf32>
    %3 = vector.shape_cast %2 : vector<1x8x768xf32> to vector<8x768xf32>
    %c0_5 = arith.constant 0 : index
    %c0_6 = arith.constant 0 : index
    %4 = vector.load %arg11[%c0_5, %c0_6] : memref<8x768xf32, #tpu.memory_space<vmem>>, vector<8x768xf32>
    tpu.vector_store %arg11[%c0_5, %c0_6], %3 {strides = array<i32>} : memref<8x768xf32, #tpu.memory_space<vmem>>, vector<8x768xf32>,
    %cst = arith.constant 0.000000e+00 : f32
    %5 = vector.broadcast %cst : f32 to vector<16x128xf32>
    %c0_7 = arith.constant 0 : index
    %c0_8 = arith.constant 0 : index
    %6 = vector.load %arg12[%c0_7, %c0_8] : memref<16x768xf32, #tpu.memory_space<vmem>>, vector<16x128xf32>
    tpu.vector_store %arg12[%c0_7, %c0_8], %5 {strides = array<i32>} : memref<16x768xf32, #tpu.memory_space<vmem>>, vector<16x128xf32>,
    %cst_9 = arith.constant 0.000000e+00 : f32
    %7 = vector.broadcast %cst_9 : f32 to vector<16x128xf32>
    %c0_10 = arith.constant 0 : index
    %c640 = arith.constant 640 : index
    %8 = vector.load %arg12[%c0_10, %c640] : memref<16x768xf32, #tpu.memory_space<vmem>>, vector<16x128xf32>
    tpu.vector_store %arg12[%c0_10, %c640], %7 {strides = array<i32>} : memref<16x768xf32, #tpu.memory_space<vmem>>, vector<16x128xf32>,
    %c0_11 = arith.constant 0 : index
    %c86 = arith.constant 86 : index
    %9 = vector.load %arg11[%c0_11, %c86] : memref<8x768xf32, #tpu.memory_space<vmem>>, vector<8x512xf32>
    %c0_12 = arith.constant 0 : index
    %c0_13 = arith.constant 0 : index
    %10 = vector.load %arg13[%c0_12, %c0_13] : memref<400x512xf32, #tpu.memory_space<vmem>>, vector<8x512xf32>
    tpu.vector_store %arg13[%c0_12, %c0_13], %9 {strides = array<i32>} : memref<400x512xf32, #tpu.memory_space<vmem>>, vector<8x512xf32>,
    %c0_14 = arith.constant 0 : index
    %c87 = arith.constant 87 : index
    %11 = vector.load %arg11[%c0_14, %c87] : memref<8x768xf32, #tpu.memory_space<vmem>>, vector<8x512xf32>
    %c8 = arith.constant 8 : index
    %c0_15 = arith.constant 0 : index
    %12 = vector.load %arg13[%c8, %c0_15] : memref<400x512xf32, #tpu.memory_space<vmem>>, vector<8x512xf32>
    tpu.vector_store %arg13[%c8, %c0_15], %11 {strides = array<i32>} : memref<400x512xf32, #tpu.memory_space<vmem>>, vector<8x512xf32>,
    %c0_16 = arith.constant 0 : index
    %c88 = arith.constant 88 : index
    %13 = vector.load %arg11[%c0_16, %c88] : memref<8x768xf32, #tpu.memory_space<vmem>>, vector<8x512xf32>
    %c16 = arith.constant 16 : index
    %c0_17 = arith.constant 0 : index
    %14 = vector.load %arg13[%c16, %c0_17] : memref<400x512xf32, #tpu.memory_space<vmem>>, vector<8x512xf32>
    tpu.vector_store %arg13[%c16, %c0_17], %13 {strides = array<i32>} : memref<400x512xf32, #tpu.memory_space<vmem>>, vector<8x512xf32>,
    %c0_18 = arith.constant 0 : index
    %c89 = arith.constant 89 : index
    %15 = vector.load %arg11[%c0_18, %c89] : memref<8x768xf32, #tpu.memory_space<vmem>>, vector<8x512xf32>
    %c24 = arith.constant 24 : index
    %c0_19 = arith.constant 0 : index
    %16 = vector.load %arg13[%c24, %c0_19] : memref<400x512xf32, #tpu.memory_space<vmem>>, vector<8x512xf32>
    tpu.vector_store %arg13[%c24, %c0_19], %15 {strides = array<i32>} : memref<400x512xf32, #tpu.memory_space<vmem>>, vector<8x512xf32>,
    %c0_20 = arith.constant 0 : index
    %c90 = arith.constant 90 : index
    %17 = vector.load %arg11[%c0_20, %c90] : memref<8x768xf32, #tpu.memory_space<vmem>>, vector<8x512xf32>
    %c32 = arith.constant 32 : index
    %c0_21 = arith.constant 0 : index
    %18 = vector.load %arg13[%c32, %c0_21] : memref<400x512xf32, #tpu.memory_space<vmem>>, vector<8x512xf32>
    tpu.vector_store %arg13[%c32, %c0_21], %17 {strides = array<i32>} : memref<400x512xf32, #tpu.memory_space<vmem>>, vector<8x512xf32>,
    %c0_22 = arith.constant 0 : index
    %c106 = arith.constant 106 : index
    %19 = vector.load %arg11[%c0_22, %c106] : memref<8x768xf32, #tpu.memory_space<vmem>>, vector<8x512xf32>
    %c40 = arith.constant 40 : index
    %c0_23 = arith.constant 0 : index
    %20 = vector.load %arg13[%c40, %c0_23] : memref<400x512xf32, #tpu.memory_space<vmem>>, vector<8x512xf32>
    tpu.vector_store %arg13[%c40, %c0_23], %19 {strides = array<i32>} : memref<400x512xf32, #tpu.memory_space<vmem>>, vector<8x512xf32>,
    %c0_24 = arith.constant 0 : index
    %c107 = arith.constant 107 : index
    %21 = vector.load %arg11[%c0_24, %c107] : memref<8x768xf32, #tpu.memory_space<vmem>>, vector<8x512xf32>
    %c48 = arith.constant 48 : index
    %c0_25 = arith.constant 0 : index
    %22 = vector.load %arg13[%c48, %c0_25] : memref<400x512xf32, #tpu.memory_space<vmem>>, vector<8x512xf32>
    tpu.vector_store %arg13[%c48, %c0_25], %21 {strides = array<i32>} : memref<400x512xf32, #tpu.memory_space<vmem>>, vector<8x512xf32>,
    %c0_26 = arith.constant 0 : index
    %c108 = arith.constant 108 : index
    %23 = vector.load %arg11[%c0_26, %c108] : memref<8x768xf32, #tpu.memory_space<vmem>>, vector<8x512xf32>
    %c56 = arith.constant 56 : index
    %c0_27 = arith.constant 0 : index
    %24 = vector.load %arg13[%c56, %c0_27] : memref<400x512xf32, #tpu.memory_space<vmem>>, vector<8x512xf32>
    tpu.vector_store %arg13[%c56, %c0_27], %23 {strides = array<i32>} : memref<400x512xf32, #tpu.memory_space<vmem>>, vector<8x512xf32>,
    %c0_28 = arith.constant 0 : index
    %c109 = arith.constant 109 : index
    %25 = vector.load %arg11[%c0_28, %c109] : memref<8x768xf32, #tpu.memory_space<vmem>>, vector<8x512xf32>
    %c64 = arith.constant 64 : index
    %c0_29 = arith.constant 0 : index
    %26 = vector.load %arg13[%c64, %c0_29] : memref<400x512xf32, #tpu.memory_space<vmem>>, vector<8x512xf32>
    tpu.vector_store %arg13[%c64, %c0_29], %25 {strides = array<i32>} : memref<400x512xf32, #tpu.memory_space<vmem>>, vector<8x512xf32>,
    %c0_30 = arith.constant 0 : index
    %c110 = arith.constant 110 : index
    %27 = vector.load %arg11[%c0_30, %c110] : memref<8x768xf32, #tpu.memory_space<vmem>>, vector<8x512xf32>
    %c72 = arith.constant 72 : index
    %c0_31 = arith.constant 0 : index
    %28 = vector.load %arg13[%c72, %c0_31] : memref<400x512xf32, #tpu.memory_space<vmem>>, vector<8x512xf32>
    tpu.vector_store %arg13[%c72, %c0_31], %27 {strides = array<i32>} : memref<400x512xf32, #tpu.memory_space<vmem>>, vector<8x512xf32>,
    %c0_32 = arith.constant 0 : index
    %c126 = arith.constant 126 : index
    %29 = vector.load %arg11[%c0_32, %c126] : memref<8x768xf32, #tpu.memory_space<vmem>>, vector<8x512xf32>
    %c80 = arith.constant 80 : index
    %c0_33 = arith.constant 0 : index
    %30 = vector.load %arg13[%c80, %c0_33] : memref<400x512xf32, #tpu.memory_space<vmem>>, vector<8x512xf32>
    tpu.vector_store %arg13[%c80, %c0_33], %29 {strides = array<i32>} : memref<400x512xf32, #tpu.memory_space<vmem>>, vector<8x512xf32>,
    %c0_34 = arith.constant 0 : index
    %c127 = arith.constant 127 : index
    %31 = vector.load %arg11[%c0_34, %c127] : memref<8x768xf32, #tpu.memory_space<vmem>>, vector<8x512xf32>
    %c88_35 = arith.constant 88 : index
    %c0_36 = arith.constant 0 : index
    %32 = vector.load %arg13[%c88_35, %c0_36] : memref<400x512xf32, #tpu.memory_space<vmem>>, vector<8x512xf32>
    tpu.vector_store %arg13[%c88_35, %c0_36], %31 {strides = array<i32>} : memref<400x512xf32, #tpu.memory_space<vmem>>, vector<8x512xf32>,
    %c0_37 = arith.constant 0 : index
    %c128 = arith.constant 128 : index
    %33 = vector.load %arg11[%c0_37, %c128] : memref<8x768xf32, #tpu.memory_space<vmem>>, vector<8x512xf32>
    %c96 = arith.constant 96 : index
    %c0_38 = arith.constant 0 : index
    %34 = vector.load %arg13[%c96, %c0_38] : memref<400x512xf32, #tpu.memory_space<vmem>>, vector<8x512xf32>
    tpu.vector_store %arg13[%c96, %c0_38], %33 {strides = array<i32>} : memref<400x512xf32, #tpu.memory_space<vmem>>, vector<8x512xf32>,
    %c0_39 = arith.constant 0 : index
    %c129 = arith.constant 129 : index
    %35 = vector.load %arg11[%c0_39, %c129] : memref<8x768xf32, #tpu.memory_space<vmem>>, vector<8x512xf32>
    %c104 = arith.constant 104 : index
    %c0_40 = arith.constant 0 : index
    %36 = vector.load %arg13[%c104, %c0_40] : memref<400x512xf32, #tpu.memory_space<vmem>>, vector<8x512xf32>
    tpu.vector_store %arg13[%c104, %c0_40], %35 {strides = array<i32>} : memref<400x512xf32, #tpu.memory_space<vmem>>, vector<8x512xf32>,
    %c0_41 = arith.constant 0 : index
    %c130 = arith.constant 130 : index
    %37 = vector.load %arg11[%c0_41, %c130] : memref<8x768xf32, #tpu.memory_space<vmem>>, vector<8x512xf32>
    %c112 = arith.constant 112 : index
    %c0_42 = arith.constant 0 : index
    %38 = vector.load %arg13[%c112, %c0_42] : memref<400x512xf32, #tpu.memory_space<vmem>>, vector<8x512xf32>
    tpu.vector_store %arg13[%c112, %c0_42], %37 {strides = array<i32>} : memref<400x512xf32, #tpu.memory_space<vmem>>, vector<8x512xf32>,
    %c0_43 = arith.constant 0 : index
    %c146 = arith.constant 146 : index
    %39 = vector.load %arg11[%c0_43, %c146] : memref<8x768xf32, #tpu.memory_space<vmem>>, vector<8x512xf32>
    %c120 = arith.constant 120 : index
    %c0_44 = arith.constant 0 : index
    %40 = vector.load %arg13[%c120, %c0_44] : memref<400x512xf32, #tpu.memory_space<vmem>>, vector<8x512xf32>
    tpu.vector_store %arg13[%c120, %c0_44], %39 {strides = array<i32>} : memref<400x512xf32, #tpu.memory_space<vmem>>, vector<8x512xf32>,
    %c0_45 = arith.constant 0 : index
    %c147 = arith.constant 147 : index
    %41 = vector.load %arg11[%c0_45, %c147] : memref<8x768xf32, #tpu.memory_space<vmem>>, vector<8x512xf32>
    %c128_46 = arith.constant 128 : index
    %c0_47 = arith.constant 0 : index
    %42 = vector.load %arg13[%c128_46, %c0_47] : memref<400x512xf32, #tpu.memory_space<vmem>>, vector<8x512xf32>
    tpu.vector_store %arg13[%c128_46, %c0_47], %41 {strides = array<i32>} : memref<400x512xf32, #tpu.memory_space<vmem>>, vector<8x512xf32>,
    %c0_48 = arith.constant 0 : index
    %c148 = arith.constant 148 : index
    %43 = vector.load %arg11[%c0_48, %c148] : memref<8x768xf32, #tpu.memory_space<vmem>>, vector<8x512xf32>
    %c136 = arith.constant 136 : index
    %c0_49 = arith.constant 0 : index
    %44 = vector.load %arg13[%c136, %c0_49] : memref<400x512xf32, #tpu.memory_space<vmem>>, vector<8x512xf32>
    tpu.vector_store %arg13[%c136, %c0_49], %43 {strides = array<i32>} : memref<400x512xf32, #tpu.memory_space<vmem>>, vector<8x512xf32>,
    %c0_50 = arith.constant 0 : index
    %c149 = arith.constant 149 : index
    %45 = vector.load %arg11[%c0_50, %c149] : memref<8x768xf32, #tpu.memory_space<vmem>>, vector<8x512xf32>
    %c144 = arith.constant 144 : index
    %c0_51 = arith.constant 0 : index
    %46 = vector.load %arg13[%c144, %c0_51] : memref<400x512xf32, #tpu.memory_space<vmem>>, vector<8x512xf32>
    tpu.vector_store %arg13[%c144, %c0_51], %45 {strides = array<i32>} : memref<400x512xf32, #tpu.memory_space<vmem>>, vector<8x512xf32>,
    %c0_52 = arith.constant 0 : index
    %c150 = arith.constant 150 : index
    %47 = vector.load %arg11[%c0_52, %c150] : memref<8x768xf32, #tpu.memory_space<vmem>>, vector<8x512xf32>
    %c152 = arith.constant 152 : index
    %c0_53 = arith.constant 0 : index
    %48 = vector.load %arg13[%c152, %c0_53] : memref<400x512xf32, #tpu.memory_space<vmem>>, vector<8x512xf32>
    tpu.vector_store %arg13[%c152, %c0_53], %47 {strides = array<i32>} : memref<400x512xf32, #tpu.memory_space<vmem>>, vector<8x512xf32>,
    %c0_54 = arith.constant 0 : index
    %c166 = arith.constant 166 : index
    %49 = vector.load %arg11[%c0_54, %c166] : memref<8x768xf32, #tpu.memory_space<vmem>>, vector<8x512xf32>
    %c160 = arith.constant 160 : index
    %c0_55 = arith.constant 0 : index
    %50 = vector.load %arg13[%c160, %c0_55] : memref<400x512xf32, #tpu.memory_space<vmem>>, vector<8x512xf32>
    tpu.vector_store %arg13[%c160, %c0_55], %49 {strides = array<i32>} : memref<400x512xf32, #tpu.memory_space<vmem>>, vector<8x512xf32>,
    %c0_56 = arith.constant 0 : index
    %c167 = arith.constant 167 : index
    %51 = vector.load %arg11[%c0_56, %c167] : memref<8x768xf32, #tpu.memory_space<vmem>>, vector<8x512xf32>
    %c168 = arith.constant 168 : index
    %c0_57 = arith.constant 0 : index
    %52 = vector.load %arg13[%c168, %c0_57] : memref<400x512xf32, #tpu.memory_space<vmem>>, vector<8x512xf32>
    tpu.vector_store %arg13[%c168, %c0_57], %51 {strides = array<i32>} : memref<400x512xf32, #tpu.memory_space<vmem>>, vector<8x512xf32>,
    %c0_58 = arith.constant 0 : index
    %c168_59 = arith.constant 168 : index
    %53 = vector.load %arg11[%c0_58, %c168_59] : memref<8x768xf32, #tpu.memory_space<vmem>>, vector<8x512xf32>
    %c176 = arith.constant 176 : index
    %c0_60 = arith.constant 0 : index
    %54 = vector.load %arg13[%c176, %c0_60] : memref<400x512xf32, #tpu.memory_space<vmem>>, vector<8x512xf32>
    tpu.vector_store %arg13[%c176, %c0_60], %53 {strides = array<i32>} : memref<400x512xf32, #tpu.memory_space<vmem>>, vector<8x512xf32>,
    %c0_61 = arith.constant 0 : index
    %c169 = arith.constant 169 : index
    %55 = vector.load %arg11[%c0_61, %c169] : memref<8x768xf32, #tpu.memory_space<vmem>>, vector<8x512xf32>
    %c184 = arith.constant 184 : index
    %c0_62 = arith.constant 0 : index
    %56 = vector.load %arg13[%c184, %c0_62] : memref<400x512xf32, #tpu.memory_space<vmem>>, vector<8x512xf32>
    tpu.vector_store %arg13[%c184, %c0_62], %55 {strides = array<i32>} : memref<400x512xf32, #tpu.memory_space<vmem>>, vector<8x512xf32>,
    %c0_63 = arith.constant 0 : index
    %c170 = arith.constant 170 : index
    %57 = vector.load %arg11[%c0_63, %c170] : memref<8x768xf32, #tpu.memory_space<vmem>>, vector<8x512xf32>
    %c192 = arith.constant 192 : index
    %c0_64 = arith.constant 0 : index
    %58 = vector.load %arg13[%c192, %c0_64] : memref<400x512xf32, #tpu.memory_space<vmem>>, vector<8x512xf32>
    tpu.vector_store %arg13[%c192, %c0_64], %57 {strides = array<i32>} : memref<400x512xf32, #tpu.memory_space<vmem>>, vector<8x512xf32>,
    %c0_65 = arith.constant 0 : index
    %c0_66 = arith.constant 0 : index
    %59 = vector.load %arg4[%c0_65, %c0_66] : memref<16x200xf32, #tpu.memory_space<vmem>>, vector<16x200xf32>
    %c0_67 = arith.constant 0 : index
    %c0_68 = arith.constant 0 : index
    %60 = vector.load %arg13[%c0_67, %c0_68] : memref<400x512xf32, #tpu.memory_space<vmem>>, vector<200x512xf32>
    %cst_69 = arith.constant dense<0.000000e+00> : vector<16x512xf32>
    %61 = tpu.matmul %59, %60, %cst_69 {dimension_numbers = #tpu.dot_dimension_numbers<[1], [0], [0], [1], [0, 0, 1, 1], [], []>} : vector<16x200xf32>, vector<200x512xf32>, vector<16x512xf32> -> vector<16x512xf32>
    %c0_70 = arith.constant 0 : index
    %c0_71 = arith.constant 0 : index
    %62 = vector.load %arg5[%c0_70, %c0_71] : memref<16x1xf32, #tpu.memory_space<vmem>>, vector<16x1xf32>
    %63 = vector.broadcast %62 : vector<16x1xf32> to vector<16x512xf32>
    %64 = arith.addf %61, %63 : vector<16x512xf32>
    %cst_72 = arith.constant 0.000000e+00 : f32
    %65 = vector.broadcast %cst_72 : f32 to vector<16x512xf32>
    %66 = arith.cmpf oge, %64, %65 : vector<16x512xf32>
    %67 = vector.broadcast %0 : f32 to vector<16x512xf32>
    %68 = arith.mulf %67, %64 : vector<16x512xf32>
    %69 = arith.select %66, %64, %68 : vector<16x512xi1>, vector<16x512xf32>
    %70 = vector.broadcast %1 : vector<1x512xf32> to vector<16x512xf32>
    %71 = arith.mulf %69, %70 : vector<16x512xf32>
    %c0_73 = arith.constant 0 : index
    %c128_74 = arith.constant 128 : index
    %72 = vector.load %arg12[%c0_73, %c128_74] : memref<16x768xf32, #tpu.memory_space<vmem>>, vector<16x512xf32>
    tpu.vector_store %arg12[%c0_73, %c128_74], %71 {strides = array<i32>} : memref<16x768xf32, #tpu.memory_space<vmem>>, vector<16x512xf32>,
    %c0_75 = arith.constant 0 : index
    %c86_76 = arith.constant 86 : index
    %73 = vector.load %arg12[%c0_75, %c86_76] : memref<16x768xf32, #tpu.memory_space<vmem>>, vector<16x512xf32>
    %c0_77 = arith.constant 0 : index
    %c0_78 = arith.constant 0 : index
    %74 = vector.load %arg13[%c0_77, %c0_78] : memref<400x512xf32, #tpu.memory_space<vmem>>, vector<16x512xf32>
    tpu.vector_store %arg13[%c0_77, %c0_78], %73 {strides = array<i32>} : memref<400x512xf32, #tpu.memory_space<vmem>>, vector<16x512xf32>,
    %c0_79 = arith.constant 0 : index
    %c87_80 = arith.constant 87 : index
    %75 = vector.load %arg12[%c0_79, %c87_80] : memref<16x768xf32, #tpu.memory_space<vmem>>, vector<16x512xf32>
    %c16_81 = arith.constant 16 : index
    %c0_82 = arith.constant 0 : index
    %76 = vector.load %arg13[%c16_81, %c0_82] : memref<400x512xf32, #tpu.memory_space<vmem>>, vector<16x512xf32>
    tpu.vector_store %arg13[%c16_81, %c0_82], %75 {strides = array<i32>} : memref<400x512xf32, #tpu.memory_space<vmem>>, vector<16x512xf32>,
    %c0_83 = arith.constant 0 : index
    %c88_84 = arith.constant 88 : index
    %77 = vector.load %arg12[%c0_83, %c88_84] : memref<16x768xf32, #tpu.memory_space<vmem>>, vector<16x512xf32>
    %c32_85 = arith.constant 32 : index
    %c0_86 = arith.constant 0 : index
    %78 = vector.load %arg13[%c32_85, %c0_86] : memref<400x512xf32, #tpu.memory_space<vmem>>, vector<16x512xf32>
    tpu.vector_store %arg13[%c32_85, %c0_86], %77 {strides = array<i32>} : memref<400x512xf32, #tpu.memory_space<vmem>>, vector<16x512xf32>,
    %c0_87 = arith.constant 0 : index
    %c89_88 = arith.constant 89 : index
    %79 = vector.load %arg12[%c0_87, %c89_88] : memref<16x768xf32, #tpu.memory_space<vmem>>, vector<16x512xf32>
    %c48_89 = arith.constant 48 : index
    %c0_90 = arith.constant 0 : index
    %80 = vector.load %arg13[%c48_89, %c0_90] : memref<400x512xf32, #tpu.memory_space<vmem>>, vector<16x512xf32>
    tpu.vector_store %arg13[%c48_89, %c0_90], %79 {strides = array<i32>} : memref<400x512xf32, #tpu.memory_space<vmem>>, vector<16x512xf32>,
    %c0_91 = arith.constant 0 : index
    %c90_92 = arith.constant 90 : index
    %81 = vector.load %arg12[%c0_91, %c90_92] : memref<16x768xf32, #tpu.memory_space<vmem>>, vector<16x512xf32>
    %c64_93 = arith.constant 64 : index
    %c0_94 = arith.constant 0 : index
    %82 = vector.load %arg13[%c64_93, %c0_94] : memref<400x512xf32, #tpu.memory_space<vmem>>, vector<16x512xf32>
    tpu.vector_store %arg13[%c64_93, %c0_94], %81 {strides = array<i32>} : memref<400x512xf32, #tpu.memory_space<vmem>>, vector<16x512xf32>,
    %c0_95 = arith.constant 0 : index
    %c106_96 = arith.constant 106 : index
    %83 = vector.load %arg12[%c0_95, %c106_96] : memref<16x768xf32, #tpu.memory_space<vmem>>, vector<16x512xf32>
    %c80_97 = arith.constant 80 : index
    %c0_98 = arith.constant 0 : index
    %84 = vector.load %arg13[%c80_97, %c0_98] : memref<400x512xf32, #tpu.memory_space<vmem>>, vector<16x512xf32>
    tpu.vector_store %arg13[%c80_97, %c0_98], %83 {strides = array<i32>} : memref<400x512xf32, #tpu.memory_space<vmem>>, vector<16x512xf32>,
    %c0_99 = arith.constant 0 : index
    %c107_100 = arith.constant 107 : index
    %85 = vector.load %arg12[%c0_99, %c107_100] : memref<16x768xf32, #tpu.memory_space<vmem>>, vector<16x512xf32>
    %c96_101 = arith.constant 96 : index
    %c0_102 = arith.constant 0 : index
    %86 = vector.load %arg13[%c96_101, %c0_102] : memref<400x512xf32, #tpu.memory_space<vmem>>, vector<16x512xf32>
    tpu.vector_store %arg13[%c96_101, %c0_102], %85 {strides = array<i32>} : memref<400x512xf32, #tpu.memory_space<vmem>>, vector<16x512xf32>,
    %c0_103 = arith.constant 0 : index
    %c108_104 = arith.constant 108 : index
    %87 = vector.load %arg12[%c0_103, %c108_104] : memref<16x768xf32, #tpu.memory_space<vmem>>, vector<16x512xf32>
    %c112_105 = arith.constant 112 : index
    %c0_106 = arith.constant 0 : index
    %88 = vector.load %arg13[%c112_105, %c0_106] : memref<400x512xf32, #tpu.memory_space<vmem>>, vector<16x512xf32>
    tpu.vector_store %arg13[%c112_105, %c0_106], %87 {strides = array<i32>} : memref<400x512xf32, #tpu.memory_space<vmem>>, vector<16x512xf32>,
    %c0_107 = arith.constant 0 : index
    %c109_108 = arith.constant 109 : index
    %89 = vector.load %arg12[%c0_107, %c109_108] : memref<16x768xf32, #tpu.memory_space<vmem>>, vector<16x512xf32>
    %c128_109 = arith.constant 128 : index
    %c0_110 = arith.constant 0 : index
    %90 = vector.load %arg13[%c128_109, %c0_110] : memref<400x512xf32, #tpu.memory_space<vmem>>, vector<16x512xf32>
    tpu.vector_store %arg13[%c128_109, %c0_110], %89 {strides = array<i32>} : memref<400x512xf32, #tpu.memory_space<vmem>>, vector<16x512xf32>,
    %c0_111 = arith.constant 0 : index
    %c110_112 = arith.constant 110 : index
    %91 = vector.load %arg12[%c0_111, %c110_112] : memref<16x768xf32, #tpu.memory_space<vmem>>, vector<16x512xf32>
    %c144_113 = arith.constant 144 : index
    %c0_114 = arith.constant 0 : index
    %92 = vector.load %arg13[%c144_113, %c0_114] : memref<400x512xf32, #tpu.memory_space<vmem>>, vector<16x512xf32>
    tpu.vector_store %arg13[%c144_113, %c0_114], %91 {strides = array<i32>} : memref<400x512xf32, #tpu.memory_space<vmem>>, vector<16x512xf32>,
    %c0_115 = arith.constant 0 : index
    %c126_116 = arith.constant 126 : index
    %93 = vector.load %arg12[%c0_115, %c126_116] : memref<16x768xf32, #tpu.memory_space<vmem>>, vector<16x512xf32>
    %c160_117 = arith.constant 160 : index
    %c0_118 = arith.constant 0 : index
    %94 = vector.load %arg13[%c160_117, %c0_118] : memref<400x512xf32, #tpu.memory_space<vmem>>, vector<16x512xf32>
    tpu.vector_store %arg13[%c160_117, %c0_118], %93 {strides = array<i32>} : memref<400x512xf32, #tpu.memory_space<vmem>>, vector<16x512xf32>,
    %c0_119 = arith.constant 0 : index
    %c127_120 = arith.constant 127 : index
    %95 = vector.load %arg12[%c0_119, %c127_120] : memref<16x768xf32, #tpu.memory_space<vmem>>, vector<16x512xf32>
    %c176_121 = arith.constant 176 : index
    %c0_122 = arith.constant 0 : index
    %96 = vector.load %arg13[%c176_121, %c0_122] : memref<400x512xf32, #tpu.memory_space<vmem>>, vector<16x512xf32>
    tpu.vector_store %arg13[%c176_121, %c0_122], %95 {strides = array<i32>} : memref<400x512xf32, #tpu.memory_space<vmem>>, vector<16x512xf32>,
    %c0_123 = arith.constant 0 : index
    %c128_124 = arith.constant 128 : index
    %97 = vector.load %arg12[%c0_123, %c128_124] : memref<16x768xf32, #tpu.memory_space<vmem>>, vector<16x512xf32>
    %c192_125 = arith.constant 192 : index
    %c0_126 = arith.constant 0 : index
    %98 = vector.load %arg13[%c192_125, %c0_126] : memref<400x512xf32, #tpu.memory_space<vmem>>, vector<16x512xf32>
    tpu.vector_store %arg13[%c192_125, %c0_126], %97 {strides = array<i32>} : memref<400x512xf32, #tpu.memory_space<vmem>>, vector<16x512xf32>,
    %c0_127 = arith.constant 0 : index
    %c129_128 = arith.constant 129 : index
    %99 = vector.load %arg12[%c0_127, %c129_128] : memref<16x768xf32, #tpu.memory_space<vmem>>, vector<16x512xf32>
    %c208 = arith.constant 208 : index
    %c0_129 = arith.constant 0 : index
    %100 = vector.load %arg13[%c208, %c0_129] : memref<400x512xf32, #tpu.memory_space<vmem>>, vector<16x512xf32>
    tpu.vector_store %arg13[%c208, %c0_129], %99 {strides = array<i32>} : memref<400x512xf32, #tpu.memory_space<vmem>>, vector<16x512xf32>,
    %c0_130 = arith.constant 0 : index
    %c130_131 = arith.constant 130 : index
    %101 = vector.load %arg12[%c0_130, %c130_131] : memref<16x768xf32, #tpu.memory_space<vmem>>, vector<16x512xf32>
    %c224 = arith.constant 224 : index
    %c0_132 = arith.constant 0 : index
    %102 = vector.load %arg13[%c224, %c0_132] : memref<400x512xf32, #tpu.memory_space<vmem>>, vector<16x512xf32>
    tpu.vector_store %arg13[%c224, %c0_132], %101 {strides = array<i32>} : memref<400x512xf32, #tpu.memory_space<vmem>>, vector<16x512xf32>,
    %c0_133 = arith.constant 0 : index
    %c146_134 = arith.constant 146 : index
    %103 = vector.load %arg12[%c0_133, %c146_134] : memref<16x768xf32, #tpu.memory_space<vmem>>, vector<16x512xf32>
    %c240 = arith.constant 240 : index
    %c0_135 = arith.constant 0 : index
    %104 = vector.load %arg13[%c240, %c0_135] : memref<400x512xf32, #tpu.memory_space<vmem>>, vector<16x512xf32>
    tpu.vector_store %arg13[%c240, %c0_135], %103 {strides = array<i32>} : memref<400x512xf32, #tpu.memory_space<vmem>>, vector<16x512xf32>,
    %c0_136 = arith.constant 0 : index
    %c147_137 = arith.constant 147 : index
    %105 = vector.load %arg12[%c0_136, %c147_137] : memref<16x768xf32, #tpu.memory_space<vmem>>, vector<16x512xf32>
    %c256 = arith.constant 256 : index
    %c0_138 = arith.constant 0 : index
    %106 = vector.load %arg13[%c256, %c0_138] : memref<400x512xf32, #tpu.memory_space<vmem>>, vector<16x512xf32>
    tpu.vector_store %arg13[%c256, %c0_138], %105 {strides = array<i32>} : memref<400x512xf32, #tpu.memory_space<vmem>>, vector<16x512xf32>,
    %c0_139 = arith.constant 0 : index
    %c148_140 = arith.constant 148 : index
    %107 = vector.load %arg12[%c0_139, %c148_140] : memref<16x768xf32, #tpu.memory_space<vmem>>, vector<16x512xf32>
    %c272 = arith.constant 272 : index
    %c0_141 = arith.constant 0 : index
    %108 = vector.load %arg13[%c272, %c0_141] : memref<400x512xf32, #tpu.memory_space<vmem>>, vector<16x512xf32>
    tpu.vector_store %arg13[%c272, %c0_141], %107 {strides = array<i32>} : memref<400x512xf32, #tpu.memory_space<vmem>>, vector<16x512xf32>,
    %c0_142 = arith.constant 0 : index
    %c149_143 = arith.constant 149 : index
    %109 = vector.load %arg12[%c0_142, %c149_143] : memref<16x768xf32, #tpu.memory_space<vmem>>, vector<16x512xf32>
    %c288 = arith.constant 288 : index
    %c0_144 = arith.constant 0 : index
    %110 = vector.load %arg13[%c288, %c0_144] : memref<400x512xf32, #tpu.memory_space<vmem>>, vector<16x512xf32>
    tpu.vector_store %arg13[%c288, %c0_144], %109 {strides = array<i32>} : memref<400x512xf32, #tpu.memory_space<vmem>>, vector<16x512xf32>,
    %c0_145 = arith.constant 0 : index
    %c150_146 = arith.constant 150 : index
    %111 = vector.load %arg12[%c0_145, %c150_146] : memref<16x768xf32, #tpu.memory_space<vmem>>, vector<16x512xf32>
    %c304 = arith.constant 304 : index
    %c0_147 = arith.constant 0 : index
    %112 = vector.load %arg13[%c304, %c0_147] : memref<400x512xf32, #tpu.memory_space<vmem>>, vector<16x512xf32>
    tpu.vector_store %arg13[%c304, %c0_147], %111 {strides = array<i32>} : memref<400x512xf32, #tpu.memory_space<vmem>>, vector<16x512xf32>,
    %c0_148 = arith.constant 0 : index
    %c166_149 = arith.constant 166 : index
    %113 = vector.load %arg12[%c0_148, %c166_149] : memref<16x768xf32, #tpu.memory_space<vmem>>, vector<16x512xf32>
    %c320 = arith.constant 320 : index
    %c0_150 = arith.constant 0 : index
    %114 = vector.load %arg13[%c320, %c0_150] : memref<400x512xf32, #tpu.memory_space<vmem>>, vector<16x512xf32>
    tpu.vector_store %arg13[%c320, %c0_150], %113 {strides = array<i32>} : memref<400x512xf32, #tpu.memory_space<vmem>>, vector<16x512xf32>,
    %c0_151 = arith.constant 0 : index
    %c167_152 = arith.constant 167 : index
    %115 = vector.load %arg12[%c0_151, %c167_152] : memref<16x768xf32, #tpu.memory_space<vmem>>, vector<16x512xf32>
    %c336 = arith.constant 336 : index
    %c0_153 = arith.constant 0 : index
    %116 = vector.load %arg13[%c336, %c0_153] : memref<400x512xf32, #tpu.memory_space<vmem>>, vector<16x512xf32>
    tpu.vector_store %arg13[%c336, %c0_153], %115 {strides = array<i32>} : memref<400x512xf32, #tpu.memory_space<vmem>>, vector<16x512xf32>,
    %c0_154 = arith.constant 0 : index
    %c168_155 = arith.constant 168 : index
    %117 = vector.load %arg12[%c0_154, %c168_155] : memref<16x768xf32, #tpu.memory_space<vmem>>, vector<16x512xf32>
    %c352 = arith.constant 352 : index
    %c0_156 = arith.constant 0 : index
    %118 = vector.load %arg13[%c352, %c0_156] : memref<400x512xf32, #tpu.memory_space<vmem>>, vector<16x512xf32>
    tpu.vector_store %arg13[%c352, %c0_156], %117 {strides = array<i32>} : memref<400x512xf32, #tpu.memory_space<vmem>>, vector<16x512xf32>,
    %c0_157 = arith.constant 0 : index
    %c169_158 = arith.constant 169 : index
    %119 = vector.load %arg12[%c0_157, %c169_158] : memref<16x768xf32, #tpu.memory_space<vmem>>, vector<16x512xf32>
    %c368 = arith.constant 368 : index
    %c0_159 = arith.constant 0 : index
    %120 = vector.load %arg13[%c368, %c0_159] : memref<400x512xf32, #tpu.memory_space<vmem>>, vector<16x512xf32>
    tpu.vector_store %arg13[%c368, %c0_159], %119 {strides = array<i32>} : memref<400x512xf32, #tpu.memory_space<vmem>>, vector<16x512xf32>,
    %c0_160 = arith.constant 0 : index
    %c170_161 = arith.constant 170 : index
    %121 = vector.load %arg12[%c0_160, %c170_161] : memref<16x768xf32, #tpu.memory_space<vmem>>, vector<16x512xf32>
    %c384 = arith.constant 384 : index
    %c0_162 = arith.constant 0 : index
    %122 = vector.load %arg13[%c384, %c0_162] : memref<400x512xf32, #tpu.memory_space<vmem>>, vector<16x512xf32>
    tpu.vector_store %arg13[%c384, %c0_162], %121 {strides = array<i32>} : memref<400x512xf32, #tpu.memory_space<vmem>>, vector<16x512xf32>,
    %c0_163 = arith.constant 0 : index
    %c0_164 = arith.constant 0 : index
    %123 = vector.load %arg6[%c0_163, %c0_164] : memref<32x400xf32, #tpu.memory_space<vmem>>, vector<32x400xf32>
    %c0_165 = arith.constant 0 : index
    %c0_166 = arith.constant 0 : index
    %124 = vector.load %arg13[%c0_165, %c0_166] : memref<400x512xf32, #tpu.memory_space<vmem>>, vector<400x512xf32>
    %cst_167 = arith.constant dense<0.000000e+00> : vector<32x512xf32>
    %125 = tpu.matmul %123, %124, %cst_167 {dimension_numbers = #tpu.dot_dimension_numbers<[1], [0], [0], [1], [0, 0, 1, 1], [], []>} : vector<32x400xf32>, vector<400x512xf32>, vector<32x512xf32> -> vector<32x512xf32>
    %c0_168 = arith.constant 0 : index
    %c0_169 = arith.constant 0 : index
    %126 = vector.load %arg7[%c0_168, %c0_169] : memref<32x1xf32, #tpu.memory_space<vmem>>, vector<32x1xf32>
    %127 = vector.broadcast %126 : vector<32x1xf32> to vector<32x512xf32>
    %128 = arith.addf %125, %127 : vector<32x512xf32>
    %cst_170 = arith.constant 0.000000e+00 : f32
    %129 = vector.broadcast %cst_170 : f32 to vector<32x512xf32>
    %130 = arith.cmpf oge, %128, %129 : vector<32x512xf32>
    %131 = vector.broadcast %0 : f32 to vector<32x512xf32>
    %132 = arith.mulf %131, %128 : vector<32x512xf32>
    %133 = arith.select %130, %128, %132 : vector<32x512xi1>, vector<32x512xf32>
    %c0_171 = arith.constant 0 : index
    %c0_172 = arith.constant 0 : index
    %134 = vector.load %arg8[%c0_171, %c0_172] : memref<8x32xf32, #tpu.memory_space<vmem>>, vector<8x32xf32>
    %cst_173 = arith.constant dense<0.000000e+00> : vector<8x512xf32>
    %135 = tpu.matmul %134, %133, %cst_173 {dimension_numbers = #tpu.dot_dimension_numbers<[1], [0], [0], [1], [0, 0, 1, 1], [], []>} : vector<8x32xf32>, vector<32x512xf32>, vector<8x512xf32> -> vector<8x512xf32>
    %c0_174 = arith.constant 0 : index
    %c0_175 = arith.constant 0 : index
    %136 = vector.load %arg9[%c0_174, %c0_175] : memref<8x1xf32, #tpu.memory_space<vmem>>, vector<8x1xf32>
    %137 = vector.broadcast %136 : vector<8x1xf32> to vector<8x512xf32>
    %138 = arith.addf %135, %137 : vector<8x512xf32>
    %139 = vector.broadcast %1 : vector<1x512xf32> to vector<8x512xf32>
    %140 = arith.mulf %138, %139 : vector<8x512xf32>
    %c0_176 = arith.constant 0 : index
    %c0_177 = arith.constant 0 : index
    %c128_178 = arith.constant 128 : index
    %141 = vector.load %arg3[%c0_176, %c0_177, %c128_178] : memref<1x8x768xf32, #tpu.memory_space<vmem>>, vector<1x8x512xf32>
    %142 = vector.shape_cast %141 : vector<1x8x512xf32> to vector<8x512xf32>
    %143 = arith.addf %140, %142 : vector<8x512xf32>
    %cst_179 = arith.constant 0.000000e+00 : f32
    %144 = vector.broadcast %cst_179 : f32 to vector<8x128xf32>
    %c0_180 = arith.constant 0 : index
    %c0_181 = arith.constant 0 : index
    %c0_182 = arith.constant 0 : index
    %145 = vector.load %arg10[%c0_180, %c0_181, %c0_182] : memref<1x8x768xf32, #tpu.memory_space<vmem>>, vector<1x8x128xf32>
    %146 = vector.shape_cast %145 : vector<1x8x128xf32> to vector<8x128xf32>
    %147 = vector.shape_cast %144 : vector<8x128xf32> to vector<1x8x128xf32>
    tpu.vector_store %arg10[%c0_180, %c0_181, %c0_182], %147 {strides = array<i32>} : memref<1x8x768xf32, #tpu.memory_space<vmem>>, vector<1x8x128xf32>,
    %cst_183 = arith.constant 0.000000e+00 : f32
    %148 = vector.broadcast %cst_183 : f32 to vector<8x128xf32>
    %c0_184 = arith.constant 0 : index
    %c0_185 = arith.constant 0 : index
    %c640_186 = arith.constant 640 : index
    %149 = vector.load %arg10[%c0_184, %c0_185, %c640_186] : memref<1x8x768xf32, #tpu.memory_space<vmem>>, vector<1x8x128xf32>
    %150 = vector.shape_cast %149 : vector<1x8x128xf32> to vector<8x128xf32>
    %151 = vector.shape_cast %148 : vector<8x128xf32> to vector<1x8x128xf32>
    tpu.vector_store %arg10[%c0_184, %c0_185, %c640_186], %151 {strides = array<i32>} : memref<1x8x768xf32, #tpu.memory_space<vmem>>, vector<1x8x128xf32>,
    %c0_187 = arith.constant 0 : index
    %c0_188 = arith.constant 0 : index
    %c128_189 = arith.constant 128 : index
    %152 = vector.load %arg10[%c0_187, %c0_188, %c128_189] : memref<1x8x768xf32, #tpu.memory_space<vmem>>, vector<1x8x512xf32>
    %153 = vector.shape_cast %152 : vector<1x8x512xf32> to vector<8x512xf32>
    %154 = vector.shape_cast %143 : vector<8x512xf32> to vector<1x8x512xf32>
    tpu.vector_store %arg10[%c0_187, %c0_188, %c128_189], %154 {strides = array<i32>} : memref<1x8x768xf32, #tpu.memory_space<vmem>>, vector<1x8x512xf32>,
    return
  }
  func.func @transform_0(%arg0: i32) -> i32 {
    %c0_i32 = arith.constant 0 : i32
    %c0_i32_0 = arith.constant 0 : i32
    return %c0_i32 : i32
  }
  func.func @transform_1(%arg0: i32) -> (i32, i32) {
    %c0_i32 = arith.constant 0 : i32
    %c0_i32_0 = arith.constant 0 : i32
    %c0_i32_1 = arith.constant 0 : i32
    return %c0_i32, %c0_i32_0 : i32, i32
  }
  func.func @transform_2(%arg0: i32) -> (i32, i32, i32) {
    %c0_i32 = arith.constant 0 : i32
    %c0_i32_0 = arith.constant 0 : i32
    %c0_i32_1 = arith.constant 0 : i32
    return %arg0, %c0_i32, %c0_i32_0 : i32, i32, i32
  }
  func.func @transform_3(%arg0: i32) -> (i32, i32) {
    %c0_i32 = arith.constant 0 : i32
    %c0_i32_0 = arith.constant 0 : i32
    %c0_i32_1 = arith.constant 0 : i32
    return %c0_i32, %c0_i32_0 : i32, i32
  }
  func.func @transform_4(%arg0: i32) -> (i32, i32) {
    %c0_i32 = arith.constant 0 : i32
    %c0_i32_0 = arith.constant 0 : i32
    %c0_i32_1 = arith.constant 0 : i32
    return %c0_i32, %c0_i32_0 : i32, i32
  }
  func.func @transform_5(%arg0: i32) -> (i32, i32) {
    %c0_i32 = arith.constant 0 : i32
    %c0_i32_0 = arith.constant 0 : i32
    %c0_i32_1 = arith.constant 0 : i32
    return %c0_i32, %c0_i32_0 : i32, i32
  }
  func.func @transform_6(%arg0: i32) -> (i32, i32) {
    %c0_i32 = arith.constant 0 : i32
    %c0_i32_0 = arith.constant 0 : i32
    %c0_i32_1 = arith.constant 0 : i32
    return %c0_i32, %c0_i32_0 : i32, i32
  }
  func.func @transform_7(%arg0: i32) -> (i32, i32) {
    %c0_i32 = arith.constant 0 : i32
    %c0_i32_0 = arith.constant 0 : i32
    %c0_i32_1 = arith.constant 0 : i32
    return %c0_i32, %c0_i32_0 : i32, i32
  }
  func.func @transform_8(%arg0: i32) -> (i32, i32) {
    %c0_i32 = arith.constant 0 : i32
    %c0_i32_0 = arith.constant 0 : i32
    %c0_i32_1 = arith.constant 0 : i32
    return %c0_i32, %c0_i32_0 : i32, i32
  }
  func.func @transform_9(%arg0: i32) -> (i32, i32, i32) {
    %c0_i32 = arith.constant 0 : i32
    %c0_i32_0 = arith.constant 0 : i32
    %c0_i32_1 = arith.constant 0 : i32
    return %arg0, %c0_i32, %c0_i32_0 : i32, i32, i32
  }
}

</mosaic_0001>

<llo_original>
// kernel: msrb_forward.1
$region0: #{msrb_forward.1}
  #allocation0 [shape = 'u32[]', space=smem, size = 0x4, offset = 0x4, fixed_abs, tag = 'smem constant byte address 0x4 - core index']
  #allocation1 [shape = 'u32[144,128]{1,0:T(1,128)}', space=vmem, size = 0x12000, scoped, tag = 'internal scratch']
  #allocation2 [shape = 'f32[8,768]{1,0:T(8,128)}', space=vmem, size = 0x6000, scoped, tag = 'scratch operand']
  #allocation3 [shape = 'f32[16,768]{1,0:T(8,128)}', space=vmem, size = 0xc000, scoped, tag = 'scratch operand']
  #allocation4 [shape = 'f32[400,512]{1,0:T(8,128)}', space=vmem, size = 0xc8000, scoped, tag = 'scratch operand']
  #allocation5 [shape = 'f32[1]{0:T(128)S(6)}', space=smem, size = 0x200, scoped, tag = 'scoped memory for msrb_forward.1']
  %s0 = inlined_call_operand.<no memory space> [shape: f32[1], index: 0, kind: input, shape index: {}]
  %s1 = inlined_call_operand.vmem [shape: f32[1,512], index: 1, kind: input, shape index: {}]
  %s2 = inlined_call_operand.vmem [shape: f32[2,8,768], index: 2, kind: input, shape index: {}]
  %s3 = inlined_call_operand.vmem [shape: f32[16,200], index: 3, kind: input, shape index: {}]
  %s4 = inlined_call_operand.vmem [shape: f32[16,1], index: 4, kind: input, shape index: {}]
  %s5 = inlined_call_operand.vmem [shape: f32[32,400], index: 5, kind: input, shape index: {}]
  %s6 = inlined_call_operand.vmem [shape: f32[32,1], index: 6, kind: input, shape index: {}]
  %s7 = inlined_call_operand.vmem [shape: f32[8,32], index: 7, kind: input, shape index: {}]
  %s8 = inlined_call_operand.vmem [shape: f32[8,1], index: 8, kind: input, shape index: {}]
  %s9 = inlined_call_operand.vmem [shape: f32[2,8,768], index: 9, kind: output, shape index: {}]
  %s10 = sld [smem:[#allocation0]]
  $region69: #{msrb_forward.1} parent=0
    _
  %s12 = ssub.s32 1, %s10
  %s13 = scalar_select 0, %s12, %s10
  %14 = sst [smem:[#allocation5]] %s0
  loop: start=0, step=1, limit=4
  $region2: #{msrb_forward.1} parent=0 // loop_pre_header
    _
  $region3: #{msrb_forward.1} parent=0 // loop_header
    %s16 = sphi 0, %s20
    %p17 = scmp.ge.s32.totalorder %s16, 4
    %s24 = sphi 0, %s24
    %s26 = sphi 0, %s24
    %s27 = sphi 0, %s26
    %s41 = sphi 0, %s27
    %s45 = sphi 0, %s45
    %s47 = sphi 0, %s45
    %s48 = sphi 0, %s47
    %s62 = sphi 0, %s48
    %s68 = sphi 0, %s70
    %s71 = sphi 0, %s68
    %s72 = sphi 0, %s71
    %s88 = sphi 0, %s72
    %s92 = sphi 0, %s92
    %s94 = sphi 0, %s92
    %s95 = sphi 0, %s94
    %s109 = sphi 0, %s95
    %s113 = sphi 0, %s113
    %s115 = sphi 0, %s113
    %s116 = sphi 0, %s115
    %s130 = sphi 0, %s116
    %s134 = sphi 0, %s134
    %s136 = sphi 0, %s134
    %s137 = sphi 0, %s136
    %s151 = sphi 0, %s137
    %s155 = sphi 0, %s155
    %s157 = sphi 0, %s155
    %s158 = sphi 0, %s157
    %s172 = sphi 0, %s158
    %s176 = sphi 0, %s176
    %s178 = sphi 0, %s176
    %s179 = sphi 0, %s178
    %s193 = sphi 0, %s179
    %s197 = sphi 0, %s197
    %s199 = sphi 0, %s197
    %s200 = sphi 0, %s199
    %s214 = sphi 0, %s200
    %s220 = sphi 0, %s222
    %s223 = sphi 0, %s220
    %s224 = sphi 0, %s223
    %s240 = sphi 0, %s224
  $region4: #{msrb_forward.1} parent=0 // loop_header_branch
    %19 = sbr.rel (%p17) target = $region8
  $region5: #{msrb_forward.1} parent=0 // loop_body
    %s21 = ssub.s32 %s16, 1
    %s22 = ssub.s32 %s16, 2
    %s23 = sadd.s32 %s16, 1
    %s25 = sadd.s32 %s24, 1
    %p28 = scmp.eq.s32.totalorder %s16, 1
    %p29 = scmp.ne.s32.totalorder %s24, %s26
    %p30 = scmp.eq.s32.totalorder %s16, 0
    %p31 = por %p29, %p30
    %p32 = scmp.ne.s32.totalorder %s24, %s26
    %p33 = scmp.eq.s32.totalorder %s21, 1
    %p34 = por %p32, %p33
    %p35 = scmp.ne.s32.totalorder %s26, %s27
    %p36 = scmp.eq.s32.totalorder %s21, 0
    %p37 = por %p35, %p36
    %p38 = scmp.ne.s32.totalorder %s26, %s27
    %p39 = scmp.eq.s32.totalorder %s22, 1
    %p40 = por %p38, %p39
    %p42 = scmp.ne.s32.totalorder %s27, %s41
    %p43 = scmp.eq.s32.totalorder %s22, 0
    %p44 = por %p42, %p43
    %s46 = sadd.s32 %s45, 1
    %p49 = scmp.eq.s32.totalorder %s16, 1
    %p50 = scmp.ne.s32.totalorder %s45, %s47
    %p51 = scmp.eq.s32.totalorder %s16, 0
    %p52 = por %p50, %p51
    %p53 = scmp.ne.s32.totalorder %s45, %s47
    %p54 = scmp.eq.s32.totalorder %s21, 1
    %p55 = por %p53, %p54
    %p56 = scmp.ne.s32.totalorder %s47, %s48
    %p57 = scmp.eq.s32.totalorder %s21, 0
    %p58 = por %p56, %p57
    %p59 = scmp.ne.s32.totalorder %s47, %s48
    %p60 = scmp.eq.s32.totalorder %s22, 1
    %p61 = por %p59, %p60
    %p63 = scmp.ne.s32.totalorder %s48, %s62
    %p64 = scmp.eq.s32.totalorder %s22, 0
    %p65 = por %p63, %p64
    %s66 = ssub.s32 %s16, %s23
    %p67 = scmp.eq.s32.totalorder %s66, 0
    %s69 = sadd.s32 %s68, 1
    %s70 = scalar_select %p67, %s68, %s69
    %p73 = pneg %p67
    %p74 = scmp.eq.s32.totalorder %s16, 1
    %p75 = por %p73, %p74
    %p76 = scmp.ne.s32.totalorder %s68, %s71
    %p77 = scmp.eq.s32.totalorder %s16, 0
    %p78 = por %p76, %p77
    %p79 = scmp.ne.s32.totalorder %s68, %s71
    %p80 = scmp.eq.s32.totalorder %s21, 1
    %p81 = por %p79, %p80
    %p82 = scmp.ne.s32.totalorder %s71, %s72
    %p83 = scmp.eq.s32.totalorder %s21, 0
    %p84 = por %p82, %p83
    %p85 = scmp.ne.s32.totalorder %s71, %s72
    %p86 = scmp.eq.s32.totalorder %s22, 1
    %p87 = por %p85, %p86
    %p89 = scmp.ne.s32.totalorder %s72, %s88
    %p90 = scmp.eq.s32.totalorder %s22, 0
    %p91 = por %p89, %p90
    %s93 = sadd.s32 %s92, 1
    %p96 = scmp.eq.s32.totalorder %s16, 1
    %p97 = scmp.ne.s32.totalorder %s92, %s94
    %p98 = scmp.eq.s32.totalorder %s16, 0
    %p99 = por %p97, %p98
    %p100 = scmp.ne.s32.totalorder %s92, %s94
    %p101 = scmp.eq.s32.totalorder %s21, 1
    %p102 = por %p100, %p101
    %p103 = scmp.ne.s32.totalorder %s94, %s95
    %p104 = scmp.eq.s32.totalorder %s21, 0
    %p105 = por %p103, %p104
    %p106 = scmp.ne.s32.totalorder %s94, %s95
    %p107 = scmp.eq.s32.totalorder %s22, 1
    %p108 = por %p106, %p107
    %p110 = scmp.ne.s32.totalorder %s95, %s109
    %p111 = scmp.eq.s32.totalorder %s22, 0
    %p112 = por %p110, %p111
    %s114 = sadd.s32 %s113, 1
    %p117 = scmp.eq.s32.totalorder %s16, 1
    %p118 = scmp.ne.s32.totalorder %s113, %s115
    %p119 = scmp.eq.s32.totalorder %s16, 0
    %p120 = por %p118, %p119
    %p121 = scmp.ne.s32.totalorder %s113, %s115
    %p122 = scmp.eq.s32.totalorder %s21, 1
    %p123 = por %p121, %p122
    %p124 = scmp.ne.s32.totalorder %s115, %s116
    %p125 = scmp.eq.s32.totalorder %s21, 0
    %p126 = por %p124, %p125
    %p127 = scmp.ne.s32.totalorder %s115, %s116
    %p128 = scmp.eq.s32.totalorder %s22, 1
    %p129 = por %p127, %p128
    %p131 = scmp.ne.s32.totalorder %s116, %s130
    %p132 = scmp.eq.s32.totalorder %s22, 0
    %p133 = por %p131, %p132
    %s135 = sadd.s32 %s134, 1
    %p138 = scmp.eq.s32.totalorder %s16, 1
    %p139 = scmp.ne.s32.totalorder %s134, %s136
    %p140 = scmp.eq.s32.totalorder %s16, 0
    %p141 = por %p139, %p140
    %p142 = scmp.ne.s32.totalorder %s134, %s136
    %p143 = scmp.eq.s32.totalorder %s21, 1
    %p144 = por %p142, %p143
    %p145 = scmp.ne.s32.totalorder %s136, %s137
    %p146 = scmp.eq.s32.totalorder %s21, 0
    %p147 = por %p145, %p146
    %p148 = scmp.ne.s32.totalorder %s136, %s137
    %p149 = scmp.eq.s32.totalorder %s22, 1
    %p150 = por %p148, %p149
    %p152 = scmp.ne.s32.totalorder %s137, %s151
    %p153 = scmp.eq.s32.totalorder %s22, 0
    %p154 = por %p152, %p153
    %s156 = sadd.s32 %s155, 1
    %p159 = scmp.eq.s32.totalorder %s16, 1
    %p160 = scmp.ne.s32.totalorder %s155, %s157
    %p161 = scmp.eq.s32.totalorder %s16, 0
    %p162 = por %p160, %p161
    %p163 = scmp.ne.s32.totalorder %s155, %s157
    %p164 = scmp.eq.s32.totalorder %s21, 1
    %p165 = por %p163, %p164
    %p166 = scmp.ne.s32.totalorder %s157, %s158
    %p167 = scmp.eq.s32.totalorder %s21, 0
    %p168 = por %p166, %p167
    %p169 = scmp.ne.s32.totalorder %s157, %s158
    %p170 = scmp.eq.s32.totalorder %s22, 1
    %p171 = por %p169, %p170
    %p173 = scmp.ne.s32.totalorder %s158, %s172
    %p174 = scmp.eq.s32.totalorder %s22, 0
    %p175 = por %p173, %p174
    %s177 = sadd.s32 %s176, 1
    %p180 = scmp.eq.s32.totalorder %s16, 1
    %p181 = scmp.ne.s32.totalorder %s176, %s178
    %p182 = scmp.eq.s32.totalorder %s16, 0
    %p183 = por %p181, %p182
    %p184 = scmp.ne.s32.totalorder %s176, %s178
    %p185 = scmp.eq.s32.totalorder %s21, 1
    %p186 = por %p184, %p185
    %p187 = scmp.ne.s32.totalorder %s178, %s179
    %p188 = scmp.eq.s32.totalorder %s21, 0
    %p189 = por %p187, %p188
    %p190 = scmp.ne.s32.totalorder %s178, %s179
    %p191 = scmp.eq.s32.totalorder %s22, 1
    %p192 = por %p190, %p191
    %p194 = scmp.ne.s32.totalorder %s179, %s193
    %p195 = scmp.eq.s32.totalorder %s22, 0
    %p196 = por %p194, %p195
    %s198 = sadd.s32 %s197, 1
    %p201 = scmp.eq.s32.totalorder %s16, 1
    %p202 = scmp.ne.s32.totalorder %s197, %s199
    %p203 = scmp.eq.s32.totalorder %s16, 0
    %p204 = por %p202, %p203
    %p205 = scmp.ne.s32.totalorder %s197, %s199
    %p206 = scmp.eq.s32.totalorder %s21, 1
    %p207 = por %p205, %p206
    %p208 = scmp.ne.s32.totalorder %s199, %s200
    %p209 = scmp.eq.s32.totalorder %s21, 0
    %p210 = por %p208, %p209
    %p211 = scmp.ne.s32.totalorder %s199, %s200
    %p212 = scmp.eq.s32.totalorder %s22, 1
    %p213 = por %p211, %p212
    %p215 = scmp.ne.s32.totalorder %s200, %s214
    %p216 = scmp.eq.s32.totalorder %s22, 0
    %p217 = por %p215, %p216
    %s218 = ssub.s32 %s16, %s23
    %p219 = scmp.eq.s32.totalorder %s218, 0
    %s221 = sadd.s32 %s220, 1
    %s222 = scalar_select %p219, %s220, %s221
    %p225 = pneg %p219
    %p226 = scmp.eq.s32.totalorder %s16, 1
    %p227 = por %p225, %p226
    %p228 = scmp.ne.s32.totalorder %s220, %s223
    %p229 = scmp.eq.s32.totalorder %s16, 0
    %p230 = por %p228, %p229
    %p231 = scmp.ne.s32.totalorder %s220, %s223
    %p232 = scmp.eq.s32.totalorder %s21, 1
    %p233 = por %p231, %p232
    %p234 = scmp.ne.s32.totalorder %s223, %s224
    %p235 = scmp.eq.s32.totalorder %s21, 0
    %p236 = por %p234, %p235
    %p237 = scmp.ne.s32.totalorder %s223, %s224
    %p238 = scmp.eq.s32.totalorder %s22, 1
    %p239 = por %p237, %p238
    %p241 = scmp.ne.s32.totalorder %s224, %s240
    %p242 = scmp.eq.s32.totalorder %s22, 0
    %p243 = por %p241, %p242
    %p244 = scmp.le.s32.totalorder 1, %s16
    %p245 = scmp.lt.s32.totalorder %s16, 3
    %p246 = pnand %p244, %p245
    %p247 = pneg %p246
    // Predicated region
    $region9: #{msrb_forward.1} parent=5 // pred_check
      _
    $region10: #{msrb_forward.1} parent=5 // pred_check_branch
      %249 = sbr.rel (%p246) target = $region12
    $region11: #{msrb_forward.1} parent=5 // pred_region
      %s250 = ssub.s32 %s16, 1
      // Predicated region
      $region13: #{msrb_forward.1} parent=11 // pred_check
        %p251 = pneg %p37
      $region14: #{msrb_forward.1} parent=11 // pred_check_branch
        %253 = sbr.rel (%p251) target = $region16
      $region15: #{msrb_forward.1} parent=11 // pred_region
        _
      $region16: #{msrb_forward.1} parent=11 // pred_fallthru
        _
      // Predicated region
      $region17: #{msrb_forward.1} parent=11 // pred_check
        %p254 = pneg %p58
      $region18: #{msrb_forward.1} parent=11 // pred_check_branch
        %256 = sbr.rel (%p254) target = $region20
      $region19: #{msrb_forward.1} parent=11 // pred_region
        _
      $region20: #{msrb_forward.1} parent=11 // pred_fallthru
        _
      // Predicated region
      $region21: #{msrb_forward.1} parent=11 // pred_check
        %p257 = pneg %p105
      $region22: #{msrb_forward.1} parent=11 // pred_check_branch
        %259 = sbr.rel (%p257) target = $region24
      $region23: #{msrb_forward.1} parent=11 // pred_region
        _
      $region24: #{msrb_forward.1} parent=11 // pred_fallthru
        _
      // Predicated region
      $region25: #{msrb_forward.1} parent=11 // pred_check
        %p260 = pneg %p126
      $region26: #{msrb_forward.1} parent=11 // pred_check_branch
        %262 = sbr.rel (%p260) target = $region28
      $region27: #{msrb_forward.1} parent=11 // pred_region
        _
      $region28: #{msrb_forward.1} parent=11 // pred_fallthru
        _
      // Predicated region
      $region29: #{msrb_forward.1} parent=11 // pred_check
        %p263 = pneg %p147
      $region30: #{msrb_forward.1} parent=11 // pred_check_branch
        %265 = sbr.rel (%p263) target = $region32
      $region31: #{msrb_forward.1} parent=11 // pred_region
        _
      $region32: #{msrb_forward.1} parent=11 // pred_fallthru
        _
      // Predicated region
      $region33: #{msrb_forward.1} parent=11 // pred_check
        %p266 = pneg %p168
      $region34: #{msrb_forward.1} parent=11 // pred_check_branch
        %268 = sbr.rel (%p266) target = $region36
      $region35: #{msrb_forward.1} parent=11 // pred_region
        _
      $region36: #{msrb_forward.1} parent=11 // pred_fallthru
        _
      // Predicated region
      $region37: #{msrb_forward.1} parent=11 // pred_check
        %p269 = pneg %p189
      $region38: #{msrb_forward.1} parent=11 // pred_check_branch
        %271 = sbr.rel (%p269) target = $region40
      $region39: #{msrb_forward.1} parent=11 // pred_region
        _
      $region40: #{msrb_forward.1} parent=11 // pred_fallthru
        _
      // Predicated region
      $region41: #{msrb_forward.1} parent=11 // pred_check
        %p272 = pneg %p210
      $region42: #{msrb_forward.1} parent=11 // pred_check_branch
        %274 = sbr.rel (%p272) target = $region44
      $region43: #{msrb_forward.1} parent=11 // pred_region
        _
      $region44: #{msrb_forward.1} parent=11 // pred_fallthru
        _
    $region12: #{msrb_forward.1} parent=5 // pred_fallthru
      _
    %p275 = scmp.lt.s32.totalorder %s16, 2
    // Predicated region
    $region45: #{msrb_forward.1} parent=5 // pred_check
      %p276 = pneg %p275
    $region46: #{msrb_forward.1} parent=5 // pred_check_branch
      %278 = sbr.rel (%p276) target = $region48
    $region47: #{msrb_forward.1} parent=5 // pred_region
      // Predicated region
      $region49: #{msrb_forward.1} parent=47 // pred_check
        %p279 = pneg %p78
      $region50: #{msrb_forward.1} parent=47 // pred_check_branch
        %281 = sbr.rel (%p279) target = $region52
      $region51: #{msrb_forward.1} parent=47 // pred_region
        %p282 = scmp.lt.s32.totalorder %s16, 1
        %s283 = scalar_select %p282, %s16, 1
        %s284 = smul.addr %s283, 6
        %s285 = smul.addr %s284, 8
        %s286 = scalar_lea.vmem %s2, %s285
      $region52: #{msrb_forward.1} parent=47 // pred_fallthru
        _
    $region48: #{msrb_forward.1} parent=5 // pred_fallthru
      _
    %p287 = scmp.le.s32.totalorder 1, %s16
    %p288 = scmp.lt.s32.totalorder %s16, 3
    %p289 = pnand %p287, %p288
    %p290 = pneg %p289
    // Predicated region
    $region53: #{msrb_forward.1} parent=5 // pred_check
      _
    $region54: #{msrb_forward.1} parent=5 // pred_check_branch
      %292 = sbr.rel (%p289) target = $region56
    $region55: #{msrb_forward.1} parent=5 // pred_region
      %s293 = ssub.s32 %s16, 1
      %p294 = pneg %p37
      %p295 = pneg %p34
      %p296 = pneg %p58
      %p297 = pneg %p55
      %p298 = scmp.lt.s32.totalorder %s21, 1
      %s299 = scalar_select %p298, %s21, 1
      %s300 = smul.addr %s299, 6
      %s301 = smul.addr %s300, 8
      %s302 = scalar_lea.vmem %s2, %s301
      %p303 = pneg %p84
      %p304 = pneg %p81
      %p305 = pneg %p105
      %p306 = pneg %p102
      %p307 = pneg %p126
      %p308 = pneg %p123
      %p309 = pneg %p147
      %p310 = pneg %p144
      %p311 = pneg %p168
      %p312 = pneg %p165
      %p313 = pneg %p189
      %p314 = pneg %p186
      %p315 = pneg %p210
      %p316 = pneg %p207
      %p317 = pneg %p236
      %p318 = pneg %p233
      %p319 = scmp.lt.s32.totalorder %s21, 1
      %s320 = scalar_select %p319, %s21, 1
      %s321 = smul.addr %s320, 6
      %s322 = smul.addr %s321, 8
      %s323 = scalar_lea.vmem %s9, %s322
      %p324 = scmp.lt.s32.totalorder %s21, 1
      %s325 = scalar_select %p324, %s21, 1
      %s326 = smul.addr %s325, 6
      %s327 = smul.addr %s326, 8
      %s328 = scalar_lea.vmem %s2, %s327
      %p329 = scmp.lt.s32.totalorder %s21, 1
      %s330 = scalar_select %p329, %s21, 1
      %s331 = smul.addr %s330, 6
      %s332 = smul.addr %s331, 8
      %s333 = scalar_lea.vmem %s9, %s332
      %s334 = sld [smem:[#allocation5]]
      %v335 = vld [vmem:[%s1] sm:$0xf]
      %v336 = vld [vmem:[%s328] sm:$0xff]
      %v337 = vld [vmem:[%s328 + $0x8] sm:$0xff]
      %v338 = vld [vmem:[%s328 + $0x10] sm:$0xff]
      %v339 = vld [vmem:[%s328 + $0x18] sm:$0xff]
      %v340 = vld [vmem:[%s328 + $0x20] sm:$0xff]
      %v341 = vld [vmem:[%s328 + $0x28] sm:$0xff]
      %342 = vst [vmem:[#allocation2] sm:$0xff] %v336
      %343 = vst [vmem:[#allocation2 + $0x8] sm:$0xff] %v337
      %344 = vst [vmem:[#allocation2 + $0x10] sm:$0xff] %v338
      %345 = vst [vmem:[#allocation2 + $0x18] sm:$0xff] %v339
      %346 = vst [vmem:[#allocation2 + $0x20] sm:$0xff] %v340
      %347 = vst [vmem:[#allocation2 + $0x28] sm:$0xff] %v341
      %348 = vst [vmem:[#allocation3] sm:$0xff] 0.0
      %349 = vst [vmem:[#allocation3 + $0x30] sm:$0xff] 0.0
      %350 = vst [vmem:[#allocation3 + $0x28] sm:$0xff] 0.0
      %351 = vst [vmem:[#allocation3 + $0x58] sm:$0xff] 0.0
      %v352 = vld [vmem:[#allocation2] sm:$0xff]
      %v353 = vld [vmem:[#allocation2 + $0x8] sm:$0xff]
      %v354 = vld [vmem:[#allocation2 + $0x10] sm:$0xff]
      %v355 = vld [vmem:[#allocation2 + $0x18] sm:$0xff]
      %v356 = vld [vmem:[#allocation2 + $0x20] sm:$0xff]
      %362 = vrot.lane.b32.xlu0 %v352, 42
      %v363 = vpop.permute.xlu0 %362
      %364 = vrot.lane.b32.xlu0 %v353, 42
      %v365 = vpop.permute.xlu0 %364
      %366 = vrot.lane.b32.xlu0 %v354, 42
      %v367 = vpop.permute.xlu0 %366
      %368 = vrot.lane.b32.xlu0 %v355, 42
      %v369 = vpop.permute.xlu0 %368
      %370 = vrot.lane.b32.xlu0 %v356, 42
      %v371 = vpop.permute.xlu0 %370
      %vm372 = vcmask 343040
      %v373 = vsel %vm372, %v363, %v365
      %v374 = vsel %vm372, %v365, %v367
      %v375 = vsel %vm372, %v367, %v369
      %v376 = vsel %vm372, %v369, %v371
      %381 = vst [vmem:[#allocation4] sm:$0xff] %v373
      %382 = vst [vmem:[#allocation4 + $0x8] sm:$0xff] %v374
      %383 = vst [vmem:[#allocation4 + $0x10] sm:$0xff] %v375
      %384 = vst [vmem:[#allocation4 + $0x18] sm:$0xff] %v376
      %v385 = vld [vmem:[#allocation2] sm:$0xff]
      %v386 = vld [vmem:[#allocation2 + $0x8] sm:$0xff]
      %v387 = vld [vmem:[#allocation2 + $0x10] sm:$0xff]
      %v388 = vld [vmem:[#allocation2 + $0x18] sm:$0xff]
      %v389 = vld [vmem:[#allocation2 + $0x20] sm:$0xff]
      %395 = vrot.lane.b32.xlu0 %v385, 41
      %v396 = vpop.permute.xlu0 %395
      %397 = vrot.lane.b32.xlu0 %v386, 41
      %v398 = vpop.permute.xlu0 %397
      %399 = vrot.lane.b32.xlu0 %v387, 41
      %v400 = vpop.permute.xlu0 %399
      %401 = vrot.lane.b32.xlu0 %v388, 41
      %v402 = vpop.permute.xlu0 %401
      %403 = vrot.lane.b32.xlu0 %v389, 41
      %v404 = vpop.permute.xlu0 %403
      %vm405 = vcmask 334848
      %v406 = vsel %vm405, %v396, %v398
      %v407 = vsel %vm405, %v398, %v400
      %v408 = vsel %vm405, %v400, %v402
      %v409 = vsel %vm405, %v402, %v404
      %414 = vst [vmem:[#allocation4 + $0x20] sm:$0xff] %v406
      %415 = vst [vmem:[#allocation4 + $0x28] sm:$0xff] %v407
      %416 = vst [vmem:[#allocation4 + $0x30] sm:$0xff] %v408
      %417 = vst [vmem:[#allocation4 + $0x38] sm:$0xff] %v409
      %v418 = vld [vmem:[#allocation2] sm:$0xff]
      %v419 = vld [vmem:[#allocation2 + $0x8] sm:$0xff]
      %v420 = vld [vmem:[#allocation2 + $0x10] sm:$0xff]
      %v421 = vld [vmem:[#allocation2 + $0x18] sm:$0xff]
      %v422 = vld [vmem:[#allocation2 + $0x20] sm:$0xff]
      %428 = vrot.lane.b32.xlu0 %v418, 40
      %v429 = vpop.permute.xlu0 %428
      %430 = vrot.lane.b32.xlu0 %v419, 40
      %v431 = vpop.permute.xlu0 %430
      %432 = vrot.lane.b32.xlu0 %v420, 40
      %v433 = vpop.permute.xlu0 %432
      %434 = vrot.lane.b32.xlu0 %v421, 40
      %v435 = vpop.permute.xlu0 %434
      %436 = vrot.lane.b32.xlu0 %v422, 40
      %v437 = vpop.permute.xlu0 %436
      %vm438 = vcmask 326656
      %v439 = vsel %vm438, %v429, %v431
      %v440 = vsel %vm438, %v431, %v433
      %v441 = vsel %vm438, %v433, %v435
      %v442 = vsel %vm438, %v435, %v437
      %447 = vst [vmem:[#allocation4 + $0x40] sm:$0xff] %v439
      %448 = vst [vmem:[#allocation4 + $0x48] sm:$0xff] %v440
      %449 = vst [vmem:[#allocation4 + $0x50] sm:$0xff] %v441
      %450 = vst [vmem:[#allocation4 + $0x58] sm:$0xff] %v442
      %v451 = vld [vmem:[#allocation2] sm:$0xff]
      %v452 = vld [vmem:[#allocation2 + $0x8] sm:$0xff]
      %v453 = vld [vmem:[#allocation2 + $0x10] sm:$0xff]
      %v454 = vld [vmem:[#allocation2 + $0x18] sm:$0xff]
      %v455 = vld [vmem:[#allocation2 + $0x20] sm:$0xff]
      %461 = vrot.lane.b32.xlu0 %v451, 39
      %v462 = vpop.permute.xlu0 %461
      %463 = vrot.lane.b32.xlu0 %v452, 39
      %v464 = vpop.permute.xlu0 %463
      %465 = vrot.lane.b32.xlu0 %v453, 39
      %v466 = vpop.permute.xlu0 %465
      %467 = vrot.lane.b32.xlu0 %v454, 39
      %v468 = vpop.permute.xlu0 %467
      %469 = vrot.lane.b32.xlu0 %v455, 39
      %v470 = vpop.permute.xlu0 %469
      %vm471 = vcmask 318464
      %v472 = vsel %vm471, %v462, %v464
      %v473 = vsel %vm471, %v464, %v466
      %v474 = vsel %vm471, %v466, %v468
      %v475 = vsel %vm471, %v468, %v470
      %480 = vst [vmem:[#allocation4 + $0x60] sm:$0xff] %v472
      %481 = vst [vmem:[#allocation4 + $0x68] sm:$0xff] %v473
      %482 = vst [vmem:[#allocation4 + $0x70] sm:$0xff] %v474
      %483 = vst [vmem:[#allocation4 + $0x78] sm:$0xff] %v475
      %v484 = vld [vmem:[#allocation2] sm:$0xff]
      %v485 = vld [vmem:[#allocation2 + $0x8] sm:$0xff]
      %v486 = vld [vmem:[#allocation2 + $0x10] sm:$0xff]
      %v487 = vld [vmem:[#allocation2 + $0x18] sm:$0xff]
      %v488 = vld [vmem:[#allocation2 + $0x20] sm:$0xff]
      %494 = vrot.lane.b32.xlu0 %v484, 38
      %v495 = vpop.permute.xlu0 %494
      %496 = vrot.lane.b32.xlu0 %v485, 38
      %v497 = vpop.permute.xlu0 %496
      %498 = vrot.lane.b32.xlu0 %v486, 38
      %v499 = vpop.permute.xlu0 %498
      %500 = vrot.lane.b32.xlu0 %v487, 38
      %v501 = vpop.permute.xlu0 %500
      %502 = vrot.lane.b32.xlu0 %v488, 38
      %v503 = vpop.permute.xlu0 %502
      %vm504 = vcmask 310272
      %v505 = vsel %vm504, %v495, %v497
      %v506 = vsel %vm504, %v497, %v499
      %v507 = vsel %vm504, %v499, %v501
      %v508 = vsel %vm504, %v501, %v503
      %513 = vst [vmem:[#allocation4 + $0x80] sm:$0xff] %v505
      %514 = vst [vmem:[#allocation4 + $0x88] sm:$0xff] %v506
      %515 = vst [vmem:[#allocation4 + $0x90] sm:$0xff] %v507
      %516 = vst [vmem:[#allocation4 + $0x98] sm:$0xff] %v508
      %v517 = vld [vmem:[#allocation2] sm:$0xff]
      %v518 = vld [vmem:[#allocation2 + $0x8] sm:$0xff]
      %v519 = vld [vmem:[#allocation2 + $0x10] sm:$0xff]
      %v520 = vld [vmem:[#allocation2 + $0x18] sm:$0xff]
      %v521 = vld [vmem:[#allocation2 + $0x20] sm:$0xff]
      %527 = vrot.lane.b32.xlu0 %v517, 22
      %v528 = vpop.permute.xlu0 %527
      %529 = vrot.lane.b32.xlu0 %v518, 22
      %v530 = vpop.permute.xlu0 %529
      %531 = vrot.lane.b32.xlu0 %v519, 22
      %v532 = vpop.permute.xlu0 %531
      %533 = vrot.lane.b32.xlu0 %v520, 22
      %v534 = vpop.permute.xlu0 %533
      %535 = vrot.lane.b32.xlu0 %v521, 22
      %v536 = vpop.permute.xlu0 %535
      %vm537 = vcmask 179200
      %v538 = vsel %vm537, %v528, %v530
      %v539 = vsel %vm537, %v530, %v532
      %v540 = vsel %vm537, %v532, %v534
      %v541 = vsel %vm537, %v534, %v536
      %546 = vst [vmem:[#allocation4 + $0xa0] sm:$0xff] %v538
      %547 = vst [vmem:[#allocation4 + $0xa8] sm:$0xff] %v539
      %548 = vst [vmem:[#allocation4 + $0xb0] sm:$0xff] %v540
      %549 = vst [vmem:[#allocation4 + $0xb8] sm:$0xff] %v541
      %v550 = vld [vmem:[#allocation2] sm:$0xff]
      %v551 = vld [vmem:[#allocation2 + $0x8] sm:$0xff]
      %v552 = vld [vmem:[#allocation2 + $0x10] sm:$0xff]
      %v553 = vld [vmem:[#allocation2 + $0x18] sm:$0xff]
      %v554 = vld [vmem:[#allocation2 + $0x20] sm:$0xff]
      %560 = vrot.lane.b32.xlu0 %v550, 21
      %v561 = vpop.permute.xlu0 %560
      %562 = vrot.lane.b32.xlu0 %v551, 21
      %v563 = vpop.permute.xlu0 %562
      %564 = vrot.lane.b32.xlu0 %v552, 21
      %v565 = vpop.permute.xlu0 %564
      %566 = vrot.lane.b32.xlu0 %v553, 21
      %v567 = vpop.permute.xlu0 %566
      %568 = vrot.lane.b32.xlu0 %v554, 21
      %v569 = vpop.permute.xlu0 %568
      %vm570 = vcmask 171008
      %v571 = vsel %vm570, %v561, %v563
      %v572 = vsel %vm570, %v563, %v565
      %v573 = vsel %vm570, %v565, %v567
      %v574 = vsel %vm570, %v567, %v569
      %579 = vst [vmem:[#allocation4 + $0xc0] sm:$0xff] %v571
      %580 = vst [vmem:[#allocation4 + $0xc8] sm:$0xff] %v572
      %581 = vst [vmem:[#allocation4 + $0xd0] sm:$0xff] %v573
      %582 = vst [vmem:[#allocation4 + $0xd8] sm:$0xff] %v574
      %v583 = vld [vmem:[#allocation2] sm:$0xff]
      %v584 = vld [vmem:[#allocation2 + $0x8] sm:$0xff]
      %v585 = vld [vmem:[#allocation2 + $0x10] sm:$0xff]
      %v586 = vld [vmem:[#allocation2 + $0x18] sm:$0xff]
      %v587 = vld [vmem:[#allocation2 + $0x20] sm:$0xff]
      %593 = vrot.lane.b32.xlu0 %v583, 20
      %v594 = vpop.permute.xlu0 %593
      %595 = vrot.lane.b32.xlu0 %v584, 20
      %v596 = vpop.permute.xlu0 %595
      %597 = vrot.lane.b32.xlu0 %v585, 20
      %v598 = vpop.permute.xlu0 %597
      %599 = vrot.lane.b32.xlu0 %v586, 20
      %v600 = vpop.permute.xlu0 %599
      %601 = vrot.lane.b32.xlu0 %v587, 20
      %v602 = vpop.permute.xlu0 %601
      %vm603 = vcmask 162816
      %v604 = vsel %vm603, %v594, %v596
      %v605 = vsel %vm603, %v596, %v598
      %v606 = vsel %vm603, %v598, %v600
      %v607 = vsel %vm603, %v600, %v602
      %612 = vst [vmem:[#allocation4 + $0xe0] sm:$0xff] %v604
      %613 = vst [vmem:[#allocation4 + $0xe8] sm:$0xff] %v605
      %614 = vst [vmem:[#allocation4 + $0xf0] sm:$0xff] %v606
      %615 = vst [vmem:[#allocation4 + $0xf8] sm:$0xff] %v607
      %v616 = vld [vmem:[#allocation2] sm:$0xff]
      %v617 = vld [vmem:[#allocation2 + $0x8] sm:$0xff]
      %v618 = vld [vmem:[#allocation2 + $0x10] sm:$0xff]
      %v619 = vld [vmem:[#allocation2 + $0x18] sm:$0xff]
      %v620 = vld [vmem:[#allocation2 + $0x20] sm:$0xff]
      %626 = vrot.lane.b32.xlu0 %v616, 19
      %v627 = vpop.permute.xlu0 %626
      %628 = vrot.lane.b32.xlu0 %v617, 19
      %v629 = vpop.permute.xlu0 %628
      %630 = vrot.lane.b32.xlu0 %v618, 19
      %v631 = vpop.permute.xlu0 %630
      %632 = vrot.lane.b32.xlu0 %v619, 19
      %v633 = vpop.permute.xlu0 %632
      %634 = vrot.lane.b32.xlu0 %v620, 19
      %v635 = vpop.permute.xlu0 %634
      %vm636 = vcmask 154624
      %v637 = vsel %vm636, %v627, %v629
      %v638 = vsel %vm636, %v629, %v631
      %v639 = vsel %vm636, %v631, %v633
      %v640 = vsel %vm636, %v633, %v635
      %645 = vst [vmem:[#allocation4 + $0x100] sm:$0xff] %v637
      %646 = vst [vmem:[#allocation4 + $0x108] sm:$0xff] %v638
      %647 = vst [vmem:[#allocation4 + $0x110] sm:$0xff] %v639
      %648 = vst [vmem:[#allocation4 + $0x118] sm:$0xff] %v640
      %v649 = vld [vmem:[#allocation2] sm:$0xff]
      %v650 = vld [vmem:[#allocation2 + $0x8] sm:$0xff]
      %v651 = vld [vmem:[#allocation2 + $0x10] sm:$0xff]
      %v652 = vld [vmem:[#allocation2 + $0x18] sm:$0xff]
      %v653 = vld [vmem:[#allocation2 + $0x20] sm:$0xff]
      %659 = vrot.lane.b32.xlu0 %v649, 18
      %v660 = vpop.permute.xlu0 %659
      %661 = vrot.lane.b32.xlu0 %v650, 18
      %v662 = vpop.permute.xlu0 %661
      %663 = vrot.lane.b32.xlu0 %v651, 18
      %v664 = vpop.permute.xlu0 %663
      %665 = vrot.lane.b32.xlu0 %v652, 18
      %v666 = vpop.permute.xlu0 %665
      %667 = vrot.lane.b32.xlu0 %v653, 18
      %v668 = vpop.permute.xlu0 %667
      %vm669 = vcmask 146432
      %v670 = vsel %vm669, %v660, %v662
      %v671 = vsel %vm669, %v662, %v664
      %v672 = vsel %vm669, %v664, %v666
      %v673 = vsel %vm669, %v666, %v668
      %678 = vst [vmem:[#allocation4 + $0x120] sm:$0xff] %v670
      %679 = vst [vmem:[#allocation4 + $0x128] sm:$0xff] %v671
      %680 = vst [vmem:[#allocation4 + $0x130] sm:$0xff] %v672
      %681 = vst [vmem:[#allocation4 + $0x138] sm:$0xff] %v673
      %v682 = vld [vmem:[#allocation2] sm:$0xff]
      %v683 = vld [vmem:[#allocation2 + $0x8] sm:$0xff]
      %v684 = vld [vmem:[#allocation2 + $0x10] sm:$0xff]
      %v685 = vld [vmem:[#allocation2 + $0x18] sm:$0xff]
      %v686 = vld [vmem:[#allocation2 + $0x20] sm:$0xff]
      %692 = vrot.lane.b32.xlu0 %v682, 2
      %v693 = vpop.permute.xlu0 %692
      %694 = vrot.lane.b32.xlu0 %v683, 2
      %v695 = vpop.permute.xlu0 %694
      %696 = vrot.lane.b32.xlu0 %v684, 2
      %v697 = vpop.permute.xlu0 %696
      %698 = vrot.lane.b32.xlu0 %v685, 2
      %v699 = vpop.permute.xlu0 %698
      %700 = vrot.lane.b32.xlu0 %v686, 2
      %v701 = vpop.permute.xlu0 %700
      %vm702 = vcmask 15360
      %v703 = vsel %vm702, %v693, %v695
      %v704 = vsel %vm702, %v695, %v697
      %v705 = vsel %vm702, %v697, %v699
      %v706 = vsel %vm702, %v699, %v701
      %711 = vst [vmem:[#allocation4 + $0x140] sm:$0xff] %v703
      %712 = vst [vmem:[#allocation4 + $0x148] sm:$0xff] %v704
      %713 = vst [vmem:[#allocation4 + $0x150] sm:$0xff] %v705
      %714 = vst [vmem:[#allocation4 + $0x158] sm:$0xff] %v706
      %v715 = vld [vmem:[#allocation2] sm:$0xff]
      %v716 = vld [vmem:[#allocation2 + $0x8] sm:$0xff]
      %v717 = vld [vmem:[#allocation2 + $0x10] sm:$0xff]
      %v718 = vld [vmem:[#allocation2 + $0x18] sm:$0xff]
      %v719 = vld [vmem:[#allocation2 + $0x20] sm:$0xff]
      %725 = vrot.lane.b32.xlu0 %v715, 1
      %v726 = vpop.permute.xlu0 %725
      %727 = vrot.lane.b32.xlu0 %v716, 1
      %v728 = vpop.permute.xlu0 %727
      %729 = vrot.lane.b32.xlu0 %v717, 1
      %v730 = vpop.permute.xlu0 %729
      %731 = vrot.lane.b32.xlu0 %v718, 1
      %v732 = vpop.permute.xlu0 %731
      %733 = vrot.lane.b32.xlu0 %v719, 1
      %v734 = vpop.permute.xlu0 %733
      %vm735 = vcmask 7168
      %v736 = vsel %vm735, %v726, %v728
      %v737 = vsel %vm735, %v728, %v730
      %v738 = vsel %vm735, %v730, %v732
      %v739 = vsel %vm735, %v732, %v734
      %744 = vst [vmem:[#allocation4 + $0x160] sm:$0xff] %v736
      %745 = vst [vmem:[#allocation4 + $0x168] sm:$0xff] %v737
      %746 = vst [vmem:[#allocation4 + $0x170] sm:$0xff] %v738
      %747 = vst [vmem:[#allocation4 + $0x178] sm:$0xff] %v739
      %v748 = vld [vmem:[#allocation2 + $0x8] sm:$0xff]
      %v749 = vld [vmem:[#allocation2 + $0x10] sm:$0xff]
      %v750 = vld [vmem:[#allocation2 + $0x18] sm:$0xff]
      %v751 = vld [vmem:[#allocation2 + $0x20] sm:$0xff]
      %752 = vst [vmem:[#allocation4 + $0x180] sm:$0xff] %v748
      %753 = vst [vmem:[#allocation4 + $0x188] sm:$0xff] %v749
      %754 = vst [vmem:[#allocation4 + $0x190] sm:$0xff] %v750
      %755 = vst [vmem:[#allocation4 + $0x198] sm:$0xff] %v751
      %v756 = vld [vmem:[#allocation2 + $0x8] sm:$0xff]
      %v757 = vld [vmem:[#allocation2 + $0x10] sm:$0xff]
      %v758 = vld [vmem:[#allocation2 + $0x18] sm:$0xff]
      %v759 = vld [vmem:[#allocation2 + $0x20] sm:$0xff]
      %v760 = vld [vmem:[#allocation2 + $0x28] sm:$0xff]
      %766 = vrot.lane.b32.xlu0 %v756, 127
      %v767 = vpop.permute.xlu0 %766
      %768 = vrot.lane.b32.xlu0 %v757, 127
      %v769 = vpop.permute.xlu0 %768
      %770 = vrot.lane.b32.xlu0 %v758, 127
      %v771 = vpop.permute.xlu0 %770
      %772 = vrot.lane.b32.xlu0 %v759, 127
      %v773 = vpop.permute.xlu0 %772
      %774 = vrot.lane.b32.xlu0 %v760, 127
      %v775 = vpop.permute.xlu0 %774
      %vm776 = vcmask 1039360
      %v777 = vsel %vm776, %v767, %v769
      %v778 = vsel %vm776, %v769, %v771
      %v779 = vsel %vm776, %v771, %v773
      %v780 = vsel %vm776, %v773, %v775
      %785 = vst [vmem:[#allocation4 + $0x1a0] sm:$0xff] %v777
      %786 = vst [vmem:[#allocation4 + $0x1a8] sm:$0xff] %v778
      %787 = vst [vmem:[#allocation4 + $0x1b0] sm:$0xff] %v779
      %788 = vst [vmem:[#allocation4 + $0x1b8] sm:$0xff] %v780
      %v789 = vld [vmem:[#allocation2 + $0x8] sm:$0xff]
      %v790 = vld [vmem:[#allocation2 + $0x10] sm:$0xff]
      %v791 = vld [vmem:[#allocation2 + $0x18] sm:$0xff]
      %v792 = vld [vmem:[#allocation2 + $0x20] sm:$0xff]
      %v793 = vld [vmem:[#allocation2 + $0x28] sm:$0xff]
      %799 = vrot.lane.b32.xlu0 %v789, 126
      %v800 = vpop.permute.xlu0 %799
      %801 = vrot.lane.b32.xlu0 %v790, 126
      %v802 = vpop.permute.xlu0 %801
      %803 = vrot.lane.b32.xlu0 %v791, 126
      %v804 = vpop.permute.xlu0 %803
      %805 = vrot.lane.b32.xlu0 %v792, 126
      %v806 = vpop.permute.xlu0 %805
      %807 = vrot.lane.b32.xlu0 %v793, 126
      %v808 = vpop.permute.xlu0 %807
      %vm809 = vcmask 1031168
      %v810 = vsel %vm809, %v800, %v802
      %v811 = vsel %vm809, %v802, %v804
      %v812 = vsel %vm809, %v804, %v806
      %v813 = vsel %vm809, %v806, %v808
      %818 = vst [vmem:[#allocation4 + $0x1c0] sm:$0xff] %v810
      %819 = vst [vmem:[#allocation4 + $0x1c8] sm:$0xff] %v811
      %820 = vst [vmem:[#allocation4 + $0x1d0] sm:$0xff] %v812
      %821 = vst [vmem:[#allocation4 + $0x1d8] sm:$0xff] %v813
      %v822 = vld [vmem:[#allocation2 + $0x8] sm:$0xff]
      %v823 = vld [vmem:[#allocation2 + $0x10] sm:$0xff]
      %v824 = vld [vmem:[#allocation2 + $0x18] sm:$0xff]
      %v825 = vld [vmem:[#allocation2 + $0x20] sm:$0xff]
      %v826 = vld [vmem:[#allocation2 + $0x28] sm:$0xff]
      %832 = vrot.lane.b32.xlu0 %v822, 110
      %v833 = vpop.permute.xlu0 %832
      %834 = vrot.lane.b32.xlu0 %v823, 110
      %v835 = vpop.permute.xlu0 %834
      %836 = vrot.lane.b32.xlu0 %v824, 110
      %v837 = vpop.permute.xlu0 %836
      %838 = vrot.lane.b32.xlu0 %v825, 110
      %v839 = vpop.permute.xlu0 %838
      %840 = vrot.lane.b32.xlu0 %v826, 110
      %v841 = vpop.permute.xlu0 %840
      %vm842 = vcmask 900096
      %v843 = vsel %vm842, %v833, %v835
      %v844 = vsel %vm842, %v835, %v837
      %v845 = vsel %vm842, %v837, %v839
      %v846 = vsel %vm842, %v839, %v841
      %851 = vst [vmem:[#allocation4 + $0x1e0] sm:$0xff] %v843
      %852 = vst [vmem:[#allocation4 + $0x1e8] sm:$0xff] %v844
      %853 = vst [vmem:[#allocation4 + $0x1f0] sm:$0xff] %v845
      %854 = vst [vmem:[#allocation4 + $0x1f8] sm:$0xff] %v846
      %v855 = vld [vmem:[#allocation2 + $0x8] sm:$0xff]
      %v856 = vld [vmem:[#allocation2 + $0x10] sm:$0xff]
      %v857 = vld [vmem:[#allocation2 + $0x18] sm:$0xff]
      %v858 = vld [vmem:[#allocation2 + $0x20] sm:$0xff]
      %v859 = vld [vmem:[#allocation2 + $0x28] sm:$0xff]
      %865 = vrot.lane.b32.xlu0 %v855, 109
      %v866 = vpop.permute.xlu0 %865
      %867 = vrot.lane.b32.xlu0 %v856, 109
      %v868 = vpop.permute.xlu0 %867
      %869 = vrot.lane.b32.xlu0 %v857, 109
      %v870 = vpop.permute.xlu0 %869
      %871 = vrot.lane.b32.xlu0 %v858, 109
      %v872 = vpop.permute.xlu0 %871
      %873 = vrot.lane.b32.xlu0 %v859, 109
      %v874 = vpop.permute.xlu0 %873
      %vm875 = vcmask 891904
      %v876 = vsel %vm875, %v866, %v868
      %v877 = vsel %vm875, %v868, %v870
      %v878 = vsel %vm875, %v870, %v872
      %v879 = vsel %vm875, %v872, %v874
      %884 = vst [vmem:[#allocation4 + $0x200] sm:$0xff] %v876
      %885 = vst [vmem:[#allocation4 + $0x208] sm:$0xff] %v877
      %886 = vst [vmem:[#allocation4 + $0x210] sm:$0xff] %v878
      %887 = vst [vmem:[#allocation4 + $0x218] sm:$0xff] %v879
      %v888 = vld [vmem:[#allocation2 + $0x8] sm:$0xff]
      %v889 = vld [vmem:[#allocation2 + $0x10] sm:$0xff]
      %v890 = vld [vmem:[#allocation2 + $0x18] sm:$0xff]
      %v891 = vld [vmem:[#allocation2 + $0x20] sm:$0xff]
      %v892 = vld [vmem:[#allocation2 + $0x28] sm:$0xff]
      %898 = vrot.lane.b32.xlu0 %v888, 108
      %v899 = vpop.permute.xlu0 %898
      %900 = vrot.lane.b32.xlu0 %v889, 108
      %v901 = vpop.permute.xlu0 %900
      %902 = vrot.lane.b32.xlu0 %v890, 108
      %v903 = vpop.permute.xlu0 %902
      %904 = vrot.lane.b32.xlu0 %v891, 108
      %v905 = vpop.permute.xlu0 %904
      %906 = vrot.lane.b32.xlu0 %v892, 108
      %v907 = vpop.permute.xlu0 %906
      %vm908 = vcmask 883712
      %v909 = vsel %vm908, %v899, %v901
      %v910 = vsel %vm908, %v901, %v903
      %v911 = vsel %vm908, %v903, %v905
      %v912 = vsel %vm908, %v905, %v907
      %917 = vst [vmem:[#allocation4 + $0x220] sm:$0xff] %v909
      %918 = vst [vmem:[#allocation4 + $0x228] sm:$0xff] %v910
      %919 = vst [vmem:[#allocation4 + $0x230] sm:$0xff] %v911
      %920 = vst [vmem:[#allocation4 + $0x238] sm:$0xff] %v912
      %v921 = vld [vmem:[#allocation2 + $0x8] sm:$0xff]
      %v922 = vld [vmem:[#allocation2 + $0x10] sm:$0xff]
      %v923 = vld [vmem:[#allocation2 + $0x18] sm:$0xff]
      %v924 = vld [vmem:[#allocation2 + $0x20] sm:$0xff]
      %v925 = vld [vmem:[#allocation2 + $0x28] sm:$0xff]
      %931 = vrot.lane.b32.xlu0 %v921, 107
      %v932 = vpop.permute.xlu0 %931
      %933 = vrot.lane.b32.xlu0 %v922, 107
      %v934 = vpop.permute.xlu0 %933
      %935 = vrot.lane.b32.xlu0 %v923, 107
      %v936 = vpop.permute.xlu0 %935
      %937 = vrot.lane.b32.xlu0 %v924, 107
      %v938 = vpop.permute.xlu0 %937
      %939 = vrot.lane.b32.xlu0 %v925, 107
      %v940 = vpop.permute.xlu0 %939
      %vm941 = vcmask 875520
      %v942 = vsel %vm941, %v932, %v934
      %v943 = vsel %vm941, %v934, %v936
      %v944 = vsel %vm941, %v936, %v938
      %v945 = vsel %vm941, %v938, %v940
      %950 = vst [vmem:[#allocation4 + $0x240] sm:$0xff] %v942
      %951 = vst [vmem:[#allocation4 + $0x248] sm:$0xff] %v943
      %952 = vst [vmem:[#allocation4 + $0x250] sm:$0xff] %v944
      %953 = vst [vmem:[#allocation4 + $0x258] sm:$0xff] %v945
      %v954 = vld [vmem:[#allocation2 + $0x8] sm:$0xff]
      %v955 = vld [vmem:[#allocation2 + $0x10] sm:$0xff]
      %v956 = vld [vmem:[#allocation2 + $0x18] sm:$0xff]
      %v957 = vld [vmem:[#allocation2 + $0x20] sm:$0xff]
      %v958 = vld [vmem:[#allocation2 + $0x28] sm:$0xff]
      %964 = vrot.lane.b32.xlu0 %v954, 106
      %v965 = vpop.permute.xlu0 %964
      %966 = vrot.lane.b32.xlu0 %v955, 106
      %v967 = vpop.permute.xlu0 %966
      %968 = vrot.lane.b32.xlu0 %v956, 106
      %v969 = vpop.permute.xlu0 %968
      %970 = vrot.lane.b32.xlu0 %v957, 106
      %v971 = vpop.permute.xlu0 %970
      %972 = vrot.lane.b32.xlu0 %v958, 106
      %v973 = vpop.permute.xlu0 %972
      %vm974 = vcmask 867328
      %v975 = vsel %vm974, %v965, %v967
      %v976 = vsel %vm974, %v967, %v969
      %v977 = vsel %vm974, %v969, %v971
      %v978 = vsel %vm974, %v971, %v973
      %983 = vst [vmem:[#allocation4 + $0x260] sm:$0xff] %v975
      %984 = vst [vmem:[#allocation4 + $0x268] sm:$0xff] %v976
      %985 = vst [vmem:[#allocation4 + $0x270] sm:$0xff] %v977
      %986 = vst [vmem:[#allocation4 + $0x278] sm:$0xff] %v978
      %v987 = vld [vmem:[#allocation2 + $0x8] sm:$0xff]
      %v988 = vld [vmem:[#allocation2 + $0x10] sm:$0xff]
      %v989 = vld [vmem:[#allocation2 + $0x18] sm:$0xff]
      %v990 = vld [vmem:[#allocation2 + $0x20] sm:$0xff]
      %v991 = vld [vmem:[#allocation2 + $0x28] sm:$0xff]
      %997 = vrot.lane.b32.xlu0 %v987, 90
      %v998 = vpop.permute.xlu0 %997
      %999 = vrot.lane.b32.xlu0 %v988, 90
      %v1000 = vpop.permute.xlu0 %999
      %1001 = vrot.lane.b32.xlu0 %v989, 90
      %v1002 = vpop.permute.xlu0 %1001
      %1003 = vrot.lane.b32.xlu0 %v990, 90
      %v1004 = vpop.permute.xlu0 %1003
      %1005 = vrot.lane.b32.xlu0 %v991, 90
      %v1006 = vpop.permute.xlu0 %1005
      %vm1007 = vcmask 736256
      %v1008 = vsel %vm1007, %v998, %v1000
      %v1009 = vsel %vm1007, %v1000, %v1002
      %v1010 = vsel %vm1007, %v1002, %v1004
      %v1011 = vsel %vm1007, %v1004, %v1006
      %1016 = vst [vmem:[#allocation4 + $0x280] sm:$0xff] %v1008
      %1017 = vst [vmem:[#allocation4 + $0x288] sm:$0xff] %v1009
      %1018 = vst [vmem:[#allocation4 + $0x290] sm:$0xff] %v1010
      %1019 = vst [vmem:[#allocation4 + $0x298] sm:$0xff] %v1011
      %v1020 = vld [vmem:[#allocation2 + $0x8] sm:$0xff]
      %v1021 = vld [vmem:[#allocation2 + $0x10] sm:$0xff]
      %v1022 = vld [vmem:[#allocation2 + $0x18] sm:$0xff]
      %v1023 = vld [vmem:[#allocation2 + $0x20] sm:$0xff]
      %v1024 = vld [vmem:[#allocation2 + $0x28] sm:$0xff]
      %1030 = vrot.lane.b32.xlu0 %v1020, 89
      %v1031 = vpop.permute.xlu0 %1030
      %1032 = vrot.lane.b32.xlu0 %v1021, 89
      %v1033 = vpop.permute.xlu0 %1032
      %1034 = vrot.lane.b32.xlu0 %v1022, 89
      %v1035 = vpop.permute.xlu0 %1034
      %1036 = vrot.lane.b32.xlu0 %v1023, 89
      %v1037 = vpop.permute.xlu0 %1036
      %1038 = vrot.lane.b32.xlu0 %v1024, 89
      %v1039 = vpop.permute.xlu0 %1038
      %vm1040 = vcmask 728064
      %v1041 = vsel %vm1040, %v1031, %v1033
      %v1042 = vsel %vm1040, %v1033, %v1035
      %v1043 = vsel %vm1040, %v1035, %v1037
      %v1044 = vsel %vm1040, %v1037, %v1039
      %1049 = vst [vmem:[#allocation4 + $0x2a0] sm:$0xff] %v1041
      %1050 = vst [vmem:[#allocation4 + $0x2a8] sm:$0xff] %v1042
      %1051 = vst [vmem:[#allocation4 + $0x2b0] sm:$0xff] %v1043
      %1052 = vst [vmem:[#allocation4 + $0x2b8] sm:$0xff] %v1044
      %v1053 = vld [vmem:[#allocation2 + $0x8] sm:$0xff]
      %v1054 = vld [vmem:[#allocation2 + $0x10] sm:$0xff]
      %v1055 = vld [vmem:[#allocation2 + $0x18] sm:$0xff]
      %v1056 = vld [vmem:[#allocation2 + $0x20] sm:$0xff]
      %v1057 = vld [vmem:[#allocation2 + $0x28] sm:$0xff]
      %1063 = vrot.lane.b32.xlu0 %v1053, 88
      %v1064 = vpop.permute.xlu0 %1063
      %1065 = vrot.lane.b32.xlu0 %v1054, 88
      %v1066 = vpop.permute.xlu0 %1065
      %1067 = vrot.lane.b32.xlu0 %v1055, 88
      %v1068 = vpop.permute.xlu0 %1067
      %1069 = vrot.lane.b32.xlu0 %v1056, 88
      %v1070 = vpop.permute.xlu0 %1069
      %1071 = vrot.lane.b32.xlu0 %v1057, 88
      %v1072 = vpop.permute.xlu0 %1071
      %vm1073 = vcmask 719872
      %v1074 = vsel %vm1073, %v1064, %v1066
      %v1075 = vsel %vm1073, %v1066, %v1068
      %v1076 = vsel %vm1073, %v1068, %v1070
      %v1077 = vsel %vm1073, %v1070, %v1072
      %1082 = vst [vmem:[#allocation4 + $0x2c0] sm:$0xff] %v1074
      %1083 = vst [vmem:[#allocation4 + $0x2c8] sm:$0xff] %v1075
      %1084 = vst [vmem:[#allocation4 + $0x2d0] sm:$0xff] %v1076
      %1085 = vst [vmem:[#allocation4 + $0x2d8] sm:$0xff] %v1077
      %v1086 = vld [vmem:[#allocation2 + $0x8] sm:$0xff]
      %v1087 = vld [vmem:[#allocation2 + $0x10] sm:$0xff]
      %v1088 = vld [vmem:[#allocation2 + $0x18] sm:$0xff]
      %v1089 = vld [vmem:[#allocation2 + $0x20] sm:$0xff]
      %v1090 = vld [vmem:[#allocation2 + $0x28] sm:$0xff]
      %1096 = vrot.lane.b32.xlu0 %v1086, 87
      %v1097 = vpop.permute.xlu0 %1096
      %1098 = vrot.lane.b32.xlu0 %v1087, 87
      %v1099 = vpop.permute.xlu0 %1098
      %1100 = vrot.lane.b32.xlu0 %v1088, 87
      %v1101 = vpop.permute.xlu0 %1100
      %1102 = vrot.lane.b32.xlu0 %v1089, 87
      %v1103 = vpop.permute.xlu0 %1102
      %1104 = vrot.lane.b32.xlu0 %v1090, 87
      %v1105 = vpop.permute.xlu0 %1104
      %vm1106 = vcmask 711680
      %v1107 = vsel %vm1106, %v1097, %v1099
      %v1108 = vsel %vm1106, %v1099, %v1101
      %v1109 = vsel %vm1106, %v1101, %v1103
      %v1110 = vsel %vm1106, %v1103, %v1105
      %1115 = vst [vmem:[#allocation4 + $0x2e0] sm:$0xff] %v1107
      %1116 = vst [vmem:[#allocation4 + $0x2e8] sm:$0xff] %v1108
      %1117 = vst [vmem:[#allocation4 + $0x2f0] sm:$0xff] %v1109
      %1118 = vst [vmem:[#allocation4 + $0x2f8] sm:$0xff] %v1110
      %v1119 = vld [vmem:[#allocation2 + $0x8] sm:$0xff]
      %v1120 = vld [vmem:[#allocation2 + $0x10] sm:$0xff]
      %v1121 = vld [vmem:[#allocation2 + $0x18] sm:$0xff]
      %v1122 = vld [vmem:[#allocation2 + $0x20] sm:$0xff]
      %v1123 = vld [vmem:[#allocation2 + $0x28] sm:$0xff]
      %1129 = vrot.lane.b32.xlu0 %v1119, 86
      %v1130 = vpop.permute.xlu0 %1129
      %1131 = vrot.lane.b32.xlu0 %v1120, 86
      %v1132 = vpop.permute.xlu0 %1131
      %1133 = vrot.lane.b32.xlu0 %v1121, 86
      %v1134 = vpop.permute.xlu0 %1133
      %1135 = vrot.lane.b32.xlu0 %v1122, 86
      %v1136 = vpop.permute.xlu0 %1135
      %1137 = vrot.lane.b32.xlu0 %v1123, 86
      %v1138 = vpop.permute.xlu0 %1137
      %vm1139 = vcmask 703488
      %v1140 = vsel %vm1139, %v1130, %v1132
      %v1141 = vsel %vm1139, %v1132, %v1134
      %v1142 = vsel %vm1139, %v1134, %v1136
      %v1143 = vsel %vm1139, %v1136, %v1138
      %1148 = vst [vmem:[#allocation4 + $0x300] sm:$0xff] %v1140
      %1149 = vst [vmem:[#allocation4 + $0x308] sm:$0xff] %v1141
      %1150 = vst [vmem:[#allocation4 + $0x310] sm:$0xff] %v1142
      %1151 = vst [vmem:[#allocation4 + $0x318] sm:$0xff] %v1143
      %v1152 = vld [vmem:[%s3] sm:$0xff]
      %v1153 = vld [vmem:[%s3 + $0x8] sm:$0xff]
      %v1154 = vld [vmem:[%s3 + $0x10] sm:$0xff]
      %v1155 = vld [vmem:[%s3 + $0x18] sm:$0xff]
      %v1156 = vld [vmem:[#allocation4] sm:$0xff]
      %v1157 = vld [vmem:[#allocation4 + $0x8] sm:$0xff]
      %v1158 = vld [vmem:[#allocation4 + $0x10] sm:$0xff]
      %v1159 = vld [vmem:[#allocation4 + $0x18] sm:$0xff]
      %v1160 = vld [vmem:[#allocation4 + $0x20] sm:$0xff]
      %v1161 = vld [vmem:[#allocation4 + $0x28] sm:$0xff]
      %v1162 = vld [vmem:[#allocation4 + $0x30] sm:$0xff]
      %v1163 = vld [vmem:[#allocation4 + $0x38] sm:$0xff]
      %v1164 = vld [vmem:[#allocation4 + $0x40] sm:$0xff]
      %v1165 = vld [vmem:[#allocation4 + $0x48] sm:$0xff]
      %v1166 = vld [vmem:[#allocation4 + $0x50] sm:$0xff]
      %v1167 = vld [vmem:[#allocation4 + $0x58] sm:$0xff]
      %v1168 = vld [vmem:[#allocation4 + $0x60] sm:$0xff]
      %v1169 = vld [vmem:[#allocation4 + $0x68] sm:$0xff]
      %v1170 = vld [vmem:[#allocation4 + $0x70] sm:$0xff]
      %v1171 = vld [vmem:[#allocation4 + $0x78] sm:$0xff]
      %v1172 = vld [vmem:[#allocation4 + $0x80] sm:$0xff]
      %v1173 = vld [vmem:[#allocation4 + $0x88] sm:$0xff]
      %v1174 = vld [vmem:[#allocation4 + $0x90] sm:$0xff]
      %v1175 = vld [vmem:[#allocation4 + $0x98] sm:$0xff]
      %v1176 = vld [vmem:[#allocation4 + $0xa0] sm:$0xff]
      %v1177 = vld [vmem:[#allocation4 + $0xa8] sm:$0xff]
      %v1178 = vld [vmem:[#allocation4 + $0xb0] sm:$0xff]
      %v1179 = vld [vmem:[#allocation4 + $0xb8] sm:$0xff]
      %v1180 = vld [vmem:[#allocation4 + $0xc0] sm:$0xff]
      %v1181 = vld [vmem:[#allocation4 + $0xc8] sm:$0xff]
      %v1182 = vld [vmem:[#allocation4 + $0xd0] sm:$0xff]
      %v1183 = vld [vmem:[#allocation4 + $0xd8] sm:$0xff]
      %v1184 = vld [vmem:[#allocation4 + $0xe0] sm:$0xff]
      %v1185 = vld [vmem:[#allocation4 + $0xe8] sm:$0xff]
      %v1186 = vld [vmem:[#allocation4 + $0xf0] sm:$0xff]
      %v1187 = vld [vmem:[#allocation4 + $0xf8] sm:$0xff]
      %v1188 = vld [vmem:[#allocation4 + $0x100] sm:$0xff]
      %v1189 = vld [vmem:[#allocation4 + $0x108] sm:$0xff]
      %v1190 = vld [vmem:[#allocation4 + $0x110] sm:$0xff]
      %v1191 = vld [vmem:[#allocation4 + $0x118] sm:$0xff]
      %v1192 = vld [vmem:[#allocation4 + $0x120] sm:$0xff]
      %v1193 = vld [vmem:[#allocation4 + $0x128] sm:$0xff]
      %v1194 = vld [vmem:[#allocation4 + $0x130] sm:$0xff]
      %v1195 = vld [vmem:[#allocation4 + $0x138] sm:$0xff]
      %v1196 = vld [vmem:[#allocation4 + $0x140] sm:$0xff]
      %v1197 = vld [vmem:[#allocation4 + $0x148] sm:$0xff]
      %v1198 = vld [vmem:[#allocation4 + $0x150] sm:$0xff]
      %v1199 = vld [vmem:[#allocation4 + $0x158] sm:$0xff]
      %v1200 = vld [vmem:[#allocation4 + $0x160] sm:$0xff]
      %v1201 = vld [vmem:[#allocation4 + $0x168] sm:$0xff]
      %v1202 = vld [vmem:[#allocation4 + $0x170] sm:$0xff]
      %v1203 = vld [vmem:[#allocation4 + $0x178] sm:$0xff]
      %v1204 = vld [vmem:[#allocation4 + $0x180] sm:$0xff]
      %v1205 = vld [vmem:[#allocation4 + $0x188] sm:$0xff]
      %v1206 = vld [vmem:[#allocation4 + $0x190] sm:$0xff]
      %v1207 = vld [vmem:[#allocation4 + $0x198] sm:$0xff]
      %v1208 = vld [vmem:[#allocation4 + $0x1a0] sm:$0xff]
      %v1209 = vld [vmem:[#allocation4 + $0x1a8] sm:$0xff]
      %v1210 = vld [vmem:[#allocation4 + $0x1b0] sm:$0xff]
      %v1211 = vld [vmem:[#allocation4 + $0x1b8] sm:$0xff]
      %v1212 = vld [vmem:[#allocation4 + $0x1c0] sm:$0xff]
      %v1213 = vld [vmem:[#allocation4 + $0x1c8] sm:$0xff]
      %v1214 = vld [vmem:[#allocation4 + $0x1d0] sm:$0xff]
      %v1215 = vld [vmem:[#allocation4 + $0x1d8] sm:$0xff]
      %v1216 = vld [vmem:[#allocation4 + $0x1e0] sm:$0xff]
      %v1217 = vld [vmem:[#allocation4 + $0x1e8] sm:$0xff]
      %v1218 = vld [vmem:[#allocation4 + $0x1f0] sm:$0xff]
      %v1219 = vld [vmem:[#allocation4 + $0x1f8] sm:$0xff]
      %v1220 = vld [vmem:[#allocation4 + $0x200] sm:$0xff]
      %v1221 = vld [vmem:[#allocation4 + $0x208] sm:$0xff]
      %v1222 = vld [vmem:[#allocation4 + $0x210] sm:$0xff]
      %v1223 = vld [vmem:[#allocation4 + $0x218] sm:$0xff]
      %v1224 = vld [vmem:[#allocation4 + $0x220] sm:$0xff]
      %v1225 = vld [vmem:[#allocation4 + $0x228] sm:$0xff]
      %v1226 = vld [vmem:[#allocation4 + $0x230] sm:$0xff]
      %v1227 = vld [vmem:[#allocation4 + $0x238] sm:$0xff]
      %v1228 = vld [vmem:[#allocation4 + $0x240] sm:$0xff]
      %v1229 = vld [vmem:[#allocation4 + $0x248] sm:$0xff]
      %v1230 = vld [vmem:[#allocation4 + $0x250] sm:$0xff]
      %v1231 = vld [vmem:[#allocation4 + $0x258] sm:$0xff]
      %v1232 = vld [vmem:[#allocation4 + $0x260] sm:$0xff]
      %v1233 = vld [vmem:[#allocation4 + $0x268] sm:$0xff]
      %v1234 = vld [vmem:[#allocation4 + $0x270] sm:$0xff]
      %v1235 = vld [vmem:[#allocation4 + $0x278] sm:$0xff]
      %v1236 = vld [vmem:[#allocation4 + $0x280] sm:$0xff]
      %v1237 = vld [vmem:[#allocation4 + $0x288] sm:$0xff]
      %v1238 = vld [vmem:[#allocation4 + $0x290] sm:$0xff]
      %v1239 = vld [vmem:[#allocation4 + $0x298] sm:$0xff]
      %v1240 = vld [vmem:[#allocation4 + $0x2a0] sm:$0xff]
      %v1241 = vld [vmem:[#allocation4 + $0x2a8] sm:$0xff]
      %v1242 = vld [vmem:[#allocation4 + $0x2b0] sm:$0xff]
      %v1243 = vld [vmem:[#allocation4 + $0x2b8] sm:$0xff]
      %v1244 = vld [vmem:[#allocation4 + $0x2c0] sm:$0xff]
      %v1245 = vld [vmem:[#allocation4 + $0x2c8] sm:$0xff]
      %v1246 = vld [vmem:[#allocation4 + $0x2d0] sm:$0xff]
      %v1247 = vld [vmem:[#allocation4 + $0x2d8] sm:$0xff]
      %v1248 = vld [vmem:[#allocation4 + $0x2e0] sm:$0xff]
      %v1249 = vld [vmem:[#allocation4 + $0x2e8] sm:$0xff]
      %v1250 = vld [vmem:[#allocation4 + $0x2f0] sm:$0xff]
      %v1251 = vld [vmem:[#allocation4 + $0x2f8] sm:$0xff]
      %v1252 = vld [vmem:[#allocation4 + $0x300] sm:$0xff]
      %v1253 = vld [vmem:[#allocation4 + $0x308] sm:$0xff]
      %v1254 = vld [vmem:[#allocation4 + $0x310] sm:$0xff]
      %v1255 = vld [vmem:[#allocation4 + $0x318] sm:$0xff]
      %v1256 = vld [vmem:[%s4] sm:$0xff]
      %v1257 = vld [vmem:[%s4 + $0x8] sm:$0xff]
      %1259 = vset.pattern.permute.xlu0 0
      %1260 = vperm.xlu0 %1259, %v1256
      %v1261 = vpop.permute.xlu0 %1260
      %1264 = vset.pattern.permute.xlu0 0
      %1265 = vperm.xlu0 %1264, %v1257
      %v1266 = vpop.permute.xlu0 %1265
      %vm1268 = vcmask 588800
      %v1270 = vsel %vm1268, %v1153, 0
      %v1273 = vsel %vm1268, %v1155, 0
      %1275 = vmatprep.subr.mxu0 %v1217
      %1276 = vmatpush1.msra.mxu0 %v1216
      %1277 = vmatprep.subr.mxu0 %v1213
      %1278 = vmatpush1.msra.mxu0 %v1212
      %1279 = vmatprep.subr.mxu0 %v1209
      %1280 = vmatpush1.msra.mxu0 %v1208
      %1281 = vmatprep.subr.mxu0 %v1205
      %1282 = vmatpush1.msra.mxu0 %v1204
      %1283 = vmatprep.subr.mxu0 %v1201
      %1284 = vmatpush1.msra.mxu0 %v1200
      %1285 = vmatprep.subr.mxu0 %v1197
      %1286 = vmatpush1.msra.mxu0 %v1196
      %1287 = vmatprep.subr.mxu0 %v1193
      %1288 = vmatpush1.msra.mxu0 %v1192
      %1289 = vmatprep.subr.mxu0 %v1189
      %1290 = vmatpush1.msra.mxu0 %v1188
      %1291 = vmatprep.subr.mxu0 %v1185
      %1292 = vmatpush1.msra.mxu0 %v1184
      %1293 = vmatprep.subr.mxu0 %v1181
      %1294 = vmatpush1.msra.mxu0 %v1180
      %1295 = vmatprep.subr.mxu0 %v1177
      %1296 = vmatpush1.msra.mxu0 %v1176
      %1297 = vmatprep.subr.mxu0 %v1173
      %1298 = vmatpush1.msra.mxu0 %v1172
      %1299 = vmatprep.subr.mxu0 %v1169
      %1300 = vmatpush1.msra.mxu0 %v1168
      %1301 = vmatprep.subr.mxu0 %v1165
      %1302 = vmatpush1.msra.mxu0 %v1164
      %1303 = vmatprep.subr.mxu0 %v1161
      %1304 = vmatpush1.msra.mxu0 %v1160
      %1305 = vmatprep.subr.mxu0 %v1157
      %1306 = vmatpush1.msra.mxu0 %v1156
      %1307 = vmatprep.subr.mxu0 0.0
      %1308 = vmatpush2.msra.mxu0 0.0
      %1309 = vmatprep.subr.mxu0 0.0
      %1310 = vmatpush2.msra.mxu0 0.0
      %1311 = vmatprep.subr.mxu0 0.0
      %1312 = vmatpush2.msra.mxu0 0.0
      %1313 = vmatprep.subr.mxu0 0.0
      %1314 = vmatpush2.msra.mxu0 0.0
      %1315 = vmatprep.subr.mxu0 0.0
      %1316 = vmatpush2.msra.mxu0 0.0
      %1317 = vmatprep.subr.mxu0 0.0
      %1318 = vmatpush2.msra.mxu0 0.0
      %1319 = vmatprep.subr.mxu0 0.0
      %1320 = vmatpush2.msra.mxu0 0.0
      %1321 = vmatprep.subr.mxu0 %v1253
      %1322 = vmatpush2.msra.mxu0 %v1252
      %1323 = vmatprep.subr.mxu0 %v1249
      %1324 = vmatpush2.msra.mxu0 %v1248
      %1325 = vmatprep.subr.mxu0 %v1245
      %1326 = vmatpush2.msra.mxu0 %v1244
      %1327 = vmatprep.subr.mxu0 %v1241
      %1328 = vmatpush2.msra.mxu0 %v1240
      %1329 = vmatprep.subr.mxu0 %v1237
      %1330 = vmatpush2.msra.mxu0 %v1236
      %1331 = vmatprep.subr.mxu0 %v1233
      %1332 = vmatpush2.msra.mxu0 %v1232
      %1333 = vmatprep.subr.mxu0 %v1229
      %1334 = vmatpush2.msra.mxu0 %v1228
      %1335 = vmatprep.subr.mxu0 %v1225
      %1336 = vmatpush2.msra.mxu0 %v1224
      %1337 = vmatprep.subr.mxu0 %v1221
      %1338 = vmatpush2.msra.mxu0 %v1220
      %1339 = vmatprep.mubr.f32.mxu0 %v1270
      %1340 = vmatmul.mubr.f32.gmra.mxu0 %v1152
      %v1341 = vpop.f32.mrf.mxu0
      %v1342 = vadd.f32 %v1261, %v1341
      %v1343 = vpop.f32.mrf.mxu0
      %v1344 = vadd.f32 %v1261, %v1343
      %1345 = vmatprep.mubr.f32.mxu0 %v1273
      %1346 = vmatmul.mubr.f32.gmra.mxu0 %v1154
      %v1347 = vpop.f32.mrf.mxu0
      %v1348 = vadd.f32 %v1266, %v1347
      %v1349 = vpop.f32.mrf.mxu0
      %v1350 = vadd.f32 %v1266, %v1349
      %1351 = vdwg.mxu0
      %1352 = vmatprep.subr.mxu0 %v1219
      %1353 = vmatpush1.msra.mxu0 %v1218
      %1354 = vmatprep.subr.mxu0 %v1215
      %1355 = vmatpush1.msra.mxu0 %v1214
      %1356 = vmatprep.subr.mxu0 %v1211
      %1357 = vmatpush1.msra.mxu0 %v1210
      %1358 = vmatprep.subr.mxu0 %v1207
      %1359 = vmatpush1.msra.mxu0 %v1206
      %1360 = vmatprep.subr.mxu0 %v1203
      %1361 = vmatpush1.msra.mxu0 %v1202
      %1362 = vmatprep.subr.mxu0 %v1199
      %1363 = vmatpush1.msra.mxu0 %v1198
      %1364 = vmatprep.subr.mxu0 %v1195
      %1365 = vmatpush1.msra.mxu0 %v1194
      %1366 = vmatprep.subr.mxu0 %v1191
      %1367 = vmatpush1.msra.mxu0 %v1190
      %1368 = vmatprep.subr.mxu0 %v1187
      %1369 = vmatpush1.msra.mxu0 %v1186
      %1370 = vmatprep.subr.mxu0 %v1183
      %1371 = vmatpush1.msra.mxu0 %v1182
      %1372 = vmatprep.subr.mxu0 %v1179
      %1373 = vmatpush1.msra.mxu0 %v1178
      %1374 = vmatprep.subr.mxu0 %v1175
      %1375 = vmatpush1.msra.mxu0 %v1174
      %1376 = vmatprep.subr.mxu0 %v1171
      %1377 = vmatpush1.msra.mxu0 %v1170
      %1378 = vmatprep.subr.mxu0 %v1167
      %1379 = vmatpush1.msra.mxu0 %v1166
      %1380 = vmatprep.subr.mxu0 %v1163
      %1381 = vmatpush1.msra.mxu0 %v1162
      %1382 = vmatprep.subr.mxu0 %v1159
      %1383 = vmatpush1.msra.mxu0 %v1158
      %1384 = vmatprep.subr.mxu0 0.0
      %1385 = vmatpush2.msra.mxu0 0.0
      %1386 = vmatprep.subr.mxu0 0.0
      %1387 = vmatpush2.msra.mxu0 0.0
      %1388 = vmatprep.subr.mxu0 0.0
      %1389 = vmatpush2.msra.mxu0 0.0
      %1390 = vmatprep.subr.mxu0 0.0
      %1391 = vmatpush2.msra.mxu0 0.0
      %1392 = vmatprep.subr.mxu0 0.0
      %1393 = vmatpush2.msra.mxu0 0.0
      %1394 = vmatprep.subr.mxu0 0.0
      %1395 = vmatpush2.msra.mxu0 0.0
      %1396 = vmatprep.subr.mxu0 0.0
      %1397 = vmatpush2.msra.mxu0 0.0
      %1398 = vmatprep.subr.mxu0 %v1255
      %1399 = vmatpush2.msra.mxu0 %v1254
      %1400 = vmatprep.subr.mxu0 %v1251
      %1401 = vmatpush2.msra.mxu0 %v1250
      %1402 = vmatprep.subr.mxu0 %v1247
      %1403 = vmatpush2.msra.mxu0 %v1246
      %1404 = vmatprep.subr.mxu0 %v1243
      %1405 = vmatpush2.msra.mxu0 %v1242
      %1406 = vmatprep.subr.mxu0 %v1239
      %1407 = vmatpush2.msra.mxu0 %v1238
      %1408 = vmatprep.subr.mxu0 %v1235
      %1409 = vmatpush2.msra.mxu0 %v1234
      %1410 = vmatprep.subr.mxu0 %v1231
      %1411 = vmatpush2.msra.mxu0 %v1230
      %1412 = vmatprep.subr.mxu0 %v1227
      %1413 = vmatpush2.msra.mxu0 %v1226
      %1414 = vmatprep.subr.mxu0 %v1223
      %1415 = vmatpush2.msra.mxu0 %v1222
      %1416 = vmatprep.mubr.f32.mxu0 %v1270
      %1417 = vmatmul.mubr.f32.gmra.mxu0 %v1152
      %v1418 = vpop.f32.mrf.mxu0
      %v1419 = vadd.f32 %v1261, %v1418
      %v1420 = vpop.f32.mrf.mxu0
      %v1421 = vadd.f32 %v1261, %v1420
      %1422 = vmatprep.mubr.f32.mxu0 %v1273
      %1423 = vmatmul.mubr.f32.gmra.mxu0 %v1154
      %v1424 = vpop.f32.mrf.mxu0
      %v1425 = vadd.f32 %v1266, %v1424
      %v1426 = vpop.f32.mrf.mxu0
      %v1427 = vadd.f32 %v1266, %v1426
      %1428 = vdwg.mxu0
      %vm1429 = vcmp.ge.f32.partialorder %v1342, 0.0
      %vm1430 = vcmp.ge.f32.partialorder %v1344, 0.0
      %vm1431 = vcmp.ge.f32.partialorder %v1419, 0.0
      %vm1432 = vcmp.ge.f32.partialorder %v1421, 0.0
      %vm1433 = vcmp.ge.f32.partialorder %v1348, 0.0
      %vm1434 = vcmp.ge.f32.partialorder %v1350, 0.0
      %vm1435 = vcmp.ge.f32.partialorder %v1425, 0.0
      %vm1436 = vcmp.ge.f32.partialorder %v1427, 0.0
      %v1437 = vstv %s334
      %v1438 = vmul.f32 %v1437, %v1342
      %v1439 = vmul.f32 %v1437, %v1344
      %v1440 = vmul.f32 %v1437, %v1419
      %v1441 = vmul.f32 %v1437, %v1421
      %v1442 = vmul.f32 %v1437, %v1348
      %v1443 = vmul.f32 %v1437, %v1350
      %v1444 = vmul.f32 %v1437, %v1425
      %v1445 = vmul.f32 %v1437, %v1427
      %v1446 = vsel %vm1429, %v1342, %v1438
      %v1447 = vsel %vm1430, %v1344, %v1439
      %v1448 = vsel %vm1431, %v1419, %v1440
      %v1449 = vsel %vm1432, %v1421, %v1441
      %v1450 = vsel %vm1433, %v1348, %v1442
      %v1451 = vsel %vm1434, %v1350, %v1443
      %v1452 = vsel %vm1435, %v1425, %v1444
      %v1453 = vsel %vm1436, %v1427, %v1445
      %v1455 = vlaneseq
      %v1456 = vshrl.u32 %v1455, 7
      %v1457 = vsub.s32 0, %v1456
      %v1458 = vrot.slane %v335, %v1457
      %v1459 = vlaneseq
      %v1460 = vshrl.u32 %v1459, 7
      %v1461 = vsub.s32 1, %v1460
      %v1462 = vrot.slane %v335, %v1461
      %v1463 = vlaneseq
      %v1464 = vshrl.u32 %v1463, 7
      %v1465 = vsub.s32 2, %v1464
      %v1466 = vrot.slane %v335, %v1465
      %v1467 = vlaneseq
      %v1468 = vshrl.u32 %v1467, 7
      %v1469 = vsub.s32 3, %v1468
      %v1470 = vrot.slane %v335, %v1469
      %v1475 = vmul.f32 %v1446, %v1458
      %v1476 = vmul.f32 %v1447, %v1462
      %v1477 = vmul.f32 %v1448, %v1466
      %v1478 = vmul.f32 %v1449, %v1470
      %v1479 = vmul.f32 %v1450, %v1458
      %v1480 = vmul.f32 %v1451, %v1462
      %v1481 = vmul.f32 %v1452, %v1466
      %v1482 = vmul.f32 %v1453, %v1470
      %1483 = vst [vmem:[#allocation3 + $0x8] sm:$0xff] %v1475
      %1484 = vst [vmem:[#allocation3 + $0x10] sm:$0xff] %v1476
      %1485 = vst [vmem:[#allocation3 + $0x18] sm:$0xff] %v1477
      %1486 = vst [vmem:[#allocation3 + $0x20] sm:$0xff] %v1478
      %1487 = vst [vmem:[#allocation3 + $0x38] sm:$0xff] %v1479
      %1488 = vst [vmem:[#allocation3 + $0x40] sm:$0xff] %v1480
      %1489 = vst [vmem:[#allocation3 + $0x48] sm:$0xff] %v1481
      %1490 = vst [vmem:[#allocation3 + $0x50] sm:$0xff] %v1482
      %v1491 = vld [vmem:[#allocation3] sm:$0xff]
      %v1492 = vld [vmem:[#allocation3 + $0x8] sm:$0xff]
      %v1493 = vld [vmem:[#allocation3 + $0x10] sm:$0xff]
      %v1494 = vld [vmem:[#allocation3 + $0x18] sm:$0xff]
      %v1495 = vld [vmem:[#allocation3 + $0x20] sm:$0xff]
      %v1496 = vld [vmem:[#allocation3 + $0x30] sm:$0xff]
      %v1497 = vld [vmem:[#allocation3 + $0x38] sm:$0xff]
      %v1498 = vld [vmem:[#allocation3 + $0x40] sm:$0xff]
      %v1499 = vld [vmem:[#allocation3 + $0x48] sm:$0xff]
      %v1500 = vld [vmem:[#allocation3 + $0x50] sm:$0xff]
      %1511 = vrot.lane.b32.xlu0 %v1491, 42
      %v1512 = vpop.permute.xlu0 %1511
      %1513 = vrot.lane.b32.xlu0 %v1492, 42
      %v1514 = vpop.permute.xlu0 %1513
      %1515 = vrot.lane.b32.xlu0 %v1493, 42
      %v1516 = vpop.permute.xlu0 %1515
      %1517 = vrot.lane.b32.xlu0 %v1494, 42
      %v1518 = vpop.permute.xlu0 %1517
      %1519 = vrot.lane.b32.xlu0 %v1495, 42
      %v1520 = vpop.permute.xlu0 %1519
      %1521 = vrot.lane.b32.xlu0 %v1496, 42
      %v1522 = vpop.permute.xlu0 %1521
      %1523 = vrot.lane.b32.xlu0 %v1497, 42
      %v1524 = vpop.permute.xlu0 %1523
      %1525 = vrot.lane.b32.xlu0 %v1498, 42
      %v1526 = vpop.permute.xlu0 %1525
      %1527 = vrot.lane.b32.xlu0 %v1499, 42
      %v1528 = vpop.permute.xlu0 %1527
      %1529 = vrot.lane.b32.xlu0 %v1500, 42
      %v1530 = vpop.permute.xlu0 %1529
      %v1531 = vsel %vm372, %v1512, %v1514
      %v1532 = vsel %vm372, %v1514, %v1516
      %v1533 = vsel %vm372, %v1516, %v1518
      %v1534 = vsel %vm372, %v1518, %v1520
      %v1535 = vsel %vm372, %v1522, %v1524
      %v1536 = vsel %vm372, %v1524, %v1526
      %v1537 = vsel %vm372, %v1526, %v1528
      %v1538 = vsel %vm372, %v1528, %v1530
      %1547 = vst [vmem:[#allocation4] sm:$0xff] %v1531
      %1548 = vst [vmem:[#allocation4 + $0x8] sm:$0xff] %v1532
      %1549 = vst [vmem:[#allocation4 + $0x10] sm:$0xff] %v1533
      %1550 = vst [vmem:[#allocation4 + $0x18] sm:$0xff] %v1534
      %1551 = vst [vmem:[#allocation4 + $0x20] sm:$0xff] %v1535
      %1552 = vst [vmem:[#allocation4 + $0x28] sm:$0xff] %v1536
      %1553 = vst [vmem:[#allocation4 + $0x30] sm:$0xff] %v1537
      %1554 = vst [vmem:[#allocation4 + $0x38] sm:$0xff] %v1538
      %v1555 = vld [vmem:[#allocation3] sm:$0xff]
      %v1556 = vld [vmem:[#allocation3 + $0x8] sm:$0xff]
      %v1557 = vld [vmem:[#allocation3 + $0x10] sm:$0xff]
      %v1558 = vld [vmem:[#allocation3 + $0x18] sm:$0xff]
      %v1559 = vld [vmem:[#allocation3 + $0x20] sm:$0xff]
      %v1560 = vld [vmem:[#allocation3 + $0x30] sm:$0xff]
      %v1561 = vld [vmem:[#allocation3 + $0x38] sm:$0xff]
      %v1562 = vld [vmem:[#allocation3 + $0x40] sm:$0xff]
      %v1563 = vld [vmem:[#allocation3 + $0x48] sm:$0xff]
      %v1564 = vld [vmem:[#allocation3 + $0x50] sm:$0xff]
      %1575 = vrot.lane.b32.xlu0 %v1555, 41
      %v1576 = vpop.permute.xlu0 %1575
      %1577 = vrot.lane.b32.xlu0 %v1556, 41
      %v1578 = vpop.permute.xlu0 %1577
      %1579 = vrot.lane.b32.xlu0 %v1557, 41
      %v1580 = vpop.permute.xlu0 %1579
      %1581 = vrot.lane.b32.xlu0 %v1558, 41
      %v1582 = vpop.permute.xlu0 %1581
      %1583 = vrot.lane.b32.xlu0 %v1559, 41
      %v1584 = vpop.permute.xlu0 %1583
      %1585 = vrot.lane.b32.xlu0 %v1560, 41
      %v1586 = vpop.permute.xlu0 %1585
      %1587 = vrot.lane.b32.xlu0 %v1561, 41
      %v1588 = vpop.permute.xlu0 %1587
      %1589 = vrot.lane.b32.xlu0 %v1562, 41
      %v1590 = vpop.permute.xlu0 %1589
      %1591 = vrot.lane.b32.xlu0 %v1563, 41
      %v1592 = vpop.permute.xlu0 %1591
      %1593 = vrot.lane.b32.xlu0 %v1564, 41
      %v1594 = vpop.permute.xlu0 %1593
      %v1595 = vsel %vm405, %v1576, %v1578
      %v1596 = vsel %vm405, %v1578, %v1580
      %v1597 = vsel %vm405, %v1580, %v1582
      %v1598 = vsel %vm405, %v1582, %v1584
      %v1599 = vsel %vm405, %v1586, %v1588
      %v1600 = vsel %vm405, %v1588, %v1590
      %v1601 = vsel %vm405, %v1590, %v1592
      %v1602 = vsel %vm405, %v1592, %v1594
      %1611 = vst [vmem:[#allocation4 + $0x40] sm:$0xff] %v1595
      %1612 = vst [vmem:[#allocation4 + $0x48] sm:$0xff] %v1596
      %1613 = vst [vmem:[#allocation4 + $0x50] sm:$0xff] %v1597
      %1614 = vst [vmem:[#allocation4 + $0x58] sm:$0xff] %v1598
      %1615 = vst [vmem:[#allocation4 + $0x60] sm:$0xff] %v1599
      %1616 = vst [vmem:[#allocation4 + $0x68] sm:$0xff] %v1600
      %1617 = vst [vmem:[#allocation4 + $0x70] sm:$0xff] %v1601
      %1618 = vst [vmem:[#allocation4 + $0x78] sm:$0xff] %v1602
      %v1619 = vld [vmem:[#allocation3] sm:$0xff]
      %v1620 = vld [vmem:[#allocation3 + $0x8] sm:$0xff]
      %v1621 = vld [vmem:[#allocation3 + $0x10] sm:$0xff]
      %v1622 = vld [vmem:[#allocation3 + $0x18] sm:$0xff]
      %v1623 = vld [vmem:[#allocation3 + $0x20] sm:$0xff]
      %v1624 = vld [vmem:[#allocation3 + $0x30] sm:$0xff]
      %v1625 = vld [vmem:[#allocation3 + $0x38] sm:$0xff]
      %v1626 = vld [vmem:[#allocation3 + $0x40] sm:$0xff]
      %v1627 = vld [vmem:[#allocation3 + $0x48] sm:$0xff]
      %v1628 = vld [vmem:[#allocation3 + $0x50] sm:$0xff]
      %1639 = vrot.lane.b32.xlu0 %v1619, 40
      %v1640 = vpop.permute.xlu0 %1639
      %1641 = vrot.lane.b32.xlu0 %v1620, 40
      %v1642 = vpop.permute.xlu0 %1641
      %1643 = vrot.lane.b32.xlu0 %v1621, 40
      %v1644 = vpop.permute.xlu0 %1643
      %1645 = vrot.lane.b32.xlu0 %v1622, 40
      %v1646 = vpop.permute.xlu0 %1645
      %1647 = vrot.lane.b32.xlu0 %v1623, 40
      %v1648 = vpop.permute.xlu0 %1647
      %1649 = vrot.lane.b32.xlu0 %v1624, 40
      %v1650 = vpop.permute.xlu0 %1649
      %1651 = vrot.lane.b32.xlu0 %v1625, 40
      %v1652 = vpop.permute.xlu0 %1651
      %1653 = vrot.lane.b32.xlu0 %v1626, 40
      %v1654 = vpop.permute.xlu0 %1653
      %1655 = vrot.lane.b32.xlu0 %v1627, 40
      %v1656 = vpop.permute.xlu0 %1655
      %1657 = vrot.lane.b32.xlu0 %v1628, 40
      %v1658 = vpop.permute.xlu0 %1657
      %v1659 = vsel %vm438, %v1640, %v1642
      %v1660 = vsel %vm438, %v1642, %v1644
      %v1661 = vsel %vm438, %v1644, %v1646
      %v1662 = vsel %vm438, %v1646, %v1648
      %v1663 = vsel %vm438, %v1650, %v1652
      %v1664 = vsel %vm438, %v1652, %v1654
      %v1665 = vsel %vm438, %v1654, %v1656
      %v1666 = vsel %vm438, %v1656, %v1658
      %1675 = vst [vmem:[#allocation4 + $0x80] sm:$0xff] %v1659
      %1676 = vst [vmem:[#allocation4 + $0x88] sm:$0xff] %v1660
      %1677 = vst [vmem:[#allocation4 + $0x90] sm:$0xff] %v1661
      %1678 = vst [vmem:[#allocation4 + $0x98] sm:$0xff] %v1662
      %1679 = vst [vmem:[#allocation4 + $0xa0] sm:$0xff] %v1663
      %1680 = vst [vmem:[#allocation4 + $0xa8] sm:$0xff] %v1664
      %1681 = vst [vmem:[#allocation4 + $0xb0] sm:$0xff] %v1665
      %1682 = vst [vmem:[#allocation4 + $0xb8] sm:$0xff] %v1666
      %v1683 = vld [vmem:[#allocation3] sm:$0xff]
      %v1684 = vld [vmem:[#allocation3 + $0x8] sm:$0xff]
      %v1685 = vld [vmem:[#allocation3 + $0x10] sm:$0xff]
      %v1686 = vld [vmem:[#allocation3 + $0x18] sm:$0xff]
      %v1687 = vld [vmem:[#allocation3 + $0x20] sm:$0xff]
      %v1688 = vld [vmem:[#allocation3 + $0x30] sm:$0xff]
      %v1689 = vld [vmem:[#allocation3 + $0x38] sm:$0xff]
      %v1690 = vld [vmem:[#allocation3 + $0x40] sm:$0xff]
      %v1691 = vld [vmem:[#allocation3 + $0x48] sm:$0xff]
      %v1692 = vld [vmem:[#allocation3 + $0x50] sm:$0xff]
      %1703 = vrot.lane.b32.xlu0 %v1683, 39
      %v1704 = vpop.permute.xlu0 %1703
      %1705 = vrot.lane.b32.xlu0 %v1684, 39
      %v1706 = vpop.permute.xlu0 %1705
      %1707 = vrot.lane.b32.xlu0 %v1685, 39
      %v1708 = vpop.permute.xlu0 %1707
      %1709 = vrot.lane.b32.xlu0 %v1686, 39
      %v1710 = vpop.permute.xlu0 %1709
      %1711 = vrot.lane.b32.xlu0 %v1687, 39
      %v1712 = vpop.permute.xlu0 %1711
      %1713 = vrot.lane.b32.xlu0 %v1688, 39
      %v1714 = vpop.permute.xlu0 %1713
      %1715 = vrot.lane.b32.xlu0 %v1689, 39
      %v1716 = vpop.permute.xlu0 %1715
      %1717 = vrot.lane.b32.xlu0 %v1690, 39
      %v1718 = vpop.permute.xlu0 %1717
      %1719 = vrot.lane.b32.xlu0 %v1691, 39
      %v1720 = vpop.permute.xlu0 %1719
      %1721 = vrot.lane.b32.xlu0 %v1692, 39
      %v1722 = vpop.permute.xlu0 %1721
      %v1723 = vsel %vm471, %v1704, %v1706
      %v1724 = vsel %vm471, %v1706, %v1708
      %v1725 = vsel %vm471, %v1708, %v1710
      %v1726 = vsel %vm471, %v1710, %v1712
      %v1727 = vsel %vm471, %v1714, %v1716
      %v1728 = vsel %vm471, %v1716, %v1718
      %v1729 = vsel %vm471, %v1718, %v1720
      %v1730 = vsel %vm471, %v1720, %v1722
      %1739 = vst [vmem:[#allocation4 + $0xc0] sm:$0xff] %v1723
      %1740 = vst [vmem:[#allocation4 + $0xc8] sm:$0xff] %v1724
      %1741 = vst [vmem:[#allocation4 + $0xd0] sm:$0xff] %v1725
      %1742 = vst [vmem:[#allocation4 + $0xd8] sm:$0xff] %v1726
      %1743 = vst [vmem:[#allocation4 + $0xe0] sm:$0xff] %v1727
      %1744 = vst [vmem:[#allocation4 + $0xe8] sm:$0xff] %v1728
      %1745 = vst [vmem:[#allocation4 + $0xf0] sm:$0xff] %v1729
      %1746 = vst [vmem:[#allocation4 + $0xf8] sm:$0xff] %v1730
      %v1747 = vld [vmem:[#allocation3] sm:$0xff]
      %v1748 = vld [vmem:[#allocation3 + $0x8] sm:$0xff]
      %v1749 = vld [vmem:[#allocation3 + $0x10] sm:$0xff]
      %v1750 = vld [vmem:[#allocation3 + $0x18] sm:$0xff]
      %v1751 = vld [vmem:[#allocation3 + $0x20] sm:$0xff]
      %v1752 = vld [vmem:[#allocation3 + $0x30] sm:$0xff]
      %v1753 = vld [vmem:[#allocation3 + $0x38] sm:$0xff]
      %v1754 = vld [vmem:[#allocation3 + $0x40] sm:$0xff]
      %v1755 = vld [vmem:[#allocation3 + $0x48] sm:$0xff]
      %v1756 = vld [vmem:[#allocation3 + $0x50] sm:$0xff]
      %1767 = vrot.lane.b32.xlu0 %v1747, 38
      %v1768 = vpop.permute.xlu0 %1767
      %1769 = vrot.lane.b32.xlu0 %v1748, 38
      %v1770 = vpop.permute.xlu0 %1769
      %1771 = vrot.lane.b32.xlu0 %v1749, 38
      %v1772 = vpop.permute.xlu0 %1771
      %1773 = vrot.lane.b32.xlu0 %v1750, 38
      %v1774 = vpop.permute.xlu0 %1773
      %1775 = vrot.lane.b32.xlu0 %v1751, 38
      %v1776 = vpop.permute.xlu0 %1775
      %1777 = vrot.lane.b32.xlu0 %v1752, 38
      %v1778 = vpop.permute.xlu0 %1777
      %1779 = vrot.lane.b32.xlu0 %v1753, 38
      %v1780 = vpop.permute.xlu0 %1779
      %1781 = vrot.lane.b32.xlu0 %v1754, 38
      %v1782 = vpop.permute.xlu0 %1781
      %1783 = vrot.lane.b32.xlu0 %v1755, 38
      %v1784 = vpop.permute.xlu0 %1783
      %1785 = vrot.lane.b32.xlu0 %v1756, 38
      %v1786 = vpop.permute.xlu0 %1785
      %v1787 = vsel %vm504, %v1768, %v1770
      %v1788 = vsel %vm504, %v1770, %v1772
      %v1789 = vsel %vm504, %v1772, %v1774
      %v1790 = vsel %vm504, %v1774, %v1776
      %v1791 = vsel %vm504, %v1778, %v1780
      %v1792 = vsel %vm504, %v1780, %v1782
      %v1793 = vsel %vm504, %v1782, %v1784
      %v1794 = vsel %vm504, %v1784, %v1786
      %1803 = vst [vmem:[#allocation4 + $0x100] sm:$0xff] %v1787
      %1804 = vst [vmem:[#allocation4 + $0x108] sm:$0xff] %v1788
      %1805 = vst [vmem:[#allocation4 + $0x110] sm:$0xff] %v1789
      %1806 = vst [vmem:[#allocation4 + $0x118] sm:$0xff] %v1790
      %1807 = vst [vmem:[#allocation4 + $0x120] sm:$0xff] %v1791
      %1808 = vst [vmem:[#allocation4 + $0x128] sm:$0xff] %v1792
      %1809 = vst [vmem:[#allocation4 + $0x130] sm:$0xff] %v1793
      %1810 = vst [vmem:[#allocation4 + $0x138] sm:$0xff] %v1794
      %v1811 = vld [vmem:[#allocation3] sm:$0xff]
      %v1812 = vld [vmem:[#allocation3 + $0x8] sm:$0xff]
      %v1813 = vld [vmem:[#allocation3 + $0x10] sm:$0xff]
      %v1814 = vld [vmem:[#allocation3 + $0x18] sm:$0xff]
      %v1815 = vld [vmem:[#allocation3 + $0x20] sm:$0xff]
      %v1816 = vld [vmem:[#allocation3 + $0x30] sm:$0xff]
      %v1817 = vld [vmem:[#allocation3 + $0x38] sm:$0xff]
      %v1818 = vld [vmem:[#allocation3 + $0x40] sm:$0xff]
      %v1819 = vld [vmem:[#allocation3 + $0x48] sm:$0xff]
      %v1820 = vld [vmem:[#allocation3 + $0x50] sm:$0xff]
      %1831 = vrot.lane.b32.xlu0 %v1811, 22
      %v1832 = vpop.permute.xlu0 %1831
      %1833 = vrot.lane.b32.xlu0 %v1812, 22
      %v1834 = vpop.permute.xlu0 %1833
      %1835 = vrot.lane.b32.xlu0 %v1813, 22
      %v1836 = vpop.permute.xlu0 %1835
      %1837 = vrot.lane.b32.xlu0 %v1814, 22
      %v1838 = vpop.permute.xlu0 %1837
      %1839 = vrot.lane.b32.xlu0 %v1815, 22
      %v1840 = vpop.permute.xlu0 %1839
      %1841 = vrot.lane.b32.xlu0 %v1816, 22
      %v1842 = vpop.permute.xlu0 %1841
      %1843 = vrot.lane.b32.xlu0 %v1817, 22
      %v1844 = vpop.permute.xlu0 %1843
      %1845 = vrot.lane.b32.xlu0 %v1818, 22
      %v1846 = vpop.permute.xlu0 %1845
      %1847 = vrot.lane.b32.xlu0 %v1819, 22
      %v1848 = vpop.permute.xlu0 %1847
      %1849 = vrot.lane.b32.xlu0 %v1820, 22
      %v1850 = vpop.permute.xlu0 %1849
      %v1851 = vsel %vm537, %v1832, %v1834
      %v1852 = vsel %vm537, %v1834, %v1836
      %v1853 = vsel %vm537, %v1836, %v1838
      %v1854 = vsel %vm537, %v1838, %v1840
      %v1855 = vsel %vm537, %v1842, %v1844
      %v1856 = vsel %vm537, %v1844, %v1846
      %v1857 = vsel %vm537, %v1846, %v1848
      %v1858 = vsel %vm537, %v1848, %v1850
      %1867 = vst [vmem:[#allocation4 + $0x140] sm:$0xff] %v1851
      %1868 = vst [vmem:[#allocation4 + $0x148] sm:$0xff] %v1852
      %1869 = vst [vmem:[#allocation4 + $0x150] sm:$0xff] %v1853
      %1870 = vst [vmem:[#allocation4 + $0x158] sm:$0xff] %v1854
      %1871 = vst [vmem:[#allocation4 + $0x160] sm:$0xff] %v1855
      %1872 = vst [vmem:[#allocation4 + $0x168] sm:$0xff] %v1856
      %1873 = vst [vmem:[#allocation4 + $0x170] sm:$0xff] %v1857
      %1874 = vst [vmem:[#allocation4 + $0x178] sm:$0xff] %v1858
      %v1875 = vld [vmem:[#allocation3] sm:$0xff]
      %v1876 = vld [vmem:[#allocation3 + $0x8] sm:$0xff]
      %v1877 = vld [vmem:[#allocation3 + $0x10] sm:$0xff]
      %v1878 = vld [vmem:[#allocation3 + $0x18] sm:$0xff]
      %v1879 = vld [vmem:[#allocation3 + $0x20] sm:$0xff]
      %v1880 = vld [vmem:[#allocation3 + $0x30] sm:$0xff]
      %v1881 = vld [vmem:[#allocation3 + $0x38] sm:$0xff]
      %v1882 = vld [vmem:[#allocation3 + $0x40] sm:$0xff]
      %v1883 = vld [vmem:[#allocation3 + $0x48] sm:$0xff]
      %v1884 = vld [vmem:[#allocation3 + $0x50] sm:$0xff]
      %1895 = vrot.lane.b32.xlu0 %v1875, 21
      %v1896 = vpop.permute.xlu0 %1895
      %1897 = vrot.lane.b32.xlu0 %v1876, 21
      %v1898 = vpop.permute.xlu0 %1897
      %1899 = vrot.lane.b32.xlu0 %v1877, 21
      %v1900 = vpop.permute.xlu0 %1899
      %1901 = vrot.lane.b32.xlu0 %v1878, 21
      %v1902 = vpop.permute.xlu0 %1901
      %1903 = vrot.lane.b32.xlu0 %v1879, 21
      %v1904 = vpop.permute.xlu0 %1903
      %1905 = vrot.lane.b32.xlu0 %v1880, 21
      %v1906 = vpop.permute.xlu0 %1905
      %1907 = vrot.lane.b32.xlu0 %v1881, 21
      %v1908 = vpop.permute.xlu0 %1907
      %1909 = vrot.lane.b32.xlu0 %v1882, 21
      %v1910 = vpop.permute.xlu0 %1909
      %1911 = vrot.lane.b32.xlu0 %v1883, 21
      %v1912 = vpop.permute.xlu0 %1911
      %1913 = vrot.lane.b32.xlu0 %v1884, 21
      %v1914 = vpop.permute.xlu0 %1913
      %v1915 = vsel %vm570, %v1896, %v1898
      %v1916 = vsel %vm570, %v1898, %v1900
      %v1917 = vsel %vm570, %v1900, %v1902
      %v1918 = vsel %vm570, %v1902, %v1904
      %v1919 = vsel %vm570, %v1906, %v1908
      %v1920 = vsel %vm570, %v1908, %v1910
      %v1921 = vsel %vm570, %v1910, %v1912
      %v1922 = vsel %vm570, %v1912, %v1914
      %1931 = vst [vmem:[#allocation4 + $0x180] sm:$0xff] %v1915
      %1932 = vst [vmem:[#allocation4 + $0x188] sm:$0xff] %v1916
      %1933 = vst [vmem:[#allocation4 + $0x190] sm:$0xff] %v1917
      %1934 = vst [vmem:[#allocation4 + $0x198] sm:$0xff] %v1918
      %1935 = vst [vmem:[#allocation4 + $0x1a0] sm:$0xff] %v1919
      %1936 = vst [vmem:[#allocation4 + $0x1a8] sm:$0xff] %v1920
      %1937 = vst [vmem:[#allocation4 + $0x1b0] sm:$0xff] %v1921
      %1938 = vst [vmem:[#allocation4 + $0x1b8] sm:$0xff] %v1922
      %v1939 = vld [vmem:[#allocation3] sm:$0xff]
      %v1940 = vld [vmem:[#allocation3 + $0x8] sm:$0xff]
      %v1941 = vld [vmem:[#allocation3 + $0x10] sm:$0xff]
      %v1942 = vld [vmem:[#allocation3 + $0x18] sm:$0xff]
      %v1943 = vld [vmem:[#allocation3 + $0x20] sm:$0xff]
      %v1944 = vld [vmem:[#allocation3 + $0x30] sm:$0xff]
      %v1945 = vld [vmem:[#allocation3 + $0x38] sm:$0xff]
      %v1946 = vld [vmem:[#allocation3 + $0x40] sm:$0xff]
      %v1947 = vld [vmem:[#allocation3 + $0x48] sm:$0xff]
      %v1948 = vld [vmem:[#allocation3 + $0x50] sm:$0xff]
      %1959 = vrot.lane.b32.xlu0 %v1939, 20
      %v1960 = vpop.permute.xlu0 %1959
      %1961 = vrot.lane.b32.xlu0 %v1940, 20
      %v1962 = vpop.permute.xlu0 %1961
      %1963 = vrot.lane.b32.xlu0 %v1941, 20
      %v1964 = vpop.permute.xlu0 %1963
      %1965 = vrot.lane.b32.xlu0 %v1942, 20
      %v1966 = vpop.permute.xlu0 %1965
      %1967 = vrot.lane.b32.xlu0 %v1943, 20
      %v1968 = vpop.permute.xlu0 %1967
      %1969 = vrot.lane.b32.xlu0 %v1944, 20
      %v1970 = vpop.permute.xlu0 %1969
      %1971 = vrot.lane.b32.xlu0 %v1945, 20
      %v1972 = vpop.permute.xlu0 %1971
      %1973 = vrot.lane.b32.xlu0 %v1946, 20
      %v1974 = vpop.permute.xlu0 %1973
      %1975 = vrot.lane.b32.xlu0 %v1947, 20
      %v1976 = vpop.permute.xlu0 %1975
      %1977 = vrot.lane.b32.xlu0 %v1948, 20
      %v1978 = vpop.permute.xlu0 %1977
      %v1979 = vsel %vm603, %v1960, %v1962
      %v1980 = vsel %vm603, %v1962, %v1964
      %v1981 = vsel %vm603, %v1964, %v1966
      %v1982 = vsel %vm603, %v1966, %v1968
      %v1983 = vsel %vm603, %v1970, %v1972
      %v1984 = vsel %vm603, %v1972, %v1974
      %v1985 = vsel %vm603, %v1974, %v1976
      %v1986 = vsel %vm603, %v1976, %v1978
      %1995 = vst [vmem:[#allocation4 + $0x1c0] sm:$0xff] %v1979
      %1996 = vst [vmem:[#allocation4 + $0x1c8] sm:$0xff] %v1980
      %1997 = vst [vmem:[#allocation4 + $0x1d0] sm:$0xff] %v1981
      %1998 = vst [vmem:[#allocation4 + $0x1d8] sm:$0xff] %v1982
      %1999 = vst [vmem:[#allocation4 + $0x1e0] sm:$0xff] %v1983
      %2000 = vst [vmem:[#allocation4 + $0x1e8] sm:$0xff] %v1984
      %2001 = vst [vmem:[#allocation4 + $0x1f0] sm:$0xff] %v1985
      %2002 = vst [vmem:[#allocation4 + $0x1f8] sm:$0xff] %v1986
      %v2003 = vld [vmem:[#allocation3] sm:$0xff]
      %v2004 = vld [vmem:[#allocation3 + $0x8] sm:$0xff]
      %v2005 = vld [vmem:[#allocation3 + $0x10] sm:$0xff]
      %v2006 = vld [vmem:[#allocation3 + $0x18] sm:$0xff]
      %v2007 = vld [vmem:[#allocation3 + $0x20] sm:$0xff]
      %v2008 = vld [vmem:[#allocation3 + $0x30] sm:$0xff]
      %v2009 = vld [vmem:[#allocation3 + $0x38] sm:$0xff]
      %v2010 = vld [vmem:[#allocation3 + $0x40] sm:$0xff]
      %v2011 = vld [vmem:[#allocation3 + $0x48] sm:$0xff]
      %v2012 = vld [vmem:[#allocation3 + $0x50] sm:$0xff]
      %2023 = vrot.lane.b32.xlu0 %v2003, 19
      %v2024 = vpop.permute.xlu0 %2023
      %2025 = vrot.lane.b32.xlu0 %v2004, 19
      %v2026 = vpop.permute.xlu0 %2025
      %2027 = vrot.lane.b32.xlu0 %v2005, 19
      %v2028 = vpop.permute.xlu0 %2027
      %2029 = vrot.lane.b32.xlu0 %v2006, 19
      %v2030 = vpop.permute.xlu0 %2029
      %2031 = vrot.lane.b32.xlu0 %v2007, 19
      %v2032 = vpop.permute.xlu0 %2031
      %2033 = vrot.lane.b32.xlu0 %v2008, 19
      %v2034 = vpop.permute.xlu0 %2033
      %2035 = vrot.lane.b32.xlu0 %v2009, 19
      %v2036 = vpop.permute.xlu0 %2035
      %2037 = vrot.lane.b32.xlu0 %v2010, 19
      %v2038 = vpop.permute.xlu0 %2037
      %2039 = vrot.lane.b32.xlu0 %v2011, 19
      %v2040 = vpop.permute.xlu0 %2039
      %2041 = vrot.lane.b32.xlu0 %v2012, 19
      %v2042 = vpop.permute.xlu0 %2041
      %v2043 = vsel %vm636, %v2024, %v2026
      %v2044 = vsel %vm636, %v2026, %v2028
      %v2045 = vsel %vm636, %v2028, %v2030
      %v2046 = vsel %vm636, %v2030, %v2032
      %v2047 = vsel %vm636, %v2034, %v2036
      %v2048 = vsel %vm636, %v2036, %v2038
      %v2049 = vsel %vm636, %v2038, %v2040
      %v2050 = vsel %vm636, %v2040, %v2042
      %2059 = vst [vmem:[#allocation4 + $0x200] sm:$0xff] %v2043
      %2060 = vst [vmem:[#allocation4 + $0x208] sm:$0xff] %v2044
      %2061 = vst [vmem:[#allocation4 + $0x210] sm:$0xff] %v2045
      %2062 = vst [vmem:[#allocation4 + $0x218] sm:$0xff] %v2046
      %2063 = vst [vmem:[#allocation4 + $0x220] sm:$0xff] %v2047
      %2064 = vst [vmem:[#allocation4 + $0x228] sm:$0xff] %v2048
      %2065 = vst [vmem:[#allocation4 + $0x230] sm:$0xff] %v2049
      %2066 = vst [vmem:[#allocation4 + $0x238] sm:$0xff] %v2050
      %v2067 = vld [vmem:[#allocation3] sm:$0xff]
      %v2068 = vld [vmem:[#allocation3 + $0x8] sm:$0xff]
      %v2069 = vld [vmem:[#allocation3 + $0x10] sm:$0xff]
      %v2070 = vld [vmem:[#allocation3 + $0x18] sm:$0xff]
      %v2071 = vld [vmem:[#allocation3 + $0x20] sm:$0xff]
      %v2072 = vld [vmem:[#allocation3 + $0x30] sm:$0xff]
      %v2073 = vld [vmem:[#allocation3 + $0x38] sm:$0xff]
      %v2074 = vld [vmem:[#allocation3 + $0x40] sm:$0xff]
      %v2075 = vld [vmem:[#allocation3 + $0x48] sm:$0xff]
      %v2076 = vld [vmem:[#allocation3 + $0x50] sm:$0xff]
      %2087 = vrot.lane.b32.xlu0 %v2067, 18
      %v2088 = vpop.permute.xlu0 %2087
      %2089 = vrot.lane.b32.xlu0 %v2068, 18
      %v2090 = vpop.permute.xlu0 %2089
      %2091 = vrot.lane.b32.xlu0 %v2069, 18
      %v2092 = vpop.permute.xlu0 %2091
      %2093 = vrot.lane.b32.xlu0 %v2070, 18
      %v2094 = vpop.permute.xlu0 %2093
      %2095 = vrot.lane.b32.xlu0 %v2071, 18
      %v2096 = vpop.permute.xlu0 %2095
      %2097 = vrot.lane.b32.xlu0 %v2072, 18
      %v2098 = vpop.permute.xlu0 %2097
      %2099 = vrot.lane.b32.xlu0 %v2073, 18
      %v2100 = vpop.permute.xlu0 %2099
      %2101 = vrot.lane.b32.xlu0 %v2074, 18
      %v2102 = vpop.permute.xlu0 %2101
      %2103 = vrot.lane.b32.xlu0 %v2075, 18
      %v2104 = vpop.permute.xlu0 %2103
      %2105 = vrot.lane.b32.xlu0 %v2076, 18
      %v2106 = vpop.permute.xlu0 %2105
      %v2107 = vsel %vm669, %v2088, %v2090
      %v2108 = vsel %vm669, %v2090, %v2092
      %v2109 = vsel %vm669, %v2092, %v2094
      %v2110 = vsel %vm669, %v2094, %v2096
      %v2111 = vsel %vm669, %v2098, %v2100
      %v2112 = vsel %vm669, %v2100, %v2102
      %v2113 = vsel %vm669, %v2102, %v2104
      %v2114 = vsel %vm669, %v2104, %v2106
      %2123 = vst [vmem:[#allocation4 + $0x240] sm:$0xff] %v2107
      %2124 = vst [vmem:[#allocation4 + $0x248] sm:$0xff] %v2108
      %2125 = vst [vmem:[#allocation4 + $0x250] sm:$0xff] %v2109
      %2126 = vst [vmem:[#allocation4 + $0x258] sm:$0xff] %v2110
      %2127 = vst [vmem:[#allocation4 + $0x260] sm:$0xff] %v2111
      %2128 = vst [vmem:[#allocation4 + $0x268] sm:$0xff] %v2112
      %2129 = vst [vmem:[#allocation4 + $0x270] sm:$0xff] %v2113
      %2130 = vst [vmem:[#allocation4 + $0x278] sm:$0xff] %v2114
      %v2131 = vld [vmem:[#allocation3] sm:$0xff]
      %v2132 = vld [vmem:[#allocation3 + $0x8] sm:$0xff]
      %v2133 = vld [vmem:[#allocation3 + $0x10] sm:$0xff]
      %v2134 = vld [vmem:[#allocation3 + $0x18] sm:$0xff]
      %v2135 = vld [vmem:[#allocation3 + $0x20] sm:$0xff]
      %v2136 = vld [vmem:[#allocation3 + $0x30] sm:$0xff]
      %v2137 = vld [vmem:[#allocation3 + $0x38] sm:$0xff]
      %v2138 = vld [vmem:[#allocation3 + $0x40] sm:$0xff]
      %v2139 = vld [vmem:[#allocation3 + $0x48] sm:$0xff]
      %v2140 = vld [vmem:[#allocation3 + $0x50] sm:$0xff]
      %2151 = vrot.lane.b32.xlu0 %v2131, 2
      %v2152 = vpop.permute.xlu0 %2151
      %2153 = vrot.lane.b32.xlu0 %v2132, 2
      %v2154 = vpop.permute.xlu0 %2153
      %2155 = vrot.lane.b32.xlu0 %v2133, 2
      %v2156 = vpop.permute.xlu0 %2155
      %2157 = vrot.lane.b32.xlu0 %v2134, 2
      %v2158 = vpop.permute.xlu0 %2157
      %2159 = vrot.lane.b32.xlu0 %v2135, 2
      %v2160 = vpop.permute.xlu0 %2159
      %2161 = vrot.lane.b32.xlu0 %v2136, 2
      %v2162 = vpop.permute.xlu0 %2161
      %2163 = vrot.lane.b32.xlu0 %v2137, 2
      %v2164 = vpop.permute.xlu0 %2163
      %2165 = vrot.lane.b32.xlu0 %v2138, 2
      %v2166 = vpop.permute.xlu0 %2165
      %2167 = vrot.lane.b32.xlu0 %v2139, 2
      %v2168 = vpop.permute.xlu0 %2167
      %2169 = vrot.lane.b32.xlu0 %v2140, 2
      %v2170 = vpop.permute.xlu0 %2169
      %v2171 = vsel %vm702, %v2152, %v2154
      %v2172 = vsel %vm702, %v2154, %v2156
      %v2173 = vsel %vm702, %v2156, %v2158
      %v2174 = vsel %vm702, %v2158, %v2160
      %v2175 = vsel %vm702, %v2162, %v2164
      %v2176 = vsel %vm702, %v2164, %v2166
      %v2177 = vsel %vm702, %v2166, %v2168
      %v2178 = vsel %vm702, %v2168, %v2170
      %2187 = vst [vmem:[#allocation4 + $0x280] sm:$0xff] %v2171
      %2188 = vst [vmem:[#allocation4 + $0x288] sm:$0xff] %v2172
      %2189 = vst [vmem:[#allocation4 + $0x290] sm:$0xff] %v2173
      %2190 = vst [vmem:[#allocation4 + $0x298] sm:$0xff] %v2174
      %2191 = vst [vmem:[#allocation4 + $0x2a0] sm:$0xff] %v2175
      %2192 = vst [vmem:[#allocation4 + $0x2a8] sm:$0xff] %v2176
      %2193 = vst [vmem:[#allocation4 + $0x2b0] sm:$0xff] %v2177
      %2194 = vst [vmem:[#allocation4 + $0x2b8] sm:$0xff] %v2178
      %v2195 = vld [vmem:[#allocation3] sm:$0xff]
      %v2196 = vld [vmem:[#allocation3 + $0x8] sm:$0xff]
      %v2197 = vld [vmem:[#allocation3 + $0x10] sm:$0xff]
      %v2198 = vld [vmem:[#allocation3 + $0x18] sm:$0xff]
      %v2199 = vld [vmem:[#allocation3 + $0x20] sm:$0xff]
      %v2200 = vld [vmem:[#allocation3 + $0x30] sm:$0xff]
      %v2201 = vld [vmem:[#allocation3 + $0x38] sm:$0xff]
      %v2202 = vld [vmem:[#allocation3 + $0x40] sm:$0xff]
      %v2203 = vld [vmem:[#allocation3 + $0x48] sm:$0xff]
      %v2204 = vld [vmem:[#allocation3 + $0x50] sm:$0xff]
      %2215 = vrot.lane.b32.xlu0 %v2195, 1
      %v2216 = vpop.permute.xlu0 %2215
      %2217 = vrot.lane.b32.xlu0 %v2196, 1
      %v2218 = vpop.permute.xlu0 %2217
      %2219 = vrot.lane.b32.xlu0 %v2197, 1
      %v2220 = vpop.permute.xlu0 %2219
      %2221 = vrot.lane.b32.xlu0 %v2198, 1
      %v2222 = vpop.permute.xlu0 %2221
      %2223 = vrot.lane.b32.xlu0 %v2199, 1
      %v2224 = vpop.permute.xlu0 %2223
      %2225 = vrot.lane.b32.xlu0 %v2200, 1
      %v2226 = vpop.permute.xlu0 %2225
      %2227 = vrot.lane.b32.xlu0 %v2201, 1
      %v2228 = vpop.permute.xlu0 %2227
      %2229 = vrot.lane.b32.xlu0 %v2202, 1
      %v2230 = vpop.permute.xlu0 %2229
      %2231 = vrot.lane.b32.xlu0 %v2203, 1
      %v2232 = vpop.permute.xlu0 %2231
      %2233 = vrot.lane.b32.xlu0 %v2204, 1
      %v2234 = vpop.permute.xlu0 %2233
      %v2235 = vsel %vm735, %v2216, %v2218
      %v2236 = vsel %vm735, %v2218, %v2220
      %v2237 = vsel %vm735, %v2220, %v2222
      %v2238 = vsel %vm735, %v2222, %v2224
      %v2239 = vsel %vm735, %v2226, %v2228
      %v2240 = vsel %vm735, %v2228, %v2230
      %v2241 = vsel %vm735, %v2230, %v2232
      %v2242 = vsel %vm735, %v2232, %v2234
      %2251 = vst [vmem:[#allocation4 + $0x2c0] sm:$0xff] %v2235
      %2252 = vst [vmem:[#allocation4 + $0x2c8] sm:$0xff] %v2236
      %2253 = vst [vmem:[#allocation4 + $0x2d0] sm:$0xff] %v2237
      %2254 = vst [vmem:[#allocation4 + $0x2d8] sm:$0xff] %v2238
      %2255 = vst [vmem:[#allocation4 + $0x2e0] sm:$0xff] %v2239
      %2256 = vst [vmem:[#allocation4 + $0x2e8] sm:$0xff] %v2240
      %2257 = vst [vmem:[#allocation4 + $0x2f0] sm:$0xff] %v2241
      %2258 = vst [vmem:[#allocation4 + $0x2f8] sm:$0xff] %v2242
      %v2259 = vld [vmem:[#allocation3 + $0x8] sm:$0xff]
      %v2260 = vld [vmem:[#allocation3 + $0x10] sm:$0xff]
      %v2261 = vld [vmem:[#allocation3 + $0x18] sm:$0xff]
      %v2262 = vld [vmem:[#allocation3 + $0x20] sm:$0xff]
      %v2263 = vld [vmem:[#allocation3 + $0x38] sm:$0xff]
      %v2264 = vld [vmem:[#allocation3 + $0x40] sm:$0xff]
      %v2265 = vld [vmem:[#allocation3 + $0x48] sm:$0xff]
      %v2266 = vld [vmem:[#allocation3 + $0x50] sm:$0xff]
      %2267 = vst [vmem:[#allocation4 + $0x300] sm:$0xff] %v2259
      %2268 = vst [vmem:[#allocation4 + $0x308] sm:$0xff] %v2260
      %2269 = vst [vmem:[#allocation4 + $0x310] sm:$0xff] %v2261
      %2270 = vst [vmem:[#allocation4 + $0x318] sm:$0xff] %v2262
      %2271 = vst [vmem:[#allocation4 + $0x320] sm:$0xff] %v2263
      %2272 = vst [vmem:[#allocation4 + $0x328] sm:$0xff] %v2264
      %2273 = vst [vmem:[#allocation4 + $0x330] sm:$0xff] %v2265
      %2274 = vst [vmem:[#allocation4 + $0x338] sm:$0xff] %v2266
      %v2275 = vld [vmem:[#allocation3 + $0x8] sm:$0xff]
      %v2276 = vld [vmem:[#allocation3 + $0x10] sm:$0xff]
      %v2277 = vld [vmem:[#allocation3 + $0x18] sm:$0xff]
      %v2278 = vld [vmem:[#allocation3 + $0x20] sm:$0xff]
      %v2279 = vld [vmem:[#allocation3 + $0x28] sm:$0xff]
      %v2280 = vld [vmem:[#allocation3 + $0x38] sm:$0xff]
      %v2281 = vld [vmem:[#allocation3 + $0x40] sm:$0xff]
      %v2282 = vld [vmem:[#allocation3 + $0x48] sm:$0xff]
      %v2283 = vld [vmem:[#allocation3 + $0x50] sm:$0xff]
      %v2284 = vld [vmem:[#allocation3 + $0x58] sm:$0xff]
      %2295 = vrot.lane.b32.xlu0 %v2275, 127
      %v2296 = vpop.permute.xlu0 %2295
      %2297 = vrot.lane.b32.xlu0 %v2276, 127
      %v2298 = vpop.permute.xlu0 %2297
      %2299 = vrot.lane.b32.xlu0 %v2277, 127
      %v2300 = vpop.permute.xlu0 %2299
      %2301 = vrot.lane.b32.xlu0 %v2278, 127
      %v2302 = vpop.permute.xlu0 %2301
      %2303 = vrot.lane.b32.xlu0 %v2279, 127
      %v2304 = vpop.permute.xlu0 %2303
      %2305 = vrot.lane.b32.xlu0 %v2280, 127
      %v2306 = vpop.permute.xlu0 %2305
      %2307 = vrot.lane.b32.xlu0 %v2281, 127
      %v2308 = vpop.permute.xlu0 %2307
      %2309 = vrot.lane.b32.xlu0 %v2282, 127
      %v2310 = vpop.permute.xlu0 %2309
      %2311 = vrot.lane.b32.xlu0 %v2283, 127
      %v2312 = vpop.permute.xlu0 %2311
      %2313 = vrot.lane.b32.xlu0 %v2284, 127
      %v2314 = vpop.permute.xlu0 %2313
      %v2315 = vsel %vm776, %v2296, %v2298
      %v2316 = vsel %vm776, %v2298, %v2300
      %v2317 = vsel %vm776, %v2300, %v2302
      %v2318 = vsel %vm776, %v2302, %v2304
      %v2319 = vsel %vm776, %v2306, %v2308
      %v2320 = vsel %vm776, %v2308, %v2310
      %v2321 = vsel %vm776, %v2310, %v2312
      %v2322 = vsel %vm776, %v2312, %v2314
      %2331 = vst [vmem:[#allocation4 + $0x340] sm:$0xff] %v2315
      %2332 = vst [vmem:[#allocation4 + $0x348] sm:$0xff] %v2316
      %2333 = vst [vmem:[#allocation4 + $0x350] sm:$0xff] %v2317
      %2334 = vst [vmem:[#allocation4 + $0x358] sm:$0xff] %v2318
      %2335 = vst [vmem:[#allocation4 + $0x360] sm:$0xff] %v2319
      %2336 = vst [vmem:[#allocation4 + $0x368] sm:$0xff] %v2320
      %2337 = vst [vmem:[#allocation4 + $0x370] sm:$0xff] %v2321
      %2338 = vst [vmem:[#allocation4 + $0x378] sm:$0xff] %v2322
      %v2339 = vld [vmem:[#allocation3 + $0x8] sm:$0xff]
      %v2340 = vld [vmem:[#allocation3 + $0x10] sm:$0xff]
      %v2341 = vld [vmem:[#allocation3 + $0x18] sm:$0xff]
      %v2342 = vld [vmem:[#allocation3 + $0x20] sm:$0xff]
      %v2343 = vld [vmem:[#allocation3 + $0x28] sm:$0xff]
      %v2344 = vld [vmem:[#allocation3 + $0x38] sm:$0xff]
      %v2345 = vld [vmem:[#allocation3 + $0x40] sm:$0xff]
      %v2346 = vld [vmem:[#allocation3 + $0x48] sm:$0xff]
      %v2347 = vld [vmem:[#allocation3 + $0x50] sm:$0xff]
      %v2348 = vld [vmem:[#allocation3 + $0x58] sm:$0xff]
      %2359 = vrot.lane.b32.xlu0 %v2339, 126
      %v2360 = vpop.permute.xlu0 %2359
      %2361 = vrot.lane.b32.xlu0 %v2340, 126
      %v2362 = vpop.permute.xlu0 %2361
      %2363 = vrot.lane.b32.xlu0 %v2341, 126
      %v2364 = vpop.permute.xlu0 %2363
      %2365 = vrot.lane.b32.xlu0 %v2342, 126
      %v2366 = vpop.permute.xlu0 %2365
      %2367 = vrot.lane.b32.xlu0 %v2343, 126
      %v2368 = vpop.permute.xlu0 %2367
      %2369 = vrot.lane.b32.xlu0 %v2344, 126
      %v2370 = vpop.permute.xlu0 %2369
      %2371 = vrot.lane.b32.xlu0 %v2345, 126
      %v2372 = vpop.permute.xlu0 %2371
      %2373 = vrot.lane.b32.xlu0 %v2346, 126
      %v2374 = vpop.permute.xlu0 %2373
      %2375 = vrot.lane.b32.xlu0 %v2347, 126
      %v2376 = vpop.permute.xlu0 %2375
      %2377 = vrot.lane.b32.xlu0 %v2348, 126
      %v2378 = vpop.permute.xlu0 %2377
      %v2379 = vsel %vm809, %v2360, %v2362
      %v2380 = vsel %vm809, %v2362, %v2364
      %v2381 = vsel %vm809, %v2364, %v2366
      %v2382 = vsel %vm809, %v2366, %v2368
      %v2383 = vsel %vm809, %v2370, %v2372
      %v2384 = vsel %vm809, %v2372, %v2374
      %v2385 = vsel %vm809, %v2374, %v2376
      %v2386 = vsel %vm809, %v2376, %v2378
      %2395 = vst [vmem:[#allocation4 + $0x380] sm:$0xff] %v2379
      %2396 = vst [vmem:[#allocation4 + $0x388] sm:$0xff] %v2380
      %2397 = vst [vmem:[#allocation4 + $0x390] sm:$0xff] %v2381
      %2398 = vst [vmem:[#allocation4 + $0x398] sm:$0xff] %v2382
      %2399 = vst [vmem:[#allocation4 + $0x3a0] sm:$0xff] %v2383
      %2400 = vst [vmem:[#allocation4 + $0x3a8] sm:$0xff] %v2384
      %2401 = vst [vmem:[#allocation4 + $0x3b0] sm:$0xff] %v2385
      %2402 = vst [vmem:[#allocation4 + $0x3b8] sm:$0xff] %v2386
      %v2403 = vld [vmem:[#allocation3 + $0x8] sm:$0xff]
      %v2404 = vld [vmem:[#allocation3 + $0x10] sm:$0xff]
      %v2405 = vld [vmem:[#allocation3 + $0x18] sm:$0xff]
      %v2406 = vld [vmem:[#allocation3 + $0x20] sm:$0xff]
      %v2407 = vld [vmem:[#allocation3 + $0x28] sm:$0xff]
      %v2408 = vld [vmem:[#allocation3 + $0x38] sm:$0xff]
      %v2409 = vld [vmem:[#allocation3 + $0x40] sm:$0xff]
      %v2410 = vld [vmem:[#allocation3 + $0x48] sm:$0xff]
      %v2411 = vld [vmem:[#allocation3 + $0x50] sm:$0xff]
      %v2412 = vld [vmem:[#allocation3 + $0x58] sm:$0xff]
      %2423 = vrot.lane.b32.xlu0 %v2403, 110
      %v2424 = vpop.permute.xlu0 %2423
      %2425 = vrot.lane.b32.xlu0 %v2404, 110
      %v2426 = vpop.permute.xlu0 %2425
      %2427 = vrot.lane.b32.xlu0 %v2405, 110
      %v2428 = vpop.permute.xlu0 %2427
      %2429 = vrot.lane.b32.xlu0 %v2406, 110
      %v2430 = vpop.permute.xlu0 %2429
      %2431 = vrot.lane.b32.xlu0 %v2407, 110
      %v2432 = vpop.permute.xlu0 %2431
      %2433 = vrot.lane.b32.xlu0 %v2408, 110
      %v2434 = vpop.permute.xlu0 %2433
      %2435 = vrot.lane.b32.xlu0 %v2409, 110
      %v2436 = vpop.permute.xlu0 %2435
      %2437 = vrot.lane.b32.xlu0 %v2410, 110
      %v2438 = vpop.permute.xlu0 %2437
      %2439 = vrot.lane.b32.xlu0 %v2411, 110
      %v2440 = vpop.permute.xlu0 %2439
      %2441 = vrot.lane.b32.xlu0 %v2412, 110
      %v2442 = vpop.permute.xlu0 %2441
      %v2443 = vsel %vm842, %v2424, %v2426
      %v2444 = vsel %vm842, %v2426, %v2428
      %v2445 = vsel %vm842, %v2428, %v2430
      %v2446 = vsel %vm842, %v2430, %v2432
      %v2447 = vsel %vm842, %v2434, %v2436
      %v2448 = vsel %vm842, %v2436, %v2438
      %v2449 = vsel %vm842, %v2438, %v2440
      %v2450 = vsel %vm842, %v2440, %v2442
      %2459 = vst [vmem:[#allocation4 + $0x3c0] sm:$0xff] %v2443
      %2460 = vst [vmem:[#allocation4 + $0x3c8] sm:$0xff] %v2444
      %2461 = vst [vmem:[#allocation4 + $0x3d0] sm:$0xff] %v2445
      %2462 = vst [vmem:[#allocation4 + $0x3d8] sm:$0xff] %v2446
      %2463 = vst [vmem:[#allocation4 + $0x3e0] sm:$0xff] %v2447
      %2464 = vst [vmem:[#allocation4 + $0x3e8] sm:$0xff] %v2448
      %2465 = vst [vmem:[#allocation4 + $0x3f0] sm:$0xff] %v2449
      %2466 = vst [vmem:[#allocation4 + $0x3f8] sm:$0xff] %v2450
      %v2467 = vld [vmem:[#allocation3 + $0x8] sm:$0xff]
      %v2468 = vld [vmem:[#allocation3 + $0x10] sm:$0xff]
      %v2469 = vld [vmem:[#allocation3 + $0x18] sm:$0xff]
      %v2470 = vld [vmem:[#allocation3 + $0x20] sm:$0xff]
      %v2471 = vld [vmem:[#allocation3 + $0x28] sm:$0xff]
      %v2472 = vld [vmem:[#allocation3 + $0x38] sm:$0xff]
      %v2473 = vld [vmem:[#allocation3 + $0x40] sm:$0xff]
      %v2474 = vld [vmem:[#allocation3 + $0x48] sm:$0xff]
      %v2475 = vld [vmem:[#allocation3 + $0x50] sm:$0xff]
      %v2476 = vld [vmem:[#allocation3 + $0x58] sm:$0xff]
      %2487 = vrot.lane.b32.xlu0 %v2467, 109
      %v2488 = vpop.permute.xlu0 %2487
      %2489 = vrot.lane.b32.xlu0 %v2468, 109
      %v2490 = vpop.permute.xlu0 %2489
      %2491 = vrot.lane.b32.xlu0 %v2469, 109
      %v2492 = vpop.permute.xlu0 %2491
      %2493 = vrot.lane.b32.xlu0 %v2470, 109
      %v2494 = vpop.permute.xlu0 %2493
      %2495 = vrot.lane.b32.xlu0 %v2471, 109
      %v2496 = vpop.permute.xlu0 %2495
      %2497 = vrot.lane.b32.xlu0 %v2472, 109
      %v2498 = vpop.permute.xlu0 %2497
      %2499 = vrot.lane.b32.xlu0 %v2473, 109
      %v2500 = vpop.permute.xlu0 %2499
      %2501 = vrot.lane.b32.xlu0 %v2474, 109
      %v2502 = vpop.permute.xlu0 %2501
      %2503 = vrot.lane.b32.xlu0 %v2475, 109
      %v2504 = vpop.permute.xlu0 %2503
      %2505 = vrot.lane.b32.xlu0 %v2476, 109
      %v2506 = vpop.permute.xlu0 %2505
      %v2507 = vsel %vm875, %v2488, %v2490
      %v2508 = vsel %vm875, %v2490, %v2492
      %v2509 = vsel %vm875, %v2492, %v2494
      %v2510 = vsel %vm875, %v2494, %v2496
      %v2511 = vsel %vm875, %v2498, %v2500
      %v2512 = vsel %vm875, %v2500, %v2502
      %v2513 = vsel %vm875, %v2502, %v2504
      %v2514 = vsel %vm875, %v2504, %v2506
      %2523 = vst [vmem:[#allocation4 + $0x400] sm:$0xff] %v2507
      %2524 = vst [vmem:[#allocation4 + $0x408] sm:$0xff] %v2508
      %2525 = vst [vmem:[#allocation4 + $0x410] sm:$0xff] %v2509
      %2526 = vst [vmem:[#allocation4 + $0x418] sm:$0xff] %v2510
      %2527 = vst [vmem:[#allocation4 + $0x420] sm:$0xff] %v2511
      %2528 = vst [vmem:[#allocation4 + $0x428] sm:$0xff] %v2512
      %2529 = vst [vmem:[#allocation4 + $0x430] sm:$0xff] %v2513
      %2530 = vst [vmem:[#allocation4 + $0x438] sm:$0xff] %v2514
      %v2531 = vld [vmem:[#allocation3 + $0x8] sm:$0xff]
      %v2532 = vld [vmem:[#allocation3 + $0x10] sm:$0xff]
      %v2533 = vld [vmem:[#allocation3 + $0x18] sm:$0xff]
      %v2534 = vld [vmem:[#allocation3 + $0x20] sm:$0xff]
      %v2535 = vld [vmem:[#allocation3 + $0x28] sm:$0xff]
      %v2536 = vld [vmem:[#allocation3 + $0x38] sm:$0xff]
      %v2537 = vld [vmem:[#allocation3 + $0x40] sm:$0xff]
      %v2538 = vld [vmem:[#allocation3 + $0x48] sm:$0xff]
      %v2539 = vld [vmem:[#allocation3 + $0x50] sm:$0xff]
      %v2540 = vld [vmem:[#allocation3 + $0x58] sm:$0xff]
      %2551 = vrot.lane.b32.xlu0 %v2531, 108
      %v2552 = vpop.permute.xlu0 %2551
      %2553 = vrot.lane.b32.xlu0 %v2532, 108
      %v2554 = vpop.permute.xlu0 %2553
      %2555 = vrot.lane.b32.xlu0 %v2533, 108
      %v2556 = vpop.permute.xlu0 %2555
      %2557 = vrot.lane.b32.xlu0 %v2534, 108
      %v2558 = vpop.permute.xlu0 %2557
      %2559 = vrot.lane.b32.xlu0 %v2535, 108
      %v2560 = vpop.permute.xlu0 %2559
      %2561 = vrot.lane.b32.xlu0 %v2536, 108
      %v2562 = vpop.permute.xlu0 %2561
      %2563 = vrot.lane.b32.xlu0 %v2537, 108
      %v2564 = vpop.permute.xlu0 %2563
      %2565 = vrot.lane.b32.xlu0 %v2538, 108
      %v2566 = vpop.permute.xlu0 %2565
      %2567 = vrot.lane.b32.xlu0 %v2539, 108
      %v2568 = vpop.permute.xlu0 %2567
      %2569 = vrot.lane.b32.xlu0 %v2540, 108
      %v2570 = vpop.permute.xlu0 %2569
      %v2571 = vsel %vm908, %v2552, %v2554
      %v2572 = vsel %vm908, %v2554, %v2556
      %v2573 = vsel %vm908, %v2556, %v2558
      %v2574 = vsel %vm908, %v2558, %v2560
      %v2575 = vsel %vm908, %v2562, %v2564
      %v2576 = vsel %vm908, %v2564, %v2566
      %v2577 = vsel %vm908, %v2566, %v2568
      %v2578 = vsel %vm908, %v2568, %v2570
      %2587 = vst [vmem:[#allocation4 + $0x440] sm:$0xff] %v2571
      %2588 = vst [vmem:[#allocation4 + $0x448] sm:$0xff] %v2572
      %2589 = vst [vmem:[#allocation4 + $0x450] sm:$0xff] %v2573
      %2590 = vst [vmem:[#allocation4 + $0x458] sm:$0xff] %v2574
      %2591 = vst [vmem:[#allocation4 + $0x460] sm:$0xff] %v2575
      %2592 = vst [vmem:[#allocation4 + $0x468] sm:$0xff] %v2576
      %2593 = vst [vmem:[#allocation4 + $0x470] sm:$0xff] %v2577
      %2594 = vst [vmem:[#allocation4 + $0x478] sm:$0xff] %v2578
      %v2595 = vld [vmem:[#allocation3 + $0x8] sm:$0xff]
      %v2596 = vld [vmem:[#allocation3 + $0x10] sm:$0xff]
      %v2597 = vld [vmem:[#allocation3 + $0x18] sm:$0xff]
      %v2598 = vld [vmem:[#allocation3 + $0x20] sm:$0xff]
      %v2599 = vld [vmem:[#allocation3 + $0x28] sm:$0xff]
      %v2600 = vld [vmem:[#allocation3 + $0x38] sm:$0xff]
      %v2601 = vld [vmem:[#allocation3 + $0x40] sm:$0xff]
      %v2602 = vld [vmem:[#allocation3 + $0x48] sm:$0xff]
      %v2603 = vld [vmem:[#allocation3 + $0x50] sm:$0xff]
      %v2604 = vld [vmem:[#allocation3 + $0x58] sm:$0xff]
      %2615 = vrot.lane.b32.xlu0 %v2595, 107
      %v2616 = vpop.permute.xlu0 %2615
      %2617 = vrot.lane.b32.xlu0 %v2596, 107
      %v2618 = vpop.permute.xlu0 %2617
      %2619 = vrot.lane.b32.xlu0 %v2597, 107
      %v2620 = vpop.permute.xlu0 %2619
      %2621 = vrot.lane.b32.xlu0 %v2598, 107
      %v2622 = vpop.permute.xlu0 %2621
      %2623 = vrot.lane.b32.xlu0 %v2599, 107
      %v2624 = vpop.permute.xlu0 %2623
      %2625 = vrot.lane.b32.xlu0 %v2600, 107
      %v2626 = vpop.permute.xlu0 %2625
      %2627 = vrot.lane.b32.xlu0 %v2601, 107
      %v2628 = vpop.permute.xlu0 %2627
      %2629 = vrot.lane.b32.xlu0 %v2602, 107
      %v2630 = vpop.permute.xlu0 %2629
      %2631 = vrot.lane.b32.xlu0 %v2603, 107
      %v2632 = vpop.permute.xlu0 %2631
      %2633 = vrot.lane.b32.xlu0 %v2604, 107
      %v2634 = vpop.permute.xlu0 %2633
      %v2635 = vsel %vm941, %v2616, %v2618
      %v2636 = vsel %vm941, %v2618, %v2620
      %v2637 = vsel %vm941, %v2620, %v2622
      %v2638 = vsel %vm941, %v2622, %v2624
      %v2639 = vsel %vm941, %v2626, %v2628
      %v2640 = vsel %vm941, %v2628, %v2630
      %v2641 = vsel %vm941, %v2630, %v2632
      %v2642 = vsel %vm941, %v2632, %v2634
      %2651 = vst [vmem:[#allocation4 + $0x480] sm:$0xff] %v2635
      %2652 = vst [vmem:[#allocation4 + $0x488] sm:$0xff] %v2636
      %2653 = vst [vmem:[#allocation4 + $0x490] sm:$0xff] %v2637
      %2654 = vst [vmem:[#allocation4 + $0x498] sm:$0xff] %v2638
      %2655 = vst [vmem:[#allocation4 + $0x4a0] sm:$0xff] %v2639
      %2656 = vst [vmem:[#allocation4 + $0x4a8] sm:$0xff] %v2640
      %2657 = vst [vmem:[#allocation4 + $0x4b0] sm:$0xff] %v2641
      %2658 = vst [vmem:[#allocation4 + $0x4b8] sm:$0xff] %v2642
      %v2659 = vld [vmem:[#allocation3 + $0x8] sm:$0xff]
      %v2660 = vld [vmem:[#allocation3 + $0x10] sm:$0xff]
      %v2661 = vld [vmem:[#allocation3 + $0x18] sm:$0xff]
      %v2662 = vld [vmem:[#allocation3 + $0x20] sm:$0xff]
      %v2663 = vld [vmem:[#allocation3 + $0x28] sm:$0xff]
      %v2664 = vld [vmem:[#allocation3 + $0x38] sm:$0xff]
      %v2665 = vld [vmem:[#allocation3 + $0x40] sm:$0xff]
      %v2666 = vld [vmem:[#allocation3 + $0x48] sm:$0xff]
      %v2667 = vld [vmem:[#allocation3 + $0x50] sm:$0xff]
      %v2668 = vld [vmem:[#allocation3 + $0x58] sm:$0xff]
      %2679 = vrot.lane.b32.xlu0 %v2659, 106
      %v2680 = vpop.permute.xlu0 %2679
      %2681 = vrot.lane.b32.xlu0 %v2660, 106
      %v2682 = vpop.permute.xlu0 %2681
      %2683 = vrot.lane.b32.xlu0 %v2661, 106
      %v2684 = vpop.permute.xlu0 %2683
      %2685 = vrot.lane.b32.xlu0 %v2662, 106
      %v2686 = vpop.permute.xlu0 %2685
      %2687 = vrot.lane.b32.xlu0 %v2663, 106
      %v2688 = vpop.permute.xlu0 %2687
      %2689 = vrot.lane.b32.xlu0 %v2664, 106
      %v2690 = vpop.permute.xlu0 %2689
      %2691 = vrot.lane.b32.xlu0 %v2665, 106
      %v2692 = vpop.permute.xlu0 %2691
      %2693 = vrot.lane.b32.xlu0 %v2666, 106
      %v2694 = vpop.permute.xlu0 %2693
      %2695 = vrot.lane.b32.xlu0 %v2667, 106
      %v2696 = vpop.permute.xlu0 %2695
      %2697 = vrot.lane.b32.xlu0 %v2668, 106
      %v2698 = vpop.permute.xlu0 %2697
      %v2699 = vsel %vm974, %v2680, %v2682
      %v2700 = vsel %vm974, %v2682, %v2684
      %v2701 = vsel %vm974, %v2684, %v2686
      %v2702 = vsel %vm974, %v2686, %v2688
      %v2703 = vsel %vm974, %v2690, %v2692
      %v2704 = vsel %vm974, %v2692, %v2694
      %v2705 = vsel %vm974, %v2694, %v2696
      %v2706 = vsel %vm974, %v2696, %v2698
      %2715 = vst [vmem:[#allocation4 + $0x4c0] sm:$0xff] %v2699
      %2716 = vst [vmem:[#allocation4 + $0x4c8] sm:$0xff] %v2700
      %2717 = vst [vmem:[#allocation4 + $0x4d0] sm:$0xff] %v2701
      %2718 = vst [vmem:[#allocation4 + $0x4d8] sm:$0xff] %v2702
      %2719 = vst [vmem:[#allocation4 + $0x4e0] sm:$0xff] %v2703
      %2720 = vst [vmem:[#allocation4 + $0x4e8] sm:$0xff] %v2704
      %2721 = vst [vmem:[#allocation4 + $0x4f0] sm:$0xff] %v2705
      %2722 = vst [vmem:[#allocation4 + $0x4f8] sm:$0xff] %v2706
      %v2723 = vld [vmem:[#allocation3 + $0x8] sm:$0xff]
      %v2724 = vld [vmem:[#allocation3 + $0x10] sm:$0xff]
      %v2725 = vld [vmem:[#allocation3 + $0x18] sm:$0xff]
      %v2726 = vld [vmem:[#allocation3 + $0x20] sm:$0xff]
      %v2727 = vld [vmem:[#allocation3 + $0x28] sm:$0xff]
      %v2728 = vld [vmem:[#allocation3 + $0x38] sm:$0xff]
      %v2729 = vld [vmem:[#allocation3 + $0x40] sm:$0xff]
      %v2730 = vld [vmem:[#allocation3 + $0x48] sm:$0xff]
      %v2731 = vld [vmem:[#allocation3 + $0x50] sm:$0xff]
      %v2732 = vld [vmem:[#allocation3 + $0x58] sm:$0xff]
      %2743 = vrot.lane.b32.xlu0 %v2723, 90
      %v2744 = vpop.permute.xlu0 %2743
      %2745 = vrot.lane.b32.xlu0 %v2724, 90
      %v2746 = vpop.permute.xlu0 %2745
      %2747 = vrot.lane.b32.xlu0 %v2725, 90
      %v2748 = vpop.permute.xlu0 %2747
      %2749 = vrot.lane.b32.xlu0 %v2726, 90
      %v2750 = vpop.permute.xlu0 %2749
      %2751 = vrot.lane.b32.xlu0 %v2727, 90
      %v2752 = vpop.permute.xlu0 %2751
      %2753 = vrot.lane.b32.xlu0 %v2728, 90
      %v2754 = vpop.permute.xlu0 %2753
      %2755 = vrot.lane.b32.xlu0 %v2729, 90
      %v2756 = vpop.permute.xlu0 %2755
      %2757 = vrot.lane.b32.xlu0 %v2730, 90
      %v2758 = vpop.permute.xlu0 %2757
      %2759 = vrot.lane.b32.xlu0 %v2731, 90
      %v2760 = vpop.permute.xlu0 %2759
      %2761 = vrot.lane.b32.xlu0 %v2732, 90
      %v2762 = vpop.permute.xlu0 %2761
      %v2763 = vsel %vm1007, %v2744, %v2746
      %v2764 = vsel %vm1007, %v2746, %v2748
      %v2765 = vsel %vm1007, %v2748, %v2750
      %v2766 = vsel %vm1007, %v2750, %v2752
      %v2767 = vsel %vm1007, %v2754, %v2756
      %v2768 = vsel %vm1007, %v2756, %v2758
      %v2769 = vsel %vm1007, %v2758, %v2760
      %v2770 = vsel %vm1007, %v2760, %v2762
      %2779 = vst [vmem:[#allocation4 + $0x500] sm:$0xff] %v2763
      %2780 = vst [vmem:[#allocation4 + $0x508] sm:$0xff] %v2764
      %2781 = vst [vmem:[#allocation4 + $0x510] sm:$0xff] %v2765
      %2782 = vst [vmem:[#allocation4 + $0x518] sm:$0xff] %v2766
      %2783 = vst [vmem:[#allocation4 + $0x520] sm:$0xff] %v2767
      %2784 = vst [vmem:[#allocation4 + $0x528] sm:$0xff] %v2768
      %2785 = vst [vmem:[#allocation4 + $0x530] sm:$0xff] %v2769
      %2786 = vst [vmem:[#allocation4 + $0x538] sm:$0xff] %v2770
      %v2787 = vld [vmem:[#allocation3 + $0x8] sm:$0xff]
      %v2788 = vld [vmem:[#allocation3 + $0x10] sm:$0xff]
      %v2789 = vld [vmem:[#allocation3 + $0x18] sm:$0xff]
      %v2790 = vld [vmem:[#allocation3 + $0x20] sm:$0xff]
      %v2791 = vld [vmem:[#allocation3 + $0x28] sm:$0xff]
      %v2792 = vld [vmem:[#allocation3 + $0x38] sm:$0xff]
      %v2793 = vld [vmem:[#allocation3 + $0x40] sm:$0xff]
      %v2794 = vld [vmem:[#allocation3 + $0x48] sm:$0xff]
      %v2795 = vld [vmem:[#allocation3 + $0x50] sm:$0xff]
      %v2796 = vld [vmem:[#allocation3 + $0x58] sm:$0xff]
      %2807 = vrot.lane.b32.xlu0 %v2787, 89
      %v2808 = vpop.permute.xlu0 %2807
      %2809 = vrot.lane.b32.xlu0 %v2788, 89
      %v2810 = vpop.permute.xlu0 %2809
      %2811 = vrot.lane.b32.xlu0 %v2789, 89
      %v2812 = vpop.permute.xlu0 %2811
      %2813 = vrot.lane.b32.xlu0 %v2790, 89
      %v2814 = vpop.permute.xlu0 %2813
      %2815 = vrot.lane.b32.xlu0 %v2791, 89
      %v2816 = vpop.permute.xlu0 %2815
      %2817 = vrot.lane.b32.xlu0 %v2792, 89
      %v2818 = vpop.permute.xlu0 %2817
      %2819 = vrot.lane.b32.xlu0 %v2793, 89
      %v2820 = vpop.permute.xlu0 %2819
      %2821 = vrot.lane.b32.xlu0 %v2794, 89
      %v2822 = vpop.permute.xlu0 %2821
      %2823 = vrot.lane.b32.xlu0 %v2795, 89
      %v2824 = vpop.permute.xlu0 %2823
      %2825 = vrot.lane.b32.xlu0 %v2796, 89
      %v2826 = vpop.permute.xlu0 %2825
      %v2827 = vsel %vm1040, %v2808, %v2810
      %v2828 = vsel %vm1040, %v2810, %v2812
      %v2829 = vsel %vm1040, %v2812, %v2814
      %v2830 = vsel %vm1040, %v2814, %v2816
      %v2831 = vsel %vm1040, %v2818, %v2820
      %v2832 = vsel %vm1040, %v2820, %v2822
      %v2833 = vsel %vm1040, %v2822, %v2824
      %v2834 = vsel %vm1040, %v2824, %v2826
      %2843 = vst [vmem:[#allocation4 + $0x540] sm:$0xff] %v2827
      %2844 = vst [vmem:[#allocation4 + $0x548] sm:$0xff] %v2828
      %2845 = vst [vmem:[#allocation4 + $0x550] sm:$0xff] %v2829
      %2846 = vst [vmem:[#allocation4 + $0x558] sm:$0xff] %v2830
      %2847 = vst [vmem:[#allocation4 + $0x560] sm:$0xff] %v2831
      %2848 = vst [vmem:[#allocation4 + $0x568] sm:$0xff] %v2832
      %2849 = vst [vmem:[#allocation4 + $0x570] sm:$0xff] %v2833
      %2850 = vst [vmem:[#allocation4 + $0x578] sm:$0xff] %v2834
      %v2851 = vld [vmem:[#allocation3 + $0x8] sm:$0xff]
      %v2852 = vld [vmem:[#allocation3 + $0x10] sm:$0xff]
      %v2853 = vld [vmem:[#allocation3 + $0x18] sm:$0xff]
      %v2854 = vld [vmem:[#allocation3 + $0x20] sm:$0xff]
      %v2855 = vld [vmem:[#allocation3 + $0x28] sm:$0xff]
      %v2856 = vld [vmem:[#allocation3 + $0x38] sm:$0xff]
      %v2857 = vld [vmem:[#allocation3 + $0x40] sm:$0xff]
      %v2858 = vld [vmem:[#allocation3 + $0x48] sm:$0xff]
      %v2859 = vld [vmem:[#allocation3 + $0x50] sm:$0xff]
      %v2860 = vld [vmem:[#allocation3 + $0x58] sm:$0xff]
      %2871 = vrot.lane.b32.xlu0 %v2851, 88
      %v2872 = vpop.permute.xlu0 %2871
      %2873 = vrot.lane.b32.xlu0 %v2852, 88
      %v2874 = vpop.permute.xlu0 %2873
      %2875 = vrot.lane.b32.xlu0 %v2853, 88
      %v2876 = vpop.permute.xlu0 %2875
      %2877 = vrot.lane.b32.xlu0 %v2854, 88
      %v2878 = vpop.permute.xlu0 %2877
      %2879 = vrot.lane.b32.xlu0 %v2855, 88
      %v2880 = vpop.permute.xlu0 %2879
      %2881 = vrot.lane.b32.xlu0 %v2856, 88
      %v2882 = vpop.permute.xlu0 %2881
      %2883 = vrot.lane.b32.xlu0 %v2857, 88
      %v2884 = vpop.permute.xlu0 %2883
      %2885 = vrot.lane.b32.xlu0 %v2858, 88
      %v2886 = vpop.permute.xlu0 %2885
      %2887 = vrot.lane.b32.xlu0 %v2859, 88
      %v2888 = vpop.permute.xlu0 %2887
      %2889 = vrot.lane.b32.xlu0 %v2860, 88
      %v2890 = vpop.permute.xlu0 %2889
      %v2891 = vsel %vm1073, %v2872, %v2874
      %v2892 = vsel %vm1073, %v2874, %v2876
      %v2893 = vsel %vm1073, %v2876, %v2878
      %v2894 = vsel %vm1073, %v2878, %v2880
      %v2895 = vsel %vm1073, %v2882, %v2884
      %v2896 = vsel %vm1073, %v2884, %v2886
      %v2897 = vsel %vm1073, %v2886, %v2888
      %v2898 = vsel %vm1073, %v2888, %v2890
      %2907 = vst [vmem:[#allocation4 + $0x580] sm:$0xff] %v2891
      %2908 = vst [vmem:[#allocation4 + $0x588] sm:$0xff] %v2892
      %2909 = vst [vmem:[#allocation4 + $0x590] sm:$0xff] %v2893
      %2910 = vst [vmem:[#allocation4 + $0x598] sm:$0xff] %v2894
      %2911 = vst [vmem:[#allocation4 + $0x5a0] sm:$0xff] %v2895
      %2912 = vst [vmem:[#allocation4 + $0x5a8] sm:$0xff] %v2896
      %2913 = vst [vmem:[#allocation4 + $0x5b0] sm:$0xff] %v2897
      %2914 = vst [vmem:[#allocation4 + $0x5b8] sm:$0xff] %v2898
      %v2915 = vld [vmem:[#allocation3 + $0x8] sm:$0xff]
      %v2916 = vld [vmem:[#allocation3 + $0x10] sm:$0xff]
      %v2917 = vld [vmem:[#allocation3 + $0x18] sm:$0xff]
      %v2918 = vld [vmem:[#allocation3 + $0x20] sm:$0xff]
      %v2919 = vld [vmem:[#allocation3 + $0x28] sm:$0xff]
      %v2920 = vld [vmem:[#allocation3 + $0x38] sm:$0xff]
      %v2921 = vld [vmem:[#allocation3 + $0x40] sm:$0xff]
      %v2922 = vld [vmem:[#allocation3 + $0x48] sm:$0xff]
      %v2923 = vld [vmem:[#allocation3 + $0x50] sm:$0xff]
      %v2924 = vld [vmem:[#allocation3 + $0x58] sm:$0xff]
      %2935 = vrot.lane.b32.xlu0 %v2915, 87
      %v2936 = vpop.permute.xlu0 %2935
      %2937 = vrot.lane.b32.xlu0 %v2916, 87
      %v2938 = vpop.permute.xlu0 %2937
      %2939 = vrot.lane.b32.xlu0 %v2917, 87
      %v2940 = vpop.permute.xlu0 %2939
      %2941 = vrot.lane.b32.xlu0 %v2918, 87
      %v2942 = vpop.permute.xlu0 %2941
      %2943 = vrot.lane.b32.xlu0 %v2919, 87
      %v2944 = vpop.permute.xlu0 %2943
      %2945 = vrot.lane.b32.xlu0 %v2920, 87
      %v2946 = vpop.permute.xlu0 %2945
      %2947 = vrot.lane.b32.xlu0 %v2921, 87
      %v2948 = vpop.permute.xlu0 %2947
      %2949 = vrot.lane.b32.xlu0 %v2922, 87
      %v2950 = vpop.permute.xlu0 %2949
      %2951 = vrot.lane.b32.xlu0 %v2923, 87
      %v2952 = vpop.permute.xlu0 %2951
      %2953 = vrot.lane.b32.xlu0 %v2924, 87
      %v2954 = vpop.permute.xlu0 %2953
      %v2955 = vsel %vm1106, %v2936, %v2938
      %v2956 = vsel %vm1106, %v2938, %v2940
      %v2957 = vsel %vm1106, %v2940, %v2942
      %v2958 = vsel %vm1106, %v2942, %v2944
      %v2959 = vsel %vm1106, %v2946, %v2948
      %v2960 = vsel %vm1106, %v2948, %v2950
      %v2961 = vsel %vm1106, %v2950, %v2952
      %v2962 = vsel %vm1106, %v2952, %v2954
      %2971 = vst [vmem:[#allocation4 + $0x5c0] sm:$0xff] %v2955
      %2972 = vst [vmem:[#allocation4 + $0x5c8] sm:$0xff] %v2956
      %2973 = vst [vmem:[#allocation4 + $0x5d0] sm:$0xff] %v2957
      %2974 = vst [vmem:[#allocation4 + $0x5d8] sm:$0xff] %v2958
      %2975 = vst [vmem:[#allocation4 + $0x5e0] sm:$0xff] %v2959
      %2976 = vst [vmem:[#allocation4 + $0x5e8] sm:$0xff] %v2960
      %2977 = vst [vmem:[#allocation4 + $0x5f0] sm:$0xff] %v2961
      %2978 = vst [vmem:[#allocation4 + $0x5f8] sm:$0xff] %v2962
      %v2979 = vld [vmem:[#allocation3 + $0x8] sm:$0xff]
      %v2980 = vld [vmem:[#allocation3 + $0x10] sm:$0xff]
      %v2981 = vld [vmem:[#allocation3 + $0x18] sm:$0xff]
      %v2982 = vld [vmem:[#allocation3 + $0x20] sm:$0xff]
      %v2983 = vld [vmem:[#allocation3 + $0x28] sm:$0xff]
      %v2984 = vld [vmem:[#allocation3 + $0x38] sm:$0xff]
      %v2985 = vld [vmem:[#allocation3 + $0x40] sm:$0xff]
      %v2986 = vld [vmem:[#allocation3 + $0x48] sm:$0xff]
      %v2987 = vld [vmem:[#allocation3 + $0x50] sm:$0xff]
      %v2988 = vld [vmem:[#allocation3 + $0x58] sm:$0xff]
      %2999 = vrot.lane.b32.xlu0 %v2979, 86
      %v3000 = vpop.permute.xlu0 %2999
      %3001 = vrot.lane.b32.xlu0 %v2980, 86
      %v3002 = vpop.permute.xlu0 %3001
      %3003 = vrot.lane.b32.xlu0 %v2981, 86
      %v3004 = vpop.permute.xlu0 %3003
      %3005 = vrot.lane.b32.xlu0 %v2982, 86
      %v3006 = vpop.permute.xlu0 %3005
      %3007 = vrot.lane.b32.xlu0 %v2983, 86
      %v3008 = vpop.permute.xlu0 %3007
      %3009 = vrot.lane.b32.xlu0 %v2984, 86
      %v3010 = vpop.permute.xlu0 %3009
      %3011 = vrot.lane.b32.xlu0 %v2985, 86
      %v3012 = vpop.permute.xlu0 %3011
      %3013 = vrot.lane.b32.xlu0 %v2986, 86
      %v3014 = vpop.permute.xlu0 %3013
      %3015 = vrot.lane.b32.xlu0 %v2987, 86
      %v3016 = vpop.permute.xlu0 %3015
      %3017 = vrot.lane.b32.xlu0 %v2988, 86
      %v3018 = vpop.permute.xlu0 %3017
      %v3019 = vsel %vm1139, %v3000, %v3002
      %v3020 = vsel %vm1139, %v3002, %v3004
      %v3021 = vsel %vm1139, %v3004, %v3006
      %v3022 = vsel %vm1139, %v3006, %v3008
      %v3023 = vsel %vm1139, %v3010, %v3012
      %v3024 = vsel %vm1139, %v3012, %v3014
      %v3025 = vsel %vm1139, %v3014, %v3016
      %v3026 = vsel %vm1139, %v3016, %v3018
      %3035 = vst [vmem:[#allocation4 + $0x600] sm:$0xff] %v3019
      %3036 = vst [vmem:[#allocation4 + $0x608] sm:$0xff] %v3020
      %3037 = vst [vmem:[#allocation4 + $0x610] sm:$0xff] %v3021
      %3038 = vst [vmem:[#allocation4 + $0x618] sm:$0xff] %v3022
      %3039 = vst [vmem:[#allocation4 + $0x620] sm:$0xff] %v3023
      %3040 = vst [vmem:[#allocation4 + $0x628] sm:$0xff] %v3024
      %3041 = vst [vmem:[#allocation4 + $0x630] sm:$0xff] %v3025
      %3042 = vst [vmem:[#allocation4 + $0x638] sm:$0xff] %v3026
      %v3043 = vld [vmem:[%s5] sm:$0xff]
      %v3044 = vld [vmem:[%s5 + $0x8] sm:$0xff]
      %v3045 = vld [vmem:[%s5 + $0x10] sm:$0xff]
      %v3046 = vld [vmem:[%s5 + $0x18] sm:$0xff]
      %v3047 = vld [vmem:[%s5 + $0x20] sm:$0xff]
      %v3048 = vld [vmem:[%s5 + $0x28] sm:$0xff]
      %v3049 = vld [vmem:[%s5 + $0x30] sm:$0xff]
      %v3050 = vld [vmem:[%s5 + $0x38] sm:$0xff]
      %v3051 = vld [vmem:[%s5 + $0x40] sm:$0xff]
      %v3052 = vld [vmem:[%s5 + $0x48] sm:$0xff]
      %v3053 = vld [vmem:[%s5 + $0x50] sm:$0xff]
      %v3054 = vld [vmem:[%s5 + $0x58] sm:$0xff]
      %v3055 = vld [vmem:[%s5 + $0x60] sm:$0xff]
      %v3056 = vld [vmem:[%s5 + $0x68] sm:$0xff]
      %v3057 = vld [vmem:[%s5 + $0x70] sm:$0xff]
      %v3058 = vld [vmem:[%s5 + $0x78] sm:$0xff]
      %v3059 = vld [vmem:[#allocation4] sm:$0xff]
      %v3060 = vld [vmem:[#allocation4 + $0x8] sm:$0xff]
      %v3061 = vld [vmem:[#allocation4 + $0x10] sm:$0xff]
      %v3062 = vld [vmem:[#allocation4 + $0x18] sm:$0xff]
      %v3063 = vld [vmem:[#allocation4 + $0x20] sm:$0xff]
      %v3064 = vld [vmem:[#allocation4 + $0x28] sm:$0xff]
      %v3065 = vld [vmem:[#allocation4 + $0x30] sm:$0xff]
      %v3066 = vld [vmem:[#allocation4 + $0x38] sm:$0xff]
      %v3067 = vld [vmem:[#allocation4 + $0x40] sm:$0xff]
      %v3068 = vld [vmem:[#allocation4 + $0x48] sm:$0xff]
      %v3069 = vld [vmem:[#allocation4 + $0x50] sm:$0xff]
      %v3070 = vld [vmem:[#allocation4 + $0x58] sm:$0xff]
      %v3071 = vld [vmem:[#allocation4 + $0x60] sm:$0xff]
      %v3072 = vld [vmem:[#allocation4 + $0x68] sm:$0xff]
      %v3073 = vld [vmem:[#allocation4 + $0x70] sm:$0xff]
      %v3074 = vld [vmem:[#allocation4 + $0x78] sm:$0xff]
      %v3075 = vld [vmem:[#allocation4 + $0x80] sm:$0xff]
      %v3076 = vld [vmem:[#allocation4 + $0x88] sm:$0xff]
      %v3077 = vld [vmem:[#allocation4 + $0x90] sm:$0xff]
      %v3078 = vld [vmem:[#allocation4 + $0x98] sm:$0xff]
      %v3079 = vld [vmem:[#allocation4 + $0xa0] sm:$0xff]
      %v3080 = vld [vmem:[#allocation4 + $0xa8] sm:$0xff]
      %v3081 = vld [vmem:[#allocation4 + $0xb0] sm:$0xff]
      %v3082 = vld [vmem:[#allocation4 + $0xb8] sm:$0xff]
      %v3083 = vld [vmem:[#allocation4 + $0xc0] sm:$0xff]
      %v3084 = vld [vmem:[#allocation4 + $0xc8] sm:$0xff]
      %v3085 = vld [vmem:[#allocation4 + $0xd0] sm:$0xff]
      %v3086 = vld [vmem:[#allocation4 + $0xd8] sm:$0xff]
      %v3087 = vld [vmem:[#allocation4 + $0xe0] sm:$0xff]
      %v3088 = vld [vmem:[#allocation4 + $0xe8] sm:$0xff]
      %v3089 = vld [vmem:[#allocation4 + $0xf0] sm:$0xff]
      %v3090 = vld [vmem:[#allocation4 + $0xf8] sm:$0xff]
      %v3091 = vld [vmem:[#allocation4 + $0x100] sm:$0xff]
      %v3092 = vld [vmem:[#allocation4 + $0x108] sm:$0xff]
      %v3093 = vld [vmem:[#allocation4 + $0x110] sm:$0xff]
      %v3094 = vld [vmem:[#allocation4 + $0x118] sm:$0xff]
      %v3095 = vld [vmem:[#allocation4 + $0x120] sm:$0xff]
      %v3096 = vld [vmem:[#allocation4 + $0x128] sm:$0xff]
      %v3097 = vld [vmem:[#allocation4 + $0x130] sm:$0xff]
      %v3098 = vld [vmem:[#allocation4 + $0x138] sm:$0xff]
      %v3099 = vld [vmem:[#allocation4 + $0x140] sm:$0xff]
      %v3100 = vld [vmem:[#allocation4 + $0x148] sm:$0xff]
      %v3101 = vld [vmem:[#allocation4 + $0x150] sm:$0xff]
      %v3102 = vld [vmem:[#allocation4 + $0x158] sm:$0xff]
      %v3103 = vld [vmem:[#allocation4 + $0x160] sm:$0xff]
      %v3104 = vld [vmem:[#allocation4 + $0x168] sm:$0xff]
      %v3105 = vld [vmem:[#allocation4 + $0x170] sm:$0xff]
      %v3106 = vld [vmem:[#allocation4 + $0x178] sm:$0xff]
      %v3107 = vld [vmem:[#allocation4 + $0x180] sm:$0xff]
      %v3108 = vld [vmem:[#allocation4 + $0x188] sm:$0xff]
      %v3109 = vld [vmem:[#allocation4 + $0x190] sm:$0xff]
      %v3110 = vld [vmem:[#allocation4 + $0x198] sm:$0xff]
      %v3111 = vld [vmem:[#allocation4 + $0x1a0] sm:$0xff]
      %v3112 = vld [vmem:[#allocation4 + $0x1a8] sm:$0xff]
      %v3113 = vld [vmem:[#allocation4 + $0x1b0] sm:$0xff]
      %v3114 = vld [vmem:[#allocation4 + $0x1b8] sm:$0xff]
      %v3115 = vld [vmem:[#allocation4 + $0x1c0] sm:$0xff]
      %v3116 = vld [vmem:[#allocation4 + $0x1c8] sm:$0xff]
      %v3117 = vld [vmem:[#allocation4 + $0x1d0] sm:$0xff]
      %v3118 = vld [vmem:[#allocation4 + $0x1d8] sm:$0xff]
      %v3119 = vld [vmem:[#allocation4 + $0x1e0] sm:$0xff]
      %v3120 = vld [vmem:[#allocation4 + $0x1e8] sm:$0xff]
      %v3121 = vld [vmem:[#allocation4 + $0x1f0] sm:$0xff]
      %v3122 = vld [vmem:[#allocation4 + $0x1f8] sm:$0xff]
      %v3123 = vld [vmem:[#allocation4 + $0x200] sm:$0xff]
      %v3124 = vld [vmem:[#allocation4 + $0x208] sm:$0xff]
      %v3125 = vld [vmem:[#allocation4 + $0x210] sm:$0xff]
      %v3126 = vld [vmem:[#allocation4 + $0x218] sm:$0xff]
      %v3127 = vld [vmem:[#allocation4 + $0x220] sm:$0xff]
      %v3128 = vld [vmem:[#allocation4 + $0x228] sm:$0xff]
      %v3129 = vld [vmem:[#allocation4 + $0x230] sm:$0xff]
      %v3130 = vld [vmem:[#allocation4 + $0x238] sm:$0xff]
      %v3131 = vld [vmem:[#allocation4 + $0x240] sm:$0xff]
      %v3132 = vld [vmem:[#allocation4 + $0x248] sm:$0xff]
      %v3133 = vld [vmem:[#allocation4 + $0x250] sm:$0xff]
      %v3134 = vld [vmem:[#allocation4 + $0x258] sm:$0xff]
      %v3135 = vld [vmem:[#allocation4 + $0x260] sm:$0xff]
      %v3136 = vld [vmem:[#allocation4 + $0x268] sm:$0xff]
      %v3137 = vld [vmem:[#allocation4 + $0x270] sm:$0xff]
      %v3138 = vld [vmem:[#allocation4 + $0x278] sm:$0xff]
      %v3139 = vld [vmem:[#allocation4 + $0x280] sm:$0xff]
      %v3140 = vld [vmem:[#allocation4 + $0x288] sm:$0xff]
      %v3141 = vld [vmem:[#allocation4 + $0x290] sm:$0xff]
      %v3142 = vld [vmem:[#allocation4 + $0x298] sm:$0xff]
      %v3143 = vld [vmem:[#allocation4 + $0x2a0] sm:$0xff]
      %v3144 = vld [vmem:[#allocation4 + $0x2a8] sm:$0xff]
      %v3145 = vld [vmem:[#allocation4 + $0x2b0] sm:$0xff]
      %v3146 = vld [vmem:[#allocation4 + $0x2b8] sm:$0xff]
      %v3147 = vld [vmem:[#allocation4 + $0x2c0] sm:$0xff]
      %v3148 = vld [vmem:[#allocation4 + $0x2c8] sm:$0xff]
      %v3149 = vld [vmem:[#allocation4 + $0x2d0] sm:$0xff]
      %v3150 = vld [vmem:[#allocation4 + $0x2d8] sm:$0xff]
      %v3151 = vld [vmem:[#allocation4 + $0x2e0] sm:$0xff]
      %v3152 = vld [vmem:[#allocation4 + $0x2e8] sm:$0xff]
      %v3153 = vld [vmem:[#allocation4 + $0x2f0] sm:$0xff]
      %v3154 = vld [vmem:[#allocation4 + $0x2f8] sm:$0xff]
      %v3155 = vld [vmem:[#allocation4 + $0x300] sm:$0xff]
      %v3156 = vld [vmem:[#allocation4 + $0x308] sm:$0xff]
      %v3157 = vld [vmem:[#allocation4 + $0x310] sm:$0xff]
      %v3158 = vld [vmem:[#allocation4 + $0x318] sm:$0xff]
      %v3159 = vld [vmem:[#allocation4 + $0x320] sm:$0xff]
      %v3160 = vld [vmem:[#allocation4 + $0x328] sm:$0xff]
      %v3161 = vld [vmem:[#allocation4 + $0x330] sm:$0xff]
      %v3162 = vld [vmem:[#allocation4 + $0x338] sm:$0xff]
      %v3163 = vld [vmem:[#allocation4 + $0x340] sm:$0xff]
      %v3164 = vld [vmem:[#allocation4 + $0x348] sm:$0xff]
      %v3165 = vld [vmem:[#allocation4 + $0x350] sm:$0xff]
      %v3166 = vld [vmem:[#allocation4 + $0x358] sm:$0xff]
      %v3167 = vld [vmem:[#allocation4 + $0x360] sm:$0xff]
      %v3168 = vld [vmem:[#allocation4 + $0x368] sm:$0xff]
      %v3169 = vld [vmem:[#allocation4 + $0x370] sm:$0xff]
      %v3170 = vld [vmem:[#allocation4 + $0x378] sm:$0xff]
      %v3171 = vld [vmem:[#allocation4 + $0x380] sm:$0xff]
      %v3172 = vld [vmem:[#allocation4 + $0x388] sm:$0xff]
      %v3173 = vld [vmem:[#allocation4 + $0x390] sm:$0xff]
      %v3174 = vld [vmem:[#allocation4 + $0x398] sm:$0xff]
      %v3175 = vld [vmem:[#allocation4 + $0x3a0] sm:$0xff]
      %v3176 = vld [vmem:[#allocation4 + $0x3a8] sm:$0xff]
      %v3177 = vld [vmem:[#allocation4 + $0x3b0] sm:$0xff]
      %v3178 = vld [vmem:[#allocation4 + $0x3b8] sm:$0xff]
      %v3179 = vld [vmem:[#allocation4 + $0x3c0] sm:$0xff]
      %v3180 = vld [vmem:[#allocation4 + $0x3c8] sm:$0xff]
      %v3181 = vld [vmem:[#allocation4 + $0x3d0] sm:$0xff]
      %v3182 = vld [vmem:[#allocation4 + $0x3d8] sm:$0xff]
      %v3183 = vld [vmem:[#allocation4 + $0x3e0] sm:$0xff]
      %v3184 = vld [vmem:[#allocation4 + $0x3e8] sm:$0xff]
      %v3185 = vld [vmem:[#allocation4 + $0x3f0] sm:$0xff]
      %v3186 = vld [vmem:[#allocation4 + $0x3f8] sm:$0xff]
      %v3187 = vld [vmem:[#allocation4 + $0x400] sm:$0xff]
      %v3188 = vld [vmem:[#allocation4 + $0x408] sm:$0xff]
      %v3189 = vld [vmem:[#allocation4 + $0x410] sm:$0xff]
      %v3190 = vld [vmem:[#allocation4 + $0x418] sm:$0xff]
      %v3191 = vld [vmem:[#allocation4 + $0x420] sm:$0xff]
      %v3192 = vld [vmem:[#allocation4 + $0x428] sm:$0xff]
      %v3193 = vld [vmem:[#allocation4 + $0x430] sm:$0xff]
      %v3194 = vld [vmem:[#allocation4 + $0x438] sm:$0xff]
      %v3195 = vld [vmem:[#allocation4 + $0x440] sm:$0xff]
      %v3196 = vld [vmem:[#allocation4 + $0x448] sm:$0xff]
      %v3197 = vld [vmem:[#allocation4 + $0x450] sm:$0xff]
      %v3198 = vld [vmem:[#allocation4 + $0x458] sm:$0xff]
      %v3199 = vld [vmem:[#allocation4 + $0x460] sm:$0xff]
      %v3200 = vld [vmem:[#allocation4 + $0x468] sm:$0xff]
      %v3201 = vld [vmem:[#allocation4 + $0x470] sm:$0xff]
      %v3202 = vld [vmem:[#allocation4 + $0x478] sm:$0xff]
      %v3203 = vld [vmem:[#allocation4 + $0x480] sm:$0xff]
      %v3204 = vld [vmem:[#allocation4 + $0x488] sm:$0xff]
      %v3205 = vld [vmem:[#allocation4 + $0x490] sm:$0xff]
      %v3206 = vld [vmem:[#allocation4 + $0x498] sm:$0xff]
      %v3207 = vld [vmem:[#allocation4 + $0x4a0] sm:$0xff]
      %v3208 = vld [vmem:[#allocation4 + $0x4a8] sm:$0xff]
      %v3209 = vld [vmem:[#allocation4 + $0x4b0] sm:$0xff]
      %v3210 = vld [vmem:[#allocation4 + $0x4b8] sm:$0xff]
      %v3211 = vld [vmem:[#allocation4 + $0x4c0] sm:$0xff]
      %v3212 = vld [vmem:[#allocation4 + $0x4c8] sm:$0xff]
      %v3213 = vld [vmem:[#allocation4 + $0x4d0] sm:$0xff]
      %v3214 = vld [vmem:[#allocation4 + $0x4d8] sm:$0xff]
      %v3215 = vld [vmem:[#allocation4 + $0x4e0] sm:$0xff]
      %v3216 = vld [vmem:[#allocation4 + $0x4e8] sm:$0xff]
      %v3217 = vld [vmem:[#allocation4 + $0x4f0] sm:$0xff]
      %v3218 = vld [vmem:[#allocation4 + $0x4f8] sm:$0xff]
      %v3219 = vld [vmem:[#allocation4 + $0x500] sm:$0xff]
      %v3220 = vld [vmem:[#allocation4 + $0x508] sm:$0xff]
      %v3221 = vld [vmem:[#allocation4 + $0x510] sm:$0xff]
      %v3222 = vld [vmem:[#allocation4 + $0x518] sm:$0xff]
      %v3223 = vld [vmem:[#allocation4 + $0x520] sm:$0xff]
      %v3224 = vld [vmem:[#allocation4 + $0x528] sm:$0xff]
      %v3225 = vld [vmem:[#allocation4 + $0x530] sm:$0xff]
      %v3226 = vld [vmem:[#allocation4 + $0x538] sm:$0xff]
      %v3227 = vld [vmem:[#allocation4 + $0x540] sm:$0xff]
      %v3228 = vld [vmem:[#allocation4 + $0x548] sm:$0xff]
      %v3229 = vld [vmem:[#allocation4 + $0x550] sm:$0xff]
      %v3230 = vld [vmem:[#allocation4 + $0x558] sm:$0xff]
      %v3231 = vld [vmem:[#allocation4 + $0x560] sm:$0xff]
      %v3232 = vld [vmem:[#allocation4 + $0x568] sm:$0xff]
      %v3233 = vld [vmem:[#allocation4 + $0x570] sm:$0xff]
      %v3234 = vld [vmem:[#allocation4 + $0x578] sm:$0xff]
      %v3235 = vld [vmem:[#allocation4 + $0x580] sm:$0xff]
      %v3236 = vld [vmem:[#allocation4 + $0x588] sm:$0xff]
      %v3237 = vld [vmem:[#allocation4 + $0x590] sm:$0xff]
      %v3238 = vld [vmem:[#allocation4 + $0x598] sm:$0xff]
      %v3239 = vld [vmem:[#allocation4 + $0x5a0] sm:$0xff]
      %v3240 = vld [vmem:[#allocation4 + $0x5a8] sm:$0xff]
      %v3241 = vld [vmem:[#allocation4 + $0x5b0] sm:$0xff]
      %v3242 = vld [vmem:[#allocation4 + $0x5b8] sm:$0xff]
      %v3243 = vld [vmem:[#allocation4 + $0x5c0] sm:$0xff]
      %v3244 = vld [vmem:[#allocation4 + $0x5c8] sm:$0xff]
      %v3245 = vld [vmem:[#allocation4 + $0x5d0] sm:$0xff]
      %v3246 = vld [vmem:[#allocation4 + $0x5d8] sm:$0xff]
      %v3247 = vld [vmem:[#allocation4 + $0x5e0] sm:$0xff]
      %v3248 = vld [vmem:[#allocation4 + $0x5e8] sm:$0xff]
      %v3249 = vld [vmem:[#allocation4 + $0x5f0] sm:$0xff]
      %v3250 = vld [vmem:[#allocation4 + $0x5f8] sm:$0xff]
      %v3251 = vld [vmem:[#allocation4 + $0x600] sm:$0xff]
      %v3252 = vld [vmem:[#allocation4 + $0x608] sm:$0xff]
      %v3253 = vld [vmem:[#allocation4 + $0x610] sm:$0xff]
      %v3254 = vld [vmem:[#allocation4 + $0x618] sm:$0xff]
      %v3255 = vld [vmem:[#allocation4 + $0x620] sm:$0xff]
      %v3256 = vld [vmem:[#allocation4 + $0x628] sm:$0xff]
      %v3257 = vld [vmem:[#allocation4 + $0x630] sm:$0xff]
      %v3258 = vld [vmem:[#allocation4 + $0x638] sm:$0xff]
      %v3259 = vld [vmem:[%s6] sm:$0xff]
      %v3260 = vld [vmem:[%s6 + $0x8] sm:$0xff]
      %v3261 = vld [vmem:[%s6 + $0x10] sm:$0xff]
      %v3262 = vld [vmem:[%s6 + $0x18] sm:$0xff]
      %3264 = vset.pattern.permute.xlu0 0
      %3265 = vperm.xlu0 %3264, %v3259
      %v3266 = vpop.permute.xlu0 %3265
      %3269 = vset.pattern.permute.xlu0 0
      %3270 = vperm.xlu0 %3269, %v3260
      %v3271 = vpop.permute.xlu0 %3270
      %3274 = vset.pattern.permute.xlu0 0
      %3275 = vperm.xlu0 %3274, %v3261
      %v3276 = vpop.permute.xlu0 %3275
      %3279 = vset.pattern.permute.xlu0 0
      %3280 = vperm.xlu0 %3279, %v3262
      %v3281 = vpop.permute.xlu0 %3280
      %vm3283 = vcmask 130048
      %v3285 = vsel %vm3283, %v3046, 0
      %v3288 = vsel %vm3283, %v3050, 0
      %v3291 = vsel %vm3283, %v3054, 0
      %v3294 = vsel %vm3283, %v3058, 0
      %3296 = vmatprep.subr.mxu0 %v3120
      %3297 = vmatpush1.msra.mxu0 %v3119
      %3298 = vmatprep.subr.mxu0 %v3116
      %3299 = vmatpush1.msra.mxu0 %v3115
      %3300 = vmatprep.subr.mxu0 %v3112
      %3301 = vmatpush1.msra.mxu0 %v3111
      %3302 = vmatprep.subr.mxu0 %v3108
      %3303 = vmatpush1.msra.mxu0 %v3107
      %3304 = vmatprep.subr.mxu0 %v3104
      %3305 = vmatpush1.msra.mxu0 %v3103
      %3306 = vmatprep.subr.mxu0 %v3100
      %3307 = vmatpush1.msra.mxu0 %v3099
      %3308 = vmatprep.subr.mxu0 %v3096
      %3309 = vmatpush1.msra.mxu0 %v3095
      %3310 = vmatprep.subr.mxu0 %v3092
      %3311 = vmatpush1.msra.mxu0 %v3091
      %3312 = vmatprep.subr.mxu0 %v3088
      %3313 = vmatpush1.msra.mxu0 %v3087
      %3314 = vmatprep.subr.mxu0 %v3084
      %3315 = vmatpush1.msra.mxu0 %v3083
      %3316 = vmatprep.subr.mxu0 %v3080
      %3317 = vmatpush1.msra.mxu0 %v3079
      %3318 = vmatprep.subr.mxu0 %v3076
      %3319 = vmatpush1.msra.mxu0 %v3075
      %3320 = vmatprep.subr.mxu0 %v3072
      %3321 = vmatpush1.msra.mxu0 %v3071
      %3322 = vmatprep.subr.mxu0 %v3068
      %3323 = vmatpush1.msra.mxu0 %v3067
      %3324 = vmatprep.subr.mxu0 %v3064
      %3325 = vmatpush1.msra.mxu0 %v3063
      %3326 = vmatprep.subr.mxu0 %v3060
      %3327 = vmatpush1.msra.mxu0 %v3059
      %3328 = vmatprep.subr.mxu0 %v3184
      %3329 = vmatpush2.msra.mxu0 %v3183
      %3330 = vmatprep.subr.mxu0 %v3180
      %3331 = vmatpush2.msra.mxu0 %v3179
      %3332 = vmatprep.subr.mxu0 %v3176
      %3333 = vmatpush2.msra.mxu0 %v3175
      %3334 = vmatprep.subr.mxu0 %v3172
      %3335 = vmatpush2.msra.mxu0 %v3171
      %3336 = vmatprep.subr.mxu0 %v3168
      %3337 = vmatpush2.msra.mxu0 %v3167
      %3338 = vmatprep.subr.mxu0 %v3164
      %3339 = vmatpush2.msra.mxu0 %v3163
      %3340 = vmatprep.subr.mxu0 %v3160
      %3341 = vmatpush2.msra.mxu0 %v3159
      %3342 = vmatprep.subr.mxu0 %v3156
      %3343 = vmatpush2.msra.mxu0 %v3155
      %3344 = vmatprep.subr.mxu0 %v3152
      %3345 = vmatpush2.msra.mxu0 %v3151
      %3346 = vmatprep.subr.mxu0 %v3148
      %3347 = vmatpush2.msra.mxu0 %v3147
      %3348 = vmatprep.subr.mxu0 %v3144
      %3349 = vmatpush2.msra.mxu0 %v3143
      %3350 = vmatprep.subr.mxu0 %v3140
      %3351 = vmatpush2.msra.mxu0 %v3139
      %3352 = vmatprep.subr.mxu0 %v3136
      %3353 = vmatpush2.msra.mxu0 %v3135
      %3354 = vmatprep.subr.mxu0 %v3132
      %3355 = vmatpush2.msra.mxu0 %v3131
      %3356 = vmatprep.subr.mxu0 %v3128
      %3357 = vmatpush2.msra.mxu0 %v3127
      %3358 = vmatprep.subr.mxu0 %v3124
      %3359 = vmatpush2.msra.mxu0 %v3123
      %3360 = vmatprep.mubr.f32.mxu0 %v3044
      %3361 = vmatmul.mubr.f32.gmra.mxu0 %v3043
      %v3362 = vpop.f32.mrf.mxu0
      %v3363 = vadd.f32 %v3266, %v3362
      %v3364 = vpop.f32.mrf.mxu0
      %v3365 = vadd.f32 %v3266, %v3364
      %3366 = vmatprep.mubr.f32.mxu0 %v3048
      %3367 = vmatmul.mubr.f32.gmra.mxu0 %v3047
      %v3368 = vpop.f32.mrf.mxu0
      %v3369 = vadd.f32 %v3271, %v3368
      %v3370 = vpop.f32.mrf.mxu0
      %v3371 = vadd.f32 %v3271, %v3370
      %3372 = vmatprep.mubr.f32.mxu0 %v3052
      %3373 = vmatmul.mubr.f32.gmra.mxu0 %v3051
      %v3374 = vpop.f32.mrf.mxu0
      %v3375 = vadd.f32 %v3276, %v3374
      %v3376 = vpop.f32.mrf.mxu0
      %v3377 = vadd.f32 %v3276, %v3376
      %3378 = vmatprep.mubr.f32.mxu0 %v3056
      %3379 = vmatmul.mubr.f32.gmra.mxu0 %v3055
      %v3380 = vpop.f32.mrf.mxu0
      %v3381 = vadd.f32 %v3281, %v3380
      %v3382 = vpop.f32.mrf.mxu0
      %v3383 = vadd.f32 %v3281, %v3382
      %3384 = vdwg.mxu0
      %3385 = vmatprep.subr.mxu0 %v3248
      %3386 = vmatpush1.msra.mxu0 %v3247
      %3387 = vmatprep.subr.mxu0 %v3244
      %3388 = vmatpush1.msra.mxu0 %v3243
      %3389 = vmatprep.subr.mxu0 %v3240
      %3390 = vmatpush1.msra.mxu0 %v3239
      %3391 = vmatprep.subr.mxu0 %v3236
      %3392 = vmatpush1.msra.mxu0 %v3235
      %3393 = vmatprep.subr.mxu0 %v3232
      %3394 = vmatpush1.msra.mxu0 %v3231
      %3395 = vmatprep.subr.mxu0 %v3228
      %3396 = vmatpush1.msra.mxu0 %v3227
      %3397 = vmatprep.subr.mxu0 %v3224
      %3398 = vmatpush1.msra.mxu0 %v3223
      %3399 = vmatprep.subr.mxu0 %v3220
      %3400 = vmatpush1.msra.mxu0 %v3219
      %3401 = vmatprep.subr.mxu0 %v3216
      %3402 = vmatpush1.msra.mxu0 %v3215
      %3403 = vmatprep.subr.mxu0 %v3212
      %3404 = vmatpush1.msra.mxu0 %v3211
      %3405 = vmatprep.subr.mxu0 %v3208
      %3406 = vmatpush1.msra.mxu0 %v3207
      %3407 = vmatprep.subr.mxu0 %v3204
      %3408 = vmatpush1.msra.mxu0 %v3203
      %3409 = vmatprep.subr.mxu0 %v3200
      %3410 = vmatpush1.msra.mxu0 %v3199
      %3411 = vmatprep.subr.mxu0 %v3196
      %3412 = vmatpush1.msra.mxu0 %v3195
      %3413 = vmatprep.subr.mxu0 %v3192
      %3414 = vmatpush1.msra.mxu0 %v3191
      %3415 = vmatprep.subr.mxu0 %v3188
      %3416 = vmatpush1.msra.mxu0 %v3187
      %3417 = vmatprep.subr.mxu0 0.0
      %3418 = vmatpush2.msra.mxu0 0.0
      %3419 = vmatprep.subr.mxu0 0.0
      %3420 = vmatpush2.msra.mxu0 0.0
      %3421 = vmatprep.subr.mxu0 0.0
      %3422 = vmatpush2.msra.mxu0 0.0
      %3423 = vmatprep.subr.mxu0 0.0
      %3424 = vmatpush2.msra.mxu0 0.0
      %3425 = vmatprep.subr.mxu0 0.0
      %3426 = vmatpush2.msra.mxu0 0.0
      %3427 = vmatprep.subr.mxu0 0.0
      %3428 = vmatpush2.msra.mxu0 0.0
      %3429 = vmatprep.subr.mxu0 0.0
      %3430 = vmatpush2.msra.mxu0 0.0
      %3431 = vmatprep.subr.mxu0 0.0
      %3432 = vmatpush2.msra.mxu0 0.0
      %3433 = vmatprep.subr.mxu0 0.0
      %3434 = vmatpush2.msra.mxu0 0.0
      %3435 = vmatprep.subr.mxu0 0.0
      %3436 = vmatpush2.msra.mxu0 0.0
      %3437 = vmatprep.subr.mxu0 0.0
      %3438 = vmatpush2.msra.mxu0 0.0
      %3439 = vmatprep.subr.mxu0 0.0
      %3440 = vmatpush2.msra.mxu0 0.0
      %3441 = vmatprep.subr.mxu0 0.0
      %3442 = vmatpush2.msra.mxu0 0.0
      %3443 = vmatprep.subr.mxu0 0.0
      %3444 = vmatpush2.msra.mxu0 0.0
      %3445 = vmatprep.subr.mxu0 %v3256
      %3446 = vmatpush2.msra.mxu0 %v3255
      %3447 = vmatprep.subr.mxu0 %v3252
      %3448 = vmatpush2.msra.mxu0 %v3251
      %3449 = vmatprep.mubr.f32.mxu0 %v3285
      %3450 = vmatmul.mubr.f32.gmra.mxu0 %v3045
      %v3451 = vpop.f32.mrf.mxu0
      %v3452 = vadd.f32 %v3363, %v3451
      %v3453 = vpop.f32.mrf.mxu0
      %v3454 = vadd.f32 %v3365, %v3453
      %3455 = vmatprep.mubr.f32.mxu0 %v3288
      %3456 = vmatmul.mubr.f32.gmra.mxu0 %v3049
      %v3457 = vpop.f32.mrf.mxu0
      %v3458 = vadd.f32 %v3369, %v3457
      %v3459 = vpop.f32.mrf.mxu0
      %v3460 = vadd.f32 %v3371, %v3459
      %3461 = vmatprep.mubr.f32.mxu0 %v3291
      %3462 = vmatmul.mubr.f32.gmra.mxu0 %v3053
      %v3463 = vpop.f32.mrf.mxu0
      %v3464 = vadd.f32 %v3375, %v3463
      %v3465 = vpop.f32.mrf.mxu0
      %v3466 = vadd.f32 %v3377, %v3465
      %3467 = vmatprep.mubr.f32.mxu0 %v3294
      %3468 = vmatmul.mubr.f32.gmra.mxu0 %v3057
      %v3469 = vpop.f32.mrf.mxu0
      %v3470 = vadd.f32 %v3381, %v3469
      %v3471 = vpop.f32.mrf.mxu0
      %v3472 = vadd.f32 %v3383, %v3471
      %3473 = vdwg.mxu0
      %3474 = vmatprep.subr.mxu0 %v3122
      %3475 = vmatpush1.msra.mxu0 %v3121
      %3476 = vmatprep.subr.mxu0 %v3118
      %3477 = vmatpush1.msra.mxu0 %v3117
      %3478 = vmatprep.subr.mxu0 %v3114
      %3479 = vmatpush1.msra.mxu0 %v3113
      %3480 = vmatprep.subr.mxu0 %v3110
      %3481 = vmatpush1.msra.mxu0 %v3109
      %3482 = vmatprep.subr.mxu0 %v3106
      %3483 = vmatpush1.msra.mxu0 %v3105
      %3484 = vmatprep.subr.mxu0 %v3102
      %3485 = vmatpush1.msra.mxu0 %v3101
      %3486 = vmatprep.subr.mxu0 %v3098
      %3487 = vmatpush1.msra.mxu0 %v3097
      %3488 = vmatprep.subr.mxu0 %v3094
      %3489 = vmatpush1.msra.mxu0 %v3093
      %3490 = vmatprep.subr.mxu0 %v3090
      %3491 = vmatpush1.msra.mxu0 %v3089
      %3492 = vmatprep.subr.mxu0 %v3086
      %3493 = vmatpush1.msra.mxu0 %v3085
      %3494 = vmatprep.subr.mxu0 %v3082
      %3495 = vmatpush1.msra.mxu0 %v3081
      %3496 = vmatprep.subr.mxu0 %v3078
      %3497 = vmatpush1.msra.mxu0 %v3077
      %3498 = vmatprep.subr.mxu0 %v3074
      %3499 = vmatpush1.msra.mxu0 %v3073
      %3500 = vmatprep.subr.mxu0 %v3070
      %3501 = vmatpush1.msra.mxu0 %v3069
      %3502 = vmatprep.subr.mxu0 %v3066
      %3503 = vmatpush1.msra.mxu0 %v3065
      %3504 = vmatprep.subr.mxu0 %v3062
      %3505 = vmatpush1.msra.mxu0 %v3061
      %3506 = vmatprep.subr.mxu0 %v3186
      %3507 = vmatpush2.msra.mxu0 %v3185
      %3508 = vmatprep.subr.mxu0 %v3182
      %3509 = vmatpush2.msra.mxu0 %v3181
      %3510 = vmatprep.subr.mxu0 %v3178
      %3511 = vmatpush2.msra.mxu0 %v3177
      %3512 = vmatprep.subr.mxu0 %v3174
      %3513 = vmatpush2.msra.mxu0 %v3173
      %3514 = vmatprep.subr.mxu0 %v3170
      %3515 = vmatpush2.msra.mxu0 %v3169
      %3516 = vmatprep.subr.mxu0 %v3166
      %3517 = vmatpush2.msra.mxu0 %v3165
      %3518 = vmatprep.subr.mxu0 %v3162
      %3519 = vmatpush2.msra.mxu0 %v3161
      %3520 = vmatprep.subr.mxu0 %v3158
      %3521 = vmatpush2.msra.mxu0 %v3157
      %3522 = vmatprep.subr.mxu0 %v3154
      %3523 = vmatpush2.msra.mxu0 %v3153
      %3524 = vmatprep.subr.mxu0 %v3150
      %3525 = vmatpush2.msra.mxu0 %v3149
      %3526 = vmatprep.subr.mxu0 %v3146
      %3527 = vmatpush2.msra.mxu0 %v3145
      %3528 = vmatprep.subr.mxu0 %v3142
      %3529 = vmatpush2.msra.mxu0 %v3141
      %3530 = vmatprep.subr.mxu0 %v3138
      %3531 = vmatpush2.msra.mxu0 %v3137
      %3532 = vmatprep.subr.mxu0 %v3134
      %3533 = vmatpush2.msra.mxu0 %v3133
      %3534 = vmatprep.subr.mxu0 %v3130
      %3535 = vmatpush2.msra.mxu0 %v3129
      %3536 = vmatprep.subr.mxu0 %v3126
      %3537 = vmatpush2.msra.mxu0 %v3125
      %3538 = vmatprep.mubr.f32.mxu0 %v3044
      %3539 = vmatmul.mubr.f32.gmra.mxu0 %v3043
      %v3540 = vpop.f32.mrf.mxu0
      %v3541 = vadd.f32 %v3266, %v3540
      %v3542 = vpop.f32.mrf.mxu0
      %v3543 = vadd.f32 %v3266, %v3542
      %3544 = vmatprep.mubr.f32.mxu0 %v3048
      %3545 = vmatmul.mubr.f32.gmra.mxu0 %v3047
      %v3546 = vpop.f32.mrf.mxu0
      %v3547 = vadd.f32 %v3271, %v3546
      %v3548 = vpop.f32.mrf.mxu0
      %v3549 = vadd.f32 %v3271, %v3548
      %3550 = vmatprep.mubr.f32.mxu0 %v3052
      %3551 = vmatmul.mubr.f32.gmra.mxu0 %v3051
      %v3552 = vpop.f32.mrf.mxu0
      %v3553 = vadd.f32 %v3276, %v3552
      %v3554 = vpop.f32.mrf.mxu0
      %v3555 = vadd.f32 %v3276, %v3554
      %3556 = vmatprep.mubr.f32.mxu0 %v3056
      %3557 = vmatmul.mubr.f32.gmra.mxu0 %v3055
      %v3558 = vpop.f32.mrf.mxu0
      %v3559 = vadd.f32 %v3281, %v3558
      %v3560 = vpop.f32.mrf.mxu0
      %v3561 = vadd.f32 %v3281, %v3560
      %3562 = vdwg.mxu0
      %3563 = vmatprep.subr.mxu0 %v3250
      %3564 = vmatpush1.msra.mxu0 %v3249
      %3565 = vmatprep.subr.mxu0 %v3246
      %3566 = vmatpush1.msra.mxu0 %v3245
      %3567 = vmatprep.subr.mxu0 %v3242
      %3568 = vmatpush1.msra.mxu0 %v3241
      %3569 = vmatprep.subr.mxu0 %v3238
      %3570 = vmatpush1.msra.mxu0 %v3237
      %3571 = vmatprep.subr.mxu0 %v3234
      %3572 = vmatpush1.msra.mxu0 %v3233
      %3573 = vmatprep.subr.mxu0 %v3230
      %3574 = vmatpush1.msra.mxu0 %v3229
      %3575 = vmatprep.subr.mxu0 %v3226
      %3576 = vmatpush1.msra.mxu0 %v3225
      %3577 = vmatprep.subr.mxu0 %v3222
      %3578 = vmatpush1.msra.mxu0 %v3221
      %3579 = vmatprep.subr.mxu0 %v3218
      %3580 = vmatpush1.msra.mxu0 %v3217
      %3581 = vmatprep.subr.mxu0 %v3214
      %3582 = vmatpush1.msra.mxu0 %v3213
      %3583 = vmatprep.subr.mxu0 %v3210
      %3584 = vmatpush1.msra.mxu0 %v3209
      %3585 = vmatprep.subr.mxu0 %v3206
      %3586 = vmatpush1.msra.mxu0 %v3205
      %3587 = vmatprep.subr.mxu0 %v3202
      %3588 = vmatpush1.msra.mxu0 %v3201
      %3589 = vmatprep.subr.mxu0 %v3198
      %3590 = vmatpush1.msra.mxu0 %v3197
      %3591 = vmatprep.subr.mxu0 %v3194
      %3592 = vmatpush1.msra.mxu0 %v3193
      %3593 = vmatprep.subr.mxu0 %v3190
      %3594 = vmatpush1.msra.mxu0 %v3189
      %3595 = vmatprep.subr.mxu0 0.0
      %3596 = vmatpush2.msra.mxu0 0.0
      %3597 = vmatprep.subr.mxu0 0.0
      %3598 = vmatpush2.msra.mxu0 0.0
      %3599 = vmatprep.subr.mxu0 0.0
      %3600 = vmatpush2.msra.mxu0 0.0
      %3601 = vmatprep.subr.mxu0 0.0
      %3602 = vmatpush2.msra.mxu0 0.0
      %3603 = vmatprep.subr.mxu0 0.0
      %3604 = vmatpush2.msra.mxu0 0.0
      %3605 = vmatprep.subr.mxu0 0.0
      %3606 = vmatpush2.msra.mxu0 0.0
      %3607 = vmatprep.subr.mxu0 0.0
      %3608 = vmatpush2.msra.mxu0 0.0
      %3609 = vmatprep.subr.mxu0 0.0
      %3610 = vmatpush2.msra.mxu0 0.0
      %3611 = vmatprep.subr.mxu0 0.0
      %3612 = vmatpush2.msra.mxu0 0.0
      %3613 = vmatprep.subr.mxu0 0.0
      %3614 = vmatpush2.msra.mxu0 0.0
      %3615 = vmatprep.subr.mxu0 0.0
      %3616 = vmatpush2.msra.mxu0 0.0
      %3617 = vmatprep.subr.mxu0 0.0
      %3618 = vmatpush2.msra.mxu0 0.0
      %3619 = vmatprep.subr.mxu0 0.0
      %3620 = vmatpush2.msra.mxu0 0.0
      %3621 = vmatprep.subr.mxu0 0.0
      %3622 = vmatpush2.msra.mxu0 0.0
      %3623 = vmatprep.subr.mxu0 %v3258
      %3624 = vmatpush2.msra.mxu0 %v3257
      %3625 = vmatprep.subr.mxu0 %v3254
      %3626 = vmatpush2.msra.mxu0 %v3253
      %3627 = vmatprep.mubr.f32.mxu0 %v3285
      %3628 = vmatmul.mubr.f32.gmra.mxu0 %v3045
      %v3629 = vpop.f32.mrf.mxu0
      %v3630 = vadd.f32 %v3541, %v3629
      %v3631 = vpop.f32.mrf.mxu0
      %v3632 = vadd.f32 %v3543, %v3631
      %3633 = vmatprep.mubr.f32.mxu0 %v3288
      %3634 = vmatmul.mubr.f32.gmra.mxu0 %v3049
      %v3635 = vpop.f32.mrf.mxu0
      %v3636 = vadd.f32 %v3547, %v3635
      %v3637 = vpop.f32.mrf.mxu0
      %v3638 = vadd.f32 %v3549, %v3637
      %3639 = vmatprep.mubr.f32.mxu0 %v3291
      %3640 = vmatmul.mubr.f32.gmra.mxu0 %v3053
      %v3641 = vpop.f32.mrf.mxu0
      %v3642 = vadd.f32 %v3553, %v3641
      %v3643 = vpop.f32.mrf.mxu0
      %v3644 = vadd.f32 %v3555, %v3643
      %3645 = vmatprep.mubr.f32.mxu0 %v3294
      %3646 = vmatmul.mubr.f32.gmra.mxu0 %v3057
      %v3647 = vpop.f32.mrf.mxu0
      %v3648 = vadd.f32 %v3559, %v3647
      %v3649 = vpop.f32.mrf.mxu0
      %v3650 = vadd.f32 %v3561, %v3649
      %3651 = vdwg.mxu0
      %vm3652 = vcmp.ge.f32.partialorder %v3452, 0.0
      %vm3653 = vcmp.ge.f32.partialorder %v3454, 0.0
      %vm3654 = vcmp.ge.f32.partialorder %v3630, 0.0
      %vm3655 = vcmp.ge.f32.partialorder %v3632, 0.0
      %vm3656 = vcmp.ge.f32.partialorder %v3458, 0.0
      %vm3657 = vcmp.ge.f32.partialorder %v3460, 0.0
      %vm3658 = vcmp.ge.f32.partialorder %v3636, 0.0
      %vm3659 = vcmp.ge.f32.partialorder %v3638, 0.0
      %vm3660 = vcmp.ge.f32.partialorder %v3464, 0.0
      %vm3661 = vcmp.ge.f32.partialorder %v3466, 0.0
      %vm3662 = vcmp.ge.f32.partialorder %v3642, 0.0
      %vm3663 = vcmp.ge.f32.partialorder %v3644, 0.0
      %vm3664 = vcmp.ge.f32.partialorder %v3470, 0.0
      %vm3665 = vcmp.ge.f32.partialorder %v3472, 0.0
      %vm3666 = vcmp.ge.f32.partialorder %v3648, 0.0
      %vm3667 = vcmp.ge.f32.partialorder %v3650, 0.0
      %v3668 = vmul.f32 %v1437, %v3452
      %v3669 = vmul.f32 %v1437, %v3454
      %v3670 = vmul.f32 %v1437, %v3630
      %v3671 = vmul.f32 %v1437, %v3632
      %v3672 = vmul.f32 %v1437, %v3458
      %v3673 = vmul.f32 %v1437, %v3460
      %v3674 = vmul.f32 %v1437, %v3636
      %v3675 = vmul.f32 %v1437, %v3638
      %v3676 = vmul.f32 %v1437, %v3464
      %v3677 = vmul.f32 %v1437, %v3466
      %v3678 = vmul.f32 %v1437, %v3642
      %v3679 = vmul.f32 %v1437, %v3644
      %v3680 = vmul.f32 %v1437, %v3470
      %v3681 = vmul.f32 %v1437, %v3472
      %v3682 = vmul.f32 %v1437, %v3648
      %v3683 = vmul.f32 %v1437, %v3650
      %v3684 = vsel %vm3652, %v3452, %v3668
      %v3685 = vsel %vm3653, %v3454, %v3669
      %v3686 = vsel %vm3654, %v3630, %v3670
      %v3687 = vsel %vm3655, %v3632, %v3671
      %v3688 = vsel %vm3656, %v3458, %v3672
      %v3689 = vsel %vm3657, %v3460, %v3673
      %v3690 = vsel %vm3658, %v3636, %v3674
      %v3691 = vsel %vm3659, %v3638, %v3675
      %v3692 = vsel %vm3660, %v3464, %v3676
      %v3693 = vsel %vm3661, %v3466, %v3677
      %v3694 = vsel %vm3662, %v3642, %v3678
      %v3695 = vsel %vm3663, %v3644, %v3679
      %v3696 = vsel %vm3664, %v3470, %v3680
      %v3697 = vsel %vm3665, %v3472, %v3681
      %v3698 = vsel %vm3666, %v3648, %v3682
      %v3699 = vsel %vm3667, %v3650, %v3683
      %v3700 = vld [vmem:[%s7] sm:$0xff]
      %v3701 = vld [vmem:[%s8] sm:$0xff]
      %3703 = vset.pattern.permute.xlu0 0
      %3704 = vperm.xlu0 %3703, %v3701
      %v3705 = vpop.permute.xlu0 %3704
      %vm3707 = vcmask 261120
      %v3709 = vsel %vm3707, %v3700, 0
      %3711 = vmatprep.subr.mxu0 0.0
      %3712 = vmatpush1.msra.mxu0 0.0
      %3713 = vmatprep.subr.mxu0 0.0
      %3714 = vmatpush1.msra.mxu0 0.0
      %3715 = vmatprep.subr.mxu0 0.0
      %3716 = vmatpush1.msra.mxu0 0.0
      %3717 = vmatprep.subr.mxu0 0.0
      %3718 = vmatpush1.msra.mxu0 0.0
      %3719 = vmatprep.subr.mxu0 0.0
      %3720 = vmatpush1.msra.mxu0 0.0
      %3721 = vmatprep.subr.mxu0 0.0
      %3722 = vmatpush1.msra.mxu0 0.0
      %3723 = vmatprep.subr.mxu0 0.0
      %3724 = vmatpush1.msra.mxu0 0.0
      %3725 = vmatprep.subr.mxu0 0.0
      %3726 = vmatpush1.msra.mxu0 0.0
      %3727 = vmatprep.subr.mxu0 0.0
      %3728 = vmatpush1.msra.mxu0 0.0
      %3729 = vmatprep.subr.mxu0 0.0
      %3730 = vmatpush1.msra.mxu0 0.0
      %3731 = vmatprep.subr.mxu0 0.0
      %3732 = vmatpush1.msra.mxu0 0.0
      %3733 = vmatprep.subr.mxu0 0.0
      %3734 = vmatpush1.msra.mxu0 0.0
      %3735 = vmatprep.subr.mxu0 %v3697
      %3736 = vmatpush1.msra.mxu0 %v3696
      %3737 = vmatprep.subr.mxu0 %v3693
      %3738 = vmatpush1.msra.mxu0 %v3692
      %3739 = vmatprep.subr.mxu0 %v3689
      %3740 = vmatpush1.msra.mxu0 %v3688
      %3741 = vmatprep.subr.mxu0 %v3685
      %3742 = vmatpush1.msra.mxu0 %v3684
      %3743 = vmatprep.subr.mxu0 0.0
      %3744 = vmatpush2.msra.mxu0 0.0
      %3745 = vmatprep.subr.mxu0 0.0
      %3746 = vmatpush2.msra.mxu0 0.0
      %3747 = vmatprep.subr.mxu0 0.0
      %3748 = vmatpush2.msra.mxu0 0.0
      %3749 = vmatprep.subr.mxu0 0.0
      %3750 = vmatpush2.msra.mxu0 0.0
      %3751 = vmatprep.subr.mxu0 0.0
      %3752 = vmatpush2.msra.mxu0 0.0
      %3753 = vmatprep.subr.mxu0 0.0
      %3754 = vmatpush2.msra.mxu0 0.0
      %3755 = vmatprep.subr.mxu0 0.0
      %3756 = vmatpush2.msra.mxu0 0.0
      %3757 = vmatprep.subr.mxu0 0.0
      %3758 = vmatpush2.msra.mxu0 0.0
      %3759 = vmatprep.subr.mxu0 0.0
      %3760 = vmatpush2.msra.mxu0 0.0
      %3761 = vmatprep.subr.mxu0 0.0
      %3762 = vmatpush2.msra.mxu0 0.0
      %3763 = vmatprep.subr.mxu0 0.0
      %3764 = vmatpush2.msra.mxu0 0.0
      %3765 = vmatprep.subr.mxu0 0.0
      %3766 = vmatpush2.msra.mxu0 0.0
      %3767 = vmatprep.subr.mxu0 0.0
      %3768 = vmatpush2.msra.mxu0 0.0
      %3769 = vmatprep.subr.mxu0 0.0
      %3770 = vmatpush2.msra.mxu0 0.0
      %3771 = vmatprep.subr.mxu0 0.0
      %3772 = vmatpush2.msra.mxu0 0.0
      %3773 = vmatprep.subr.mxu0 0.0
      %3774 = vmatpush2.msra.mxu0 0.0
      %3775 = vmatprep.mubr.f32.mxu0 0.0
      %3776 = vmatmul.mubr.f32.gmra.mxu0 %v3709
      %v3777 = vpop.f32.mrf.mxu0
      %v3778 = vadd.f32 %v3705, %v3777
      %v3779 = vpop.f32.mrf.mxu0
      %v3780 = vadd.f32 %v3705, %v3779
      %3781 = vdwg.mxu0
      %3782 = vmatprep.subr.mxu0 0.0
      %3783 = vmatpush1.msra.mxu0 0.0
      %3784 = vmatprep.subr.mxu0 0.0
      %3785 = vmatpush1.msra.mxu0 0.0
      %3786 = vmatprep.subr.mxu0 0.0
      %3787 = vmatpush1.msra.mxu0 0.0
      %3788 = vmatprep.subr.mxu0 0.0
      %3789 = vmatpush1.msra.mxu0 0.0
      %3790 = vmatprep.subr.mxu0 0.0
      %3791 = vmatpush1.msra.mxu0 0.0
      %3792 = vmatprep.subr.mxu0 0.0
      %3793 = vmatpush1.msra.mxu0 0.0
      %3794 = vmatprep.subr.mxu0 0.0
      %3795 = vmatpush1.msra.mxu0 0.0
      %3796 = vmatprep.subr.mxu0 0.0
      %3797 = vmatpush1.msra.mxu0 0.0
      %3798 = vmatprep.subr.mxu0 0.0
      %3799 = vmatpush1.msra.mxu0 0.0
      %3800 = vmatprep.subr.mxu0 0.0
      %3801 = vmatpush1.msra.mxu0 0.0
      %3802 = vmatprep.subr.mxu0 0.0
      %3803 = vmatpush1.msra.mxu0 0.0
      %3804 = vmatprep.subr.mxu0 0.0
      %3805 = vmatpush1.msra.mxu0 0.0
      %3806 = vmatprep.subr.mxu0 %v3699
      %3807 = vmatpush1.msra.mxu0 %v3698
      %3808 = vmatprep.subr.mxu0 %v3695
      %3809 = vmatpush1.msra.mxu0 %v3694
      %3810 = vmatprep.subr.mxu0 %v3691
      %3811 = vmatpush1.msra.mxu0 %v3690
      %3812 = vmatprep.subr.mxu0 %v3687
      %3813 = vmatpush1.msra.mxu0 %v3686
      %3814 = vmatprep.subr.mxu0 0.0
      %3815 = vmatpush2.msra.mxu0 0.0
      %3816 = vmatprep.subr.mxu0 0.0
      %3817 = vmatpush2.msra.mxu0 0.0
      %3818 = vmatprep.subr.mxu0 0.0
      %3819 = vmatpush2.msra.mxu0 0.0
      %3820 = vmatprep.subr.mxu0 0.0
      %3821 = vmatpush2.msra.mxu0 0.0
      %3822 = vmatprep.subr.mxu0 0.0
      %3823 = vmatpush2.msra.mxu0 0.0
      %3824 = vmatprep.subr.mxu0 0.0
      %3825 = vmatpush2.msra.mxu0 0.0
      %3826 = vmatprep.subr.mxu0 0.0
      %3827 = vmatpush2.msra.mxu0 0.0
      %3828 = vmatprep.subr.mxu0 0.0
      %3829 = vmatpush2.msra.mxu0 0.0
      %3830 = vmatprep.subr.mxu0 0.0
      %3831 = vmatpush2.msra.mxu0 0.0
      %3832 = vmatprep.subr.mxu0 0.0
      %3833 = vmatpush2.msra.mxu0 0.0
      %3834 = vmatprep.subr.mxu0 0.0
      %3835 = vmatpush2.msra.mxu0 0.0
      %3836 = vmatprep.subr.mxu0 0.0
      %3837 = vmatpush2.msra.mxu0 0.0
      %3838 = vmatprep.subr.mxu0 0.0
      %3839 = vmatpush2.msra.mxu0 0.0
      %3840 = vmatprep.subr.mxu0 0.0
      %3841 = vmatpush2.msra.mxu0 0.0
      %3842 = vmatprep.subr.mxu0 0.0
      %3843 = vmatpush2.msra.mxu0 0.0
      %3844 = vmatprep.subr.mxu0 0.0
      %3845 = vmatpush2.msra.mxu0 0.0
      %3846 = vmatprep.mubr.f32.mxu0 0.0
      %3847 = vmatmul.mubr.f32.gmra.mxu0 %v3709
      %v3848 = vpop.f32.mrf.mxu0
      %v3849 = vadd.f32 %v3705, %v3848
      %v3850 = vpop.f32.mrf.mxu0
      %v3851 = vadd.f32 %v3705, %v3850
      %3852 = vdwg.mxu0
      %v3853 = vmul.f32 %v3778, %v1458
      %v3854 = vmul.f32 %v3780, %v1462
      %v3855 = vmul.f32 %v3849, %v1466
      %v3856 = vmul.f32 %v3851, %v1470
      %v3857 = vld [vmem:[%s328 + $0x8] sm:$0xff]
      %v3858 = vld [vmem:[%s328 + $0x10] sm:$0xff]
      %v3859 = vld [vmem:[%s328 + $0x18] sm:$0xff]
      %v3860 = vld [vmem:[%s328 + $0x20] sm:$0xff]
      %v3861 = vadd.f32 %v3853, %v3857
      %v3862 = vadd.f32 %v3854, %v3858
      %v3863 = vadd.f32 %v3855, %v3859
      %v3864 = vadd.f32 %v3856, %v3860
      %3865 = vst [vmem:[%s333] sm:$0xff] 0.0
      %3866 = vst [vmem:[%s333 + $0x28] sm:$0xff] 0.0
      %3867 = vst [vmem:[%s333 + $0x8] sm:$0xff] %v3861
      %3868 = vst [vmem:[%s333 + $0x10] sm:$0xff] %v3862
      %3869 = vst [vmem:[%s333 + $0x18] sm:$0xff] %v3863
      %3870 = vst [vmem:[%s333 + $0x20] sm:$0xff] %v3864
      %p3871 = scmp.lt.s32.totalorder %s21, 1
      %s3872 = scalar_select %p3871, %s21, 1
      %s3873 = smul.addr %s3872, 6
      %s3874 = smul.addr %s3873, 8
      %s3875 = scalar_lea.vmem %s9, %s3874
      // Predicated region
      $region57: #{msrb_forward.1} parent=55 // pred_check
        %p3876 = pneg %p233
      $region58: #{msrb_forward.1} parent=55 // pred_check_branch
        %3878 = sbr.rel (%p3876) target = $region60
      $region59: #{msrb_forward.1} parent=55 // pred_region
        _
      $region60: #{msrb_forward.1} parent=55 // pred_fallthru
        _
    $region56: #{msrb_forward.1} parent=5 // pred_fallthru
      _
    %p3879 = scmp.le.s32.totalorder 2, %s16
    // Predicated region
    $region61: #{msrb_forward.1} parent=5 // pred_check
      %p3880 = pneg %p3879
    $region62: #{msrb_forward.1} parent=5 // pred_check_branch
      %3882 = sbr.rel (%p3880) target = $region64
    $region63: #{msrb_forward.1} parent=5 // pred_region
      %s3883 = ssub.s32 %s16, 2
      // Predicated region
      $region65: #{msrb_forward.1} parent=63 // pred_check
        %p3884 = pneg %p239
      $region66: #{msrb_forward.1} parent=63 // pred_check_branch
        %3886 = sbr.rel (%p3884) target = $region68
      $region67: #{msrb_forward.1} parent=63 // pred_region
        %p3887 = scmp.lt.s32.totalorder %s22, 1
        %s3888 = scalar_select %p3887, %s22, 1
        %s3889 = smul.addr %s3888, 6
        %s3890 = smul.addr %s3889, 8
        %s3891 = scalar_lea.vmem %s9, %s3890
      $region68: #{msrb_forward.1} parent=63 // pred_fallthru
        _
    $region64: #{msrb_forward.1} parent=5 // pred_fallthru
      _
  $region6: #{msrb_forward.1} parent=0 // loop_footer
    %s20 = sadd.s32 1, %s16
  $region7: #{msrb_forward.1} parent=0 // loop_footer_branch
    %15 = sbr.rel target = $region3
  $region8: #{msrb_forward.1} parent=0 // loop_exit
    _

</llo_original>
